<compile_context>
chip_gen: v7x
topology: tpu7x:2x2x1
jax: 0.10.0
libtpu: 0.0.40
codegen_flags: <defaults>
</compile_context>

<pallas_src>
import jax
import jax.numpy as jnp
from jax.experimental import pallas as pl
from jax.experimental.pallas import tpu as pltpu


def relu_conv3x3_kernel(x_ref, w01_ref, w2_ref, b_ref, o_ref):
    """One (batch, row-strip) tile per grid step.

    x_ref   : (1, H, W, Cin)      bf16 full (unpadded) image for this batch elem
    w01_ref : (3*Cin, 2*Cout)     bf16 weights, kh=0 and kh=1 packed along N
    w2_ref  : (3*Cin, Cout)       bf16 weights for kh=2
    b_ref   : (1, Cout)           f32 bias
    o_ref   : (1, TH, W, Cout)    output row strip
    """
    H, W, Cin = x_ref.shape[1], x_ref.shape[2], x_ref.shape[3]
    TH, Cout = o_ref.shape[1], o_ref.shape[3]

    h = pl.program_id(1)
    n_strips = pl.num_programs(1)
    row0 = pl.multiple_of(h * TH, TH)  # first output row of this strip

    # Gather TH + 2 input rows (strip + 1-row halo).  Halo rows outside the
    # image are read clamped (in-bounds) and replaced with zeros via a select
    # (NOT a multiply, so NaN/Inf at the image border cannot pollute the halo).
    # ReLU is applied per piece so all later relayout copies move bf16 data.
    mid = jnp.maximum(x_ref[0, pl.ds(row0, TH), :, :], 0.0)              # (TH, W, Cin)
    top = x_ref[0, pl.ds(jnp.maximum(row0 - 1, 0), 1), :, :]             # (1, W, Cin)
    bot = x_ref[0, pl.ds(jnp.minimum(row0 + TH, H - 1), 1), :, :]        # (1, W, Cin)
    top = jnp.where(h > 0, jnp.maximum(top, 0.0), jnp.zeros_like(top))
    bot = jnp.where(h < n_strips - 1, jnp.maximum(bot, 0.0), jnp.zeros_like(bot))

    xs = jnp.concatenate([top, mid, bot], axis=0)                        # (TH+2, W, Cin) bf16

    # kw (width) taps folded into the contraction/lane axis (mini im2col):
    #   lanes [0,Cin)       x[., j-1, .]   (kw=0 tap, zero at j=0)
    #   lanes [Cin,2Cin)    x[., j  , .]   (kw=1 tap)
    #   lanes [2Cin,3Cin)   x[., j+1, .]   (kw=2 tap, zero at j=W-1)
    zcol = jnp.zeros((TH + 2, 1, Cin), xs.dtype)
    left = jnp.concatenate([zcol, xs[:, : W - 1, :]], axis=1)
    right = jnp.concatenate([xs[:, 1:, :], zcol], axis=1)
    xcat = jnp.concatenate([left, xs, right], axis=-1)                   # (TH+2, W, 3*Cin)

    xf = xcat.reshape((TH + 2) * W, 3 * Cin)

    # kh=0 & kh=1 taps packed along N -> one full-width (256-lane) MXU matmul.
    # out[h,j] = sum_kh xcat[h+kh, j] @ w[kh]  ->  the two packed halves are
    # row-offset slices (0 and W) of the same product.
    r01 = jnp.dot(xf, w01_ref[...], preferred_element_type=jnp.float32)  # ((TH+2)*W, 2*Cout)
    acc = r01[0:TH * W, 0:Cout] + r01[W:(TH + 1) * W, Cout:2 * Cout]

    # kh=2 tap: separate N=Cout dot on exactly the TH*W rows it contributes to.
    x2 = xcat[2:TH + 2].reshape(TH * W, 3 * Cin)
    acc = acc + jnp.dot(x2, w2_ref[...], preferred_element_type=jnp.float32)

    acc = acc + b_ref[...]
    o_ref[...] = acc.reshape(1, TH, W, Cout).astype(o_ref.dtype)


def _pick_tile_h(H, W, target_rows=1024):
    """Smallest divisor TH of H with TH*W >= target_rows (amortize per-step cost)."""
    for th in range(1, H + 1):
        if H % th == 0 and th * W >= target_rows:
            return th
    return H


def relu_conv2d(x_nhwc, w_hwio, bias, *, tile_h=None):
    """x_nhwc: (N, H, W, Cin); w_hwio: (3, 3, Cin, Cout); bias: (Cout,)."""
    N, H, W, Cin = x_nhwc.shape
    Cout = w_hwio.shape[-1]
    if tile_h is None:
        tile_h = _pick_tile_h(H, W)
    if H % tile_h != 0:
        tile_h = H                     # fallback: single strip
    n_strips = H // tile_h

    # bf16 activations / weights for the MXU; f32 accumulation in-kernel.
    x_bf16 = x_nhwc.astype(jnp.bfloat16)
    w_cat = w_hwio.reshape(3, 3 * Cin, Cout).astype(jnp.bfloat16)
    w01 = jnp.concatenate([w_cat[0], w_cat[1]], axis=-1)   # (3*Cin, 2*Cout)
    w2 = w_cat[2]                                           # (3*Cin, Cout)
    b2d = bias.astype(jnp.float32).reshape(1, Cout)

    cost = pl.CostEstimate(
        flops=2 * 9 * N * H * W * Cin * Cout,
        transcendentals=0,
        bytes_accessed=(N * H * W * Cin * 2                # bf16 input
                        + N * H * W * Cout * x_nhwc.dtype.itemsize
                        + 9 * Cin * Cout * 2),
    )

    return pl.pallas_call(
        relu_conv3x3_kernel,
        out_shape=jax.ShapeDtypeStruct((N, H, W, Cout), x_nhwc.dtype),
        grid=(N, n_strips),
        in_specs=[
            # Full image per batch element (bf16); block index constant across
            # the strip axis so it is DMA'd once per batch element.
            pl.BlockSpec((1, H, W, Cin), lambda n, h: (n, 0, 0, 0)),
            pl.BlockSpec((3 * Cin, 2 * Cout), lambda n, h: (0, 0)),
            pl.BlockSpec((3 * Cin, Cout), lambda n, h: (0, 0)),
            pl.BlockSpec((1, Cout), lambda n, h: (0, 0)),
        ],
        out_specs=pl.BlockSpec((1, tile_h, W, Cout), lambda n, h: (n, h, 0, 0)),
        compiler_params=pltpu.CompilerParams(
            dimension_semantics=("parallel", "parallel"),
        ),
        cost_estimate=cost,
    )(x_bf16, w01, w2, b2d)


def pytorch_module_forward(x_nchw, w_hwio, bias):
    """Matches M.forward: relu2 -> conv2d3, NCHW in / NCHW out."""
    # TODO(synk): in a fused NHWC pipeline these layout transposes would be
    # eliminated; they are kept only to preserve the PyTorch NCHW interface.
    x_nhwc = jnp.transpose(x_nchw, (0, 2, 3, 1))
    y_nhwc = relu_conv2d(x_nhwc, w_hwio, bias)
    return jnp.transpose(y_nhwc, (0, 3, 1, 2))


if __name__ == "__main__":
    key = jax.random.PRNGKey(0)
    k_x, k_w, k_b = jax.random.split(key, 3)

    # Channels fixed at 128 by the module; small spatial size for the test.
    N, C_IN, C_OUT, H, W = 1, 128, 128, 32, 32

    x_nchw = jax.random.normal(k_x, (N, C_IN, H, W), dtype=jnp.float32)
    w_hwio = 0.05 * jax.random.normal(k_w, (3, 3, C_IN, C_OUT), dtype=jnp.float32)
    bias = 0.01 * jax.random.normal(k_b, (C_OUT,), dtype=jnp.float32)

    y = pytorch_module_forward(x_nchw, w_hwio, bias)
    y = jax.block_until_ready(y)

    # Pure-JAX f32 reference (relu -> conv, same semantics as the module).
    x_nhwc = jnp.transpose(x_nchw, (0, 2, 3, 1))
    ref_nhwc = jax.lax.conv_general_dilated(
        jnp.maximum(x_nhwc, 0.0),
        w_hwio,
        window_strides=(1, 1),
        padding=((1, 1), (1, 1)),
        dimension_numbers=("NHWC", "HWIO", "NHWC"),
    ) + bias
    ref = jnp.transpose(ref_nhwc, (0, 3, 1, 2))

    assert y.shape == (N, C_OUT, H, W)
    # bf16 MXU inputs with f32 accumulation -> slightly relaxed tolerance.
    max_err = float(jnp.max(jnp.abs(y - ref)))
    assert jnp.allclose(y, ref, atol=3e-2, rtol=3e-2), max_err
    print("KERNEL_OK")
</pallas_src>

<mosaic_0001>
module attributes {stable_mosaic.version = 11 : i64} {
  func.func @relu_conv3x3_kernel(%arg0: i32, %arg1: i32, %arg2: memref<1x32x32x128xbf16, #tpu.memory_space<vmem>>, %arg3: memref<384x256xbf16, #tpu.memory_space<vmem>>, %arg4: memref<384x128xbf16, #tpu.memory_space<vmem>>, %arg5: memref<1x128xf32, #tpu.memory_space<vmem>>, %arg6: memref<1x32x32x128xf32, #tpu.memory_space<vmem>>) attributes {dimension_semantics = [#tpu.dimension_semantics<parallel>, #tpu.dimension_semantics<parallel>], iteration_bounds = array<i64: 1, 1>, scalar_prefetch = 0 : i64, scratch_operands = 0 : i64, tpu.core_type = #tpu.core_type<tc>, window_params = [{transform_indices = @transform_0, window_bounds = array<i64: 1, 32, 32, 128>}, {pipeline_mode = #tpu.pipeline_mode<synchronous>, transform_indices = @transform_1, window_bounds = array<i64: 384, 256>}, {pipeline_mode = #tpu.pipeline_mode<synchronous>, transform_indices = @transform_2, window_bounds = array<i64: 384, 128>}, {pipeline_mode = #tpu.pipeline_mode<synchronous>, transform_indices = @transform_3, window_bounds = array<i64: 1, 128>}, {transform_indices = @transform_4, window_bounds = array<i64: 1, 32, 32, 128>}]} {
    %c32_i32 = arith.constant 32 : i32
    %0 = arith.muli %arg1, %c32_i32 : i32
    %1 = tpu.assume_multiple %0, 32 : i32
    %c0 = arith.constant 0 : index
    %2 = arith.index_cast %1 : i32 to index
    %c0_0 = arith.constant 0 : index
    %c0_1 = arith.constant 0 : index
    %3 = vector.load %arg2[%c0, %2, %c0_0, %c0_1] : memref<1x32x32x128xbf16, #tpu.memory_space<vmem>>, vector<1x32x32x128xbf16>
    %4 = vector.shape_cast %3 : vector<1x32x32x128xbf16> to vector<32x32x128xbf16>
    %cst = arith.constant 0.000000e+00 : bf16
    %5 = vector.broadcast %cst : bf16 to vector<32x32x128xbf16>
    %6 = arith.maximumf %4, %5 : vector<32x32x128xbf16>
    %c1_i32 = arith.constant 1 : i32
    %7 = arith.subi %1, %c1_i32 : i32
    %c0_i32 = arith.constant 0 : i32
    %8 = arith.maxsi %7, %c0_i32 : i32
    %c0_2 = arith.constant 0 : index
    %9 = arith.index_cast %8 : i32 to index
    %c0_3 = arith.constant 0 : index
    %c0_4 = arith.constant 0 : index
    %10 = vector.load %arg2[%c0_2, %9, %c0_3, %c0_4] : memref<1x32x32x128xbf16, #tpu.memory_space<vmem>>, vector<1x1x32x128xbf16>
    %11 = vector.shape_cast %10 : vector<1x1x32x128xbf16> to vector<1x32x128xbf16>
    %c32_i32_5 = arith.constant 32 : i32
    %12 = arith.addi %1, %c32_i32_5 : i32
    %c31_i32 = arith.constant 31 : i32
    %13 = arith.minsi %12, %c31_i32 : i32
    %c0_6 = arith.constant 0 : index
    %14 = arith.index_cast %13 : i32 to index
    %c0_7 = arith.constant 0 : index
    %c0_8 = arith.constant 0 : index
    %15 = vector.load %arg2[%c0_6, %14, %c0_7, %c0_8] : memref<1x32x32x128xbf16, #tpu.memory_space<vmem>>, vector<1x1x32x128xbf16>
    %16 = vector.shape_cast %15 : vector<1x1x32x128xbf16> to vector<1x32x128xbf16>
    %c0_i32_9 = arith.constant 0 : i32
    %17 = arith.cmpi sgt, %arg1, %c0_i32_9 : i32
    %cst_10 = arith.constant 0.000000e+00 : bf16
    %18 = vector.broadcast %cst_10 : bf16 to vector<1x32x128xbf16>
    %19 = arith.maximumf %11, %18 : vector<1x32x128xbf16>
    %cst_11 = arith.constant 0.000000e+00 : bf16
    %20 = vector.broadcast %cst_11 : bf16 to vector<1x32x128xbf16>
    %21 = arith.select %17, %19, %20 : vector<1x32x128xbf16>
    %c0_i32_12 = arith.constant 0 : i32
    %22 = arith.cmpi slt, %arg1, %c0_i32_12 : i32
    %cst_13 = arith.constant 0.000000e+00 : bf16
    %23 = vector.broadcast %cst_13 : bf16 to vector<1x32x128xbf16>
    %24 = arith.maximumf %16, %23 : vector<1x32x128xbf16>
    %cst_14 = arith.constant 0.000000e+00 : bf16
    %25 = vector.broadcast %cst_14 : bf16 to vector<1x32x128xbf16>
    %26 = arith.select %22, %24, %25 : vector<1x32x128xbf16>
    %27 = tpu.concatenate %21, %6, %26 in 0 : vector<1x32x128xbf16>, vector<32x32x128xbf16>, vector<1x32x128xbf16> -> vector<34x32x128xbf16>
    %cst_15 = arith.constant 0.000000e+00 : bf16
    %28 = vector.broadcast %cst_15 : bf16 to vector<34x1x128xbf16>
    %29 = vector.extract_strided_slice %27 {offsets = [0, 0, 0], sizes = [34, 31, 128], strides = [1, 1, 1]} : vector<34x32x128xbf16> to vector<34x31x128xbf16>
    %30 = tpu.concatenate %28, %29 in 1 : vector<34x1x128xbf16>, vector<34x31x128xbf16> -> vector<34x32x128xbf16>
    %31 = vector.extract_strided_slice %27 {offsets = [0, 1, 0], sizes = [34, 31, 128], strides = [1, 1, 1]} : vector<34x32x128xbf16> to vector<34x31x128xbf16>
    %32 = tpu.concatenate %31, %28 in 1 : vector<34x31x128xbf16>, vector<34x1x128xbf16> -> vector<34x32x128xbf16>
    %33 = tpu.concatenate %30, %27, %32 in 2 : vector<34x32x128xbf16>, vector<34x32x128xbf16>, vector<34x32x128xbf16> -> vector<34x32x384xbf16>
    %34 = vector.shape_cast %33 : vector<34x32x384xbf16> to vector<1088x384xbf16>
    %c0_16 = arith.constant 0 : index
    %c0_17 = arith.constant 0 : index
    %35 = vector.load %arg3[%c0_16, %c0_17] : memref<384x256xbf16, #tpu.memory_space<vmem>>, vector<384x256xbf16>
    %cst_18 = arith.constant dense<0.000000e+00> : vector<1088x256xf32>
    %36 = tpu.matmul %34, %35, %cst_18 {dimension_numbers = #tpu.dot_dimension_numbers<[1], [0], [0], [1], [0, 0, 1, 1], [], []>} : vector<1088x384xbf16>, vector<384x256xbf16>, vector<1088x256xf32> -> vector<1088x256xf32>
    %37 = vector.extract_strided_slice %36 {offsets = [0, 0], sizes = [1024, 128], strides = [1, 1]} : vector<1088x256xf32> to vector<1024x128xf32>
    %38 = vector.extract_strided_slice %36 {offsets = [32, 128], sizes = [1024, 128], strides = [1, 1]} : vector<1088x256xf32> to vector<1024x128xf32>
    %39 = arith.addf %37, %38 : vector<1024x128xf32>
    %40 = vector.extract_strided_slice %33 {offsets = [2, 0, 0], sizes = [32, 32, 384], strides = [1, 1, 1]} : vector<34x32x384xbf16> to vector<32x32x384xbf16>
    %41 = vector.shape_cast %40 : vector<32x32x384xbf16> to vector<1024x384xbf16>
    %c0_19 = arith.constant 0 : index
    %c0_20 = arith.constant 0 : index
    %42 = vector.load %arg4[%c0_19, %c0_20] : memref<384x128xbf16, #tpu.memory_space<vmem>>, vector<384x128xbf16>
    %cst_21 = arith.constant dense<0.000000e+00> : vector<1024x128xf32>
    %43 = tpu.matmul %41, %42, %cst_21 {dimension_numbers = #tpu.dot_dimension_numbers<[1], [0], [0], [1], [0, 0, 1, 1], [], []>} : vector<1024x384xbf16>, vector<384x128xbf16>, vector<1024x128xf32> -> vector<1024x128xf32>
    %44 = arith.addf %39, %43 : vector<1024x128xf32>
    %c0_22 = arith.constant 0 : index
    %c0_23 = arith.constant 0 : index
    %45 = vector.load %arg5[%c0_22, %c0_23] : memref<1x128xf32, #tpu.memory_space<vmem>>, vector<1x128xf32>
    %46 = vector.broadcast %45 : vector<1x128xf32> to vector<1024x128xf32>
    %47 = arith.addf %44, %46 : vector<1024x128xf32>
    %48 = vector.shape_cast %47 : vector<1024x128xf32> to vector<1x32x32x128xf32>
    %c0_24 = arith.constant 0 : index
    %c0_25 = arith.constant 0 : index
    %c0_26 = arith.constant 0 : index
    %c0_27 = arith.constant 0 : index
    %49 = vector.load %arg6[%c0_24, %c0_25, %c0_26, %c0_27] : memref<1x32x32x128xf32, #tpu.memory_space<vmem>>, vector<1x32x32x128xf32>
    tpu.vector_store %arg6[%c0_24, %c0_25, %c0_26, %c0_27], %48 {strides = array<i32>} : memref<1x32x32x128xf32, #tpu.memory_space<vmem>>, vector<1x32x32x128xf32>,
    return
  }
  func.func @transform_0(%arg0: i32, %arg1: i32) -> (i32, i32, i32, i32) {
    %c0_i32 = arith.constant 0 : i32
    %c0_i32_0 = arith.constant 0 : i32
    %c0_i32_1 = arith.constant 0 : i32
    %c0_i32_2 = arith.constant 0 : i32
    return %arg0, %c0_i32, %c0_i32_0, %c0_i32_1 : i32, i32, i32, i32
  }
  func.func @transform_1(%arg0: i32, %arg1: i32) -> (i32, i32) {
    %c0_i32 = arith.constant 0 : i32
    %c0_i32_0 = arith.constant 0 : i32
    %c0_i32_1 = arith.constant 0 : i32
    return %c0_i32, %c0_i32_0 : i32, i32
  }
  func.func @transform_2(%arg0: i32, %arg1: i32) -> (i32, i32) {
    %c0_i32 = arith.constant 0 : i32
    %c0_i32_0 = arith.constant 0 : i32
    %c0_i32_1 = arith.constant 0 : i32
    return %c0_i32, %c0_i32_0 : i32, i32
  }
  func.func @transform_3(%arg0: i32, %arg1: i32) -> (i32, i32) {
    %c0_i32 = arith.constant 0 : i32
    %c0_i32_0 = arith.constant 0 : i32
    %c0_i32_1 = arith.constant 0 : i32
    return %c0_i32, %c0_i32_0 : i32, i32
  }
  func.func @transform_4(%arg0: i32, %arg1: i32) -> (i32, i32, i32, i32) {
    %c0_i32 = arith.constant 0 : i32
    %c0_i32_0 = arith.constant 0 : i32
    %c0_i32_1 = arith.constant 0 : i32
    return %arg0, %arg1, %c0_i32, %c0_i32_0 : i32, i32, i32, i32
  }
}

</mosaic_0001>

<llo_original>
// kernel: tpu_custom_call.1
$region0: #{tpu_custom_call.1}
  #allocation0 [shape = 'u32[]', space=smem, size = 0x4, offset = 0x4, fixed_abs, tag = 'smem constant byte address 0x4 - core index']
  #allocation1 [shape = 'u32[144,128]{1,0:T(1,128)}', space=vmem, size = 0x12000, scoped, tag = 'internal scratch']
  %s0 = inlined_call_operand.hbm [shape: bf16[1,32,32,128], index: 0, kind: input, shape index: {}]
  %s1 = inlined_call_operand.hbm [shape: bf16[384,256], index: 1, kind: input, shape index: {}]
  %s2 = inlined_call_operand.hbm [shape: bf16[384,128], index: 2, kind: input, shape index: {}]
  %s3 = inlined_call_operand.vmem [shape: f32[1,128], index: 3, kind: input, shape index: {}]
  %s4 = inlined_call_operand.hbm [shape: f32[1,32,32,128], index: 4, kind: output, shape index: {}]
  %s5 = sld [smem:[#allocation0]]
  $region38: #{tpu_custom_call.1} parent=0
    _
  %s7 = ssub.s32 1, %s5
  %s8 = scalar_select 0, %s7, %s5
  $region1: #{tpu_custom_call.1} parent=0
    #allocation2 [shape = 'u8[262144]{0}', space=vmem, size = 0x40000, scoped, tag = 'input window, operand 0, single buffered']
    #allocation3 [shape = 's32[1]{0}', space=sflag, size = 0x4, scoped, tag = 'scoped memory for tpu_custom_call.1']
    #allocation4 [shape = 's32[1]{0}', space=sflag, size = 0x4, scoped, tag = 'scoped memory for tpu_custom_call.1']
    #allocation5 [shape = 'u8[196608]{0}', space=vmem, size = 0x30000, scoped, tag = 'input window, operand 1, single buffered']
    #allocation6 [shape = 's32[1]{0}', space=sflag, size = 0x4, scoped, tag = 'scoped memory for tpu_custom_call.1']
    #allocation7 [shape = 'u8[98304]{0}', space=vmem, size = 0x18000, scoped, tag = 'input window, operand 2, single buffered']
    #allocation8 [shape = 'u8[524288]{0}', space=vmem, size = 0x80000, scoped, tag = 'output window, operand 0, single buffered']
    %9 = vsyncpa [#allocation3], 0
    %10 = vsyncpa [#allocation6], 0
    %11 = vsyncpa [#allocation4], 0
    // Predicated region
    $region2: #{tpu_custom_call.1} parent=1 // pred_check
      _
    $region3: #{tpu_custom_call.1} parent=1 // pred_check_branch
      %13 = sbr.rel (0) target = $region5
    $region4: #{tpu_custom_call.1} parent=1 // pred_region
      %s15 = ssub.s32 8192, 8192
      %16 = vsyncadd [#allocation3], %s15
      %s17 = sshll.u32 [#allocation2], 4
      %s18 = int_to_ptr.vmem [resolvable:$true] %s17
      %23 = dma.hbm_to_vmem [thread:$0]  %s0, 8192, %s18, [#allocation3], 64, 64, 4
    $region5: #{tpu_custom_call.1} parent=1 // pred_fallthru
      _
    // Predicated region
    $region6: #{tpu_custom_call.1} parent=1 // pred_check
      _
    $region7: #{tpu_custom_call.1} parent=1 // pred_check_branch
      %25 = sbr.rel (0) target = $region9
    $region8: #{tpu_custom_call.1} parent=1 // pred_region
      %s27 = ssub.s32 6144, 6144
      %28 = vsyncadd [#allocation6], %s27
      %s29 = sshll.u32 [#allocation5], 4
      %s30 = int_to_ptr.vmem [resolvable:$true] %s29
      %35 = dma.hbm_to_vmem [thread:$0]  %s1, 6144, %s30, [#allocation6], 128, 128, 8
    $region9: #{tpu_custom_call.1} parent=1 // pred_fallthru
      _
    // Predicated region
    $region10: #{tpu_custom_call.1} parent=1 // pred_check
      _
    $region11: #{tpu_custom_call.1} parent=1 // pred_check_branch
      %37 = sbr.rel (0) target = $region13
    $region12: #{tpu_custom_call.1} parent=1 // pred_region
      %s39 = ssub.s32 3072, 3072
      %40 = vsyncadd [#allocation6], %s39
      %s41 = sshll.u32 [#allocation7], 4
      %s42 = int_to_ptr.vmem [resolvable:$true] %s41
      %47 = dma.hbm_to_vmem [thread:$0]  %s2, 3072, %s42, [#allocation6], 64, 64, 4
    $region13: #{tpu_custom_call.1} parent=1 // pred_fallthru
      _
    // Predicated region
    $region14: #{tpu_custom_call.1} parent=1 // pred_check
      _
    $region15: #{tpu_custom_call.1} parent=1 // pred_check_branch
      %49 = sbr.rel (0) target = $region17
    $region16: #{tpu_custom_call.1} parent=1 // pred_region
      _
    $region17: #{tpu_custom_call.1} parent=1 // pred_fallthru
      _
    // Predicated region
    $region18: #{tpu_custom_call.1} parent=1 // pred_check
      _
    $region19: #{tpu_custom_call.1} parent=1 // pred_check_branch
      %51 = sbr.rel (0) target = $region21
    $region20: #{tpu_custom_call.1} parent=1 // pred_region
      %52 = dma.done [#allocation3], 8192
    $region21: #{tpu_custom_call.1} parent=1 // pred_fallthru
      _
    // Predicated region
    $region22: #{tpu_custom_call.1} parent=1 // pred_check
      _
    $region23: #{tpu_custom_call.1} parent=1 // pred_check_branch
      %54 = sbr.rel (0) target = $region25
    $region24: #{tpu_custom_call.1} parent=1 // pred_region
      %55 = dma.done [#allocation6], 6144
    $region25: #{tpu_custom_call.1} parent=1 // pred_fallthru
      _
    // Predicated region
    $region26: #{tpu_custom_call.1} parent=1 // pred_check
      _
    $region27: #{tpu_custom_call.1} parent=1 // pred_check_branch
      %57 = sbr.rel (0) target = $region29
    $region28: #{tpu_custom_call.1} parent=1 // pred_region
      %58 = dma.done [#allocation6], 3072
    $region29: #{tpu_custom_call.1} parent=1 // pred_fallthru
      _
    %s60 = smul.u32 0, 32
    %s61 = smul.u32 %s60, 4
    %s62 = smul.addr %s61, 4
    %s63 = scalar_lea.vmem [#allocation2], %s62
    %v64 = vld [vmem:[%s63] sm:$0xf]
    %v65 = vld [vmem:[%s63 + $0x4] sm:$0xf]
    %v66 = vld [vmem:[%s63 + $0x8] sm:$0xf]
    %v67 = vld [vmem:[%s63 + $0xc] sm:$0xf]
    %v68 = vld [vmem:[%s63 + $0x10] sm:$0xf]
    %v69 = vld [vmem:[%s63 + $0x14] sm:$0xf]
    %v70 = vld [vmem:[%s63 + $0x18] sm:$0xf]
    %v71 = vld [vmem:[%s63 + $0x1c] sm:$0xf]
    %v72 = vld [vmem:[%s63 + $0x20] sm:$0xf]
    %v73 = vld [vmem:[%s63 + $0x24] sm:$0xf]
    %v74 = vld [vmem:[%s63 + $0x28] sm:$0xf]
    %v75 = vld [vmem:[%s63 + $0x2c] sm:$0xf]
    %v76 = vld [vmem:[%s63 + $0x30] sm:$0xf]
    %v77 = vld [vmem:[%s63 + $0x34] sm:$0xf]
    %v78 = vld [vmem:[%s63 + $0x38] sm:$0xf]
    %v79 = vld [vmem:[%s63 + $0x3c] sm:$0xf]
    %v80 = vld [vmem:[%s63 + $0x40] sm:$0xf]
    %v81 = vld [vmem:[%s63 + $0x44] sm:$0xf]
    %v82 = vld [vmem:[%s63 + $0x48] sm:$0xf]
    %v83 = vld [vmem:[%s63 + $0x4c] sm:$0xf]
    %v84 = vld [vmem:[%s63 + $0x50] sm:$0xf]
    %v85 = vld [vmem:[%s63 + $0x54] sm:$0xf]
    %v86 = vld [vmem:[%s63 + $0x58] sm:$0xf]
    %v87 = vld [vmem:[%s63 + $0x5c] sm:$0xf]
    %v88 = vld [vmem:[%s63 + $0x60] sm:$0xf]
    %v89 = vld [vmem:[%s63 + $0x64] sm:$0xf]
    %v90 = vld [vmem:[%s63 + $0x68] sm:$0xf]
    %v91 = vld [vmem:[%s63 + $0x6c] sm:$0xf]
    %v92 = vld [vmem:[%s63 + $0x70] sm:$0xf]
    %v93 = vld [vmem:[%s63 + $0x74] sm:$0xf]
    %v94 = vld [vmem:[%s63 + $0x78] sm:$0xf]
    %v95 = vld [vmem:[%s63 + $0x7c] sm:$0xf]
    %v96 = vld [vmem:[%s63 + $0x80] sm:$0xf]
    %v97 = vld [vmem:[%s63 + $0x84] sm:$0xf]
    %v98 = vld [vmem:[%s63 + $0x88] sm:$0xf]
    %v99 = vld [vmem:[%s63 + $0x8c] sm:$0xf]
    %v100 = vld [vmem:[%s63 + $0x90] sm:$0xf]
    %v101 = vld [vmem:[%s63 + $0x94] sm:$0xf]
    %v102 = vld [vmem:[%s63 + $0x98] sm:$0xf]
    %v103 = vld [vmem:[%s63 + $0x9c] sm:$0xf]
    %v104 = vld [vmem:[%s63 + $0xa0] sm:$0xf]
    %v105 = vld [vmem:[%s63 + $0xa4] sm:$0xf]
    %v106 = vld [vmem:[%s63 + $0xa8] sm:$0xf]
    %v107 = vld [vmem:[%s63 + $0xac] sm:$0xf]
    %v108 = vld [vmem:[%s63 + $0xb0] sm:$0xf]
    %v109 = vld [vmem:[%s63 + $0xb4] sm:$0xf]
    %v110 = vld [vmem:[%s63 + $0xb8] sm:$0xf]
    %v111 = vld [vmem:[%s63 + $0xbc] sm:$0xf]
    %v112 = vld [vmem:[%s63 + $0xc0] sm:$0xf]
    %v113 = vld [vmem:[%s63 + $0xc4] sm:$0xf]
    %v114 = vld [vmem:[%s63 + $0xc8] sm:$0xf]
    %v115 = vld [vmem:[%s63 + $0xcc] sm:$0xf]
    %v116 = vld [vmem:[%s63 + $0xd0] sm:$0xf]
    %v117 = vld [vmem:[%s63 + $0xd4] sm:$0xf]
    %v118 = vld [vmem:[%s63 + $0xd8] sm:$0xf]
    %v119 = vld [vmem:[%s63 + $0xdc] sm:$0xf]
    %v120 = vld [vmem:[%s63 + $0xe0] sm:$0xf]
    %v121 = vld [vmem:[%s63 + $0xe4] sm:$0xf]
    %v122 = vld [vmem:[%s63 + $0xe8] sm:$0xf]
    %v123 = vld [vmem:[%s63 + $0xec] sm:$0xf]
    %v124 = vld [vmem:[%s63 + $0xf0] sm:$0xf]
    %v125 = vld [vmem:[%s63 + $0xf4] sm:$0xf]
    %v126 = vld [vmem:[%s63 + $0xf8] sm:$0xf]
    %v127 = vld [vmem:[%s63 + $0xfc] sm:$0xf]
    %v128 = vld [vmem:[%s63 + $0x100] sm:$0xf]
    %v129 = vld [vmem:[%s63 + $0x104] sm:$0xf]
    %v130 = vld [vmem:[%s63 + $0x108] sm:$0xf]
    %v131 = vld [vmem:[%s63 + $0x10c] sm:$0xf]
    %v132 = vld [vmem:[%s63 + $0x110] sm:$0xf]
    %v133 = vld [vmem:[%s63 + $0x114] sm:$0xf]
    %v134 = vld [vmem:[%s63 + $0x118] sm:$0xf]
    %v135 = vld [vmem:[%s63 + $0x11c] sm:$0xf]
    %v136 = vld [vmem:[%s63 + $0x120] sm:$0xf]
    %v137 = vld [vmem:[%s63 + $0x124] sm:$0xf]
    %v138 = vld [vmem:[%s63 + $0x128] sm:$0xf]
    %v139 = vld [vmem:[%s63 + $0x12c] sm:$0xf]
    %v140 = vld [vmem:[%s63 + $0x130] sm:$0xf]
    %v141 = vld [vmem:[%s63 + $0x134] sm:$0xf]
    %v142 = vld [vmem:[%s63 + $0x138] sm:$0xf]
    %v143 = vld [vmem:[%s63 + $0x13c] sm:$0xf]
    %v144 = vld [vmem:[%s63 + $0x140] sm:$0xf]
    %v145 = vld [vmem:[%s63 + $0x144] sm:$0xf]
    %v146 = vld [vmem:[%s63 + $0x148] sm:$0xf]
    %v147 = vld [vmem:[%s63 + $0x14c] sm:$0xf]
    %v148 = vld [vmem:[%s63 + $0x150] sm:$0xf]
    %v149 = vld [vmem:[%s63 + $0x154] sm:$0xf]
    %v150 = vld [vmem:[%s63 + $0x158] sm:$0xf]
    %v151 = vld [vmem:[%s63 + $0x15c] sm:$0xf]
    %v152 = vld [vmem:[%s63 + $0x160] sm:$0xf]
    %v153 = vld [vmem:[%s63 + $0x164] sm:$0xf]
    %v154 = vld [vmem:[%s63 + $0x168] sm:$0xf]
    %v155 = vld [vmem:[%s63 + $0x16c] sm:$0xf]
    %v156 = vld [vmem:[%s63 + $0x170] sm:$0xf]
    %v157 = vld [vmem:[%s63 + $0x174] sm:$0xf]
    %v158 = vld [vmem:[%s63 + $0x178] sm:$0xf]
    %v159 = vld [vmem:[%s63 + $0x17c] sm:$0xf]
    %v160 = vld [vmem:[%s63 + $0x180] sm:$0xf]
    %v161 = vld [vmem:[%s63 + $0x184] sm:$0xf]
    %v162 = vld [vmem:[%s63 + $0x188] sm:$0xf]
    %v163 = vld [vmem:[%s63 + $0x18c] sm:$0xf]
    %v164 = vld [vmem:[%s63 + $0x190] sm:$0xf]
    %v165 = vld [vmem:[%s63 + $0x194] sm:$0xf]
    %v166 = vld [vmem:[%s63 + $0x198] sm:$0xf]
    %v167 = vld [vmem:[%s63 + $0x19c] sm:$0xf]
    %v168 = vld [vmem:[%s63 + $0x1a0] sm:$0xf]
    %v169 = vld [vmem:[%s63 + $0x1a4] sm:$0xf]
    %v170 = vld [vmem:[%s63 + $0x1a8] sm:$0xf]
    %v171 = vld [vmem:[%s63 + $0x1ac] sm:$0xf]
    %v172 = vld [vmem:[%s63 + $0x1b0] sm:$0xf]
    %v173 = vld [vmem:[%s63 + $0x1b4] sm:$0xf]
    %v174 = vld [vmem:[%s63 + $0x1b8] sm:$0xf]
    %v175 = vld [vmem:[%s63 + $0x1bc] sm:$0xf]
    %v176 = vld [vmem:[%s63 + $0x1c0] sm:$0xf]
    %v177 = vld [vmem:[%s63 + $0x1c4] sm:$0xf]
    %v178 = vld [vmem:[%s63 + $0x1c8] sm:$0xf]
    %v179 = vld [vmem:[%s63 + $0x1cc] sm:$0xf]
    %v180 = vld [vmem:[%s63 + $0x1d0] sm:$0xf]
    %v181 = vld [vmem:[%s63 + $0x1d4] sm:$0xf]
    %v182 = vld [vmem:[%s63 + $0x1d8] sm:$0xf]
    %v183 = vld [vmem:[%s63 + $0x1dc] sm:$0xf]
    %v184 = vld [vmem:[%s63 + $0x1e0] sm:$0xf]
    %v185 = vld [vmem:[%s63 + $0x1e4] sm:$0xf]
    %v186 = vld [vmem:[%s63 + $0x1e8] sm:$0xf]
    %v187 = vld [vmem:[%s63 + $0x1ec] sm:$0xf]
    %v188 = vld [vmem:[%s63 + $0x1f0] sm:$0xf]
    %v189 = vld [vmem:[%s63 + $0x1f4] sm:$0xf]
    %v190 = vld [vmem:[%s63 + $0x1f8] sm:$0xf]
    %v191 = vld [vmem:[%s63 + $0x1fc] sm:$0xf]
    %v192 = vmax.bf16 %v64, 0
    %v193 = vmax.bf16 %v65, 0
    %v194 = vmax.bf16 %v66, 0
    %v195 = vmax.bf16 %v67, 0
    %v196 = vmax.bf16 %v68, 0
    %v197 = vmax.bf16 %v69, 0
    %v198 = vmax.bf16 %v70, 0
    %v199 = vmax.bf16 %v71, 0
    %v200 = vmax.bf16 %v72, 0
    %v201 = vmax.bf16 %v73, 0
    %v202 = vmax.bf16 %v74, 0
    %v203 = vmax.bf16 %v75, 0
    %v204 = vmax.bf16 %v76, 0
    %v205 = vmax.bf16 %v77, 0
    %v206 = vmax.bf16 %v78, 0
    %v207 = vmax.bf16 %v79, 0
    %v208 = vmax.bf16 %v80, 0
    %v209 = vmax.bf16 %v81, 0
    %v210 = vmax.bf16 %v82, 0
    %v211 = vmax.bf16 %v83, 0
    %v212 = vmax.bf16 %v84, 0
    %v213 = vmax.bf16 %v85, 0
    %v214 = vmax.bf16 %v86, 0
    %v215 = vmax.bf16 %v87, 0
    %v216 = vmax.bf16 %v88, 0
    %v217 = vmax.bf16 %v89, 0
    %v218 = vmax.bf16 %v90, 0
    %v219 = vmax.bf16 %v91, 0
    %v220 = vmax.bf16 %v92, 0
    %v221 = vmax.bf16 %v93, 0
    %v222 = vmax.bf16 %v94, 0
    %v223 = vmax.bf16 %v95, 0
    %v224 = vmax.bf16 %v96, 0
    %v225 = vmax.bf16 %v97, 0
    %v226 = vmax.bf16 %v98, 0
    %v227 = vmax.bf16 %v99, 0
    %v228 = vmax.bf16 %v100, 0
    %v229 = vmax.bf16 %v101, 0
    %v230 = vmax.bf16 %v102, 0
    %v231 = vmax.bf16 %v103, 0
    %v232 = vmax.bf16 %v104, 0
    %v233 = vmax.bf16 %v105, 0
    %v234 = vmax.bf16 %v106, 0
    %v235 = vmax.bf16 %v107, 0
    %v236 = vmax.bf16 %v108, 0
    %v237 = vmax.bf16 %v109, 0
    %v238 = vmax.bf16 %v110, 0
    %v239 = vmax.bf16 %v111, 0
    %v240 = vmax.bf16 %v112, 0
    %v241 = vmax.bf16 %v113, 0
    %v242 = vmax.bf16 %v114, 0
    %v243 = vmax.bf16 %v115, 0
    %v244 = vmax.bf16 %v116, 0
    %v245 = vmax.bf16 %v117, 0
    %v246 = vmax.bf16 %v118, 0
    %v247 = vmax.bf16 %v119, 0
    %v248 = vmax.bf16 %v120, 0
    %v249 = vmax.bf16 %v121, 0
    %v250 = vmax.bf16 %v122, 0
    %v251 = vmax.bf16 %v123, 0
    %v252 = vmax.bf16 %v124, 0
    %v253 = vmax.bf16 %v125, 0
    %v254 = vmax.bf16 %v126, 0
    %v255 = vmax.bf16 %v127, 0
    %v256 = vmax.bf16 %v128, 0
    %v257 = vmax.bf16 %v129, 0
    %v258 = vmax.bf16 %v130, 0
    %v259 = vmax.bf16 %v131, 0
    %v260 = vmax.bf16 %v132, 0
    %v261 = vmax.bf16 %v133, 0
    %v262 = vmax.bf16 %v134, 0
    %v263 = vmax.bf16 %v135, 0
    %v264 = vmax.bf16 %v136, 0
    %v265 = vmax.bf16 %v137, 0
    %v266 = vmax.bf16 %v138, 0
    %v267 = vmax.bf16 %v139, 0
    %v268 = vmax.bf16 %v140, 0
    %v269 = vmax.bf16 %v141, 0
    %v270 = vmax.bf16 %v142, 0
    %v271 = vmax.bf16 %v143, 0
    %v272 = vmax.bf16 %v144, 0
    %v273 = vmax.bf16 %v145, 0
    %v274 = vmax.bf16 %v146, 0
    %v275 = vmax.bf16 %v147, 0
    %v276 = vmax.bf16 %v148, 0
    %v277 = vmax.bf16 %v149, 0
    %v278 = vmax.bf16 %v150, 0
    %v279 = vmax.bf16 %v151, 0
    %v280 = vmax.bf16 %v152, 0
    %v281 = vmax.bf16 %v153, 0
    %v282 = vmax.bf16 %v154, 0
    %v283 = vmax.bf16 %v155, 0
    %v284 = vmax.bf16 %v156, 0
    %v285 = vmax.bf16 %v157, 0
    %v286 = vmax.bf16 %v158, 0
    %v287 = vmax.bf16 %v159, 0
    %v288 = vmax.bf16 %v160, 0
    %v289 = vmax.bf16 %v161, 0
    %v290 = vmax.bf16 %v162, 0
    %v291 = vmax.bf16 %v163, 0
    %v292 = vmax.bf16 %v164, 0
    %v293 = vmax.bf16 %v165, 0
    %v294 = vmax.bf16 %v166, 0
    %v295 = vmax.bf16 %v167, 0
    %v296 = vmax.bf16 %v168, 0
    %v297 = vmax.bf16 %v169, 0
    %v298 = vmax.bf16 %v170, 0
    %v299 = vmax.bf16 %v171, 0
    %v300 = vmax.bf16 %v172, 0
    %v301 = vmax.bf16 %v173, 0
    %v302 = vmax.bf16 %v174, 0
    %v303 = vmax.bf16 %v175, 0
    %v304 = vmax.bf16 %v176, 0
    %v305 = vmax.bf16 %v177, 0
    %v306 = vmax.bf16 %v178, 0
    %v307 = vmax.bf16 %v179, 0
    %v308 = vmax.bf16 %v180, 0
    %v309 = vmax.bf16 %v181, 0
    %v310 = vmax.bf16 %v182, 0
    %v311 = vmax.bf16 %v183, 0
    %v312 = vmax.bf16 %v184, 0
    %v313 = vmax.bf16 %v185, 0
    %v314 = vmax.bf16 %v186, 0
    %v315 = vmax.bf16 %v187, 0
    %v316 = vmax.bf16 %v188, 0
    %v317 = vmax.bf16 %v189, 0
    %v318 = vmax.bf16 %v190, 0
    %v319 = vmax.bf16 %v191, 0
    %s320 = ssub.s32 %s60, 1
    %p321 = scmp.gt.s32.totalorder %s320, 0
    %s322 = scalar_select %p321, %s320, 0
    %s323 = smul.u32 %s322, 4
    %s324 = smul.addr %s323, 4
    %s325 = scalar_lea.vmem [#allocation2], %s324
    %v326 = vld [vmem:[%s325] sm:$0xf]
    %v327 = vld [vmem:[%s325 + $0x4] sm:$0xf]
    %v328 = vld [vmem:[%s325 + $0x8] sm:$0xf]
    %v329 = vld [vmem:[%s325 + $0xc] sm:$0xf]
    %s330 = sadd.s32 %s60, 32
    %p331 = scmp.lt.s32.totalorder %s330, 31
    %s332 = scalar_select %p331, %s330, 31
    %s333 = smul.u32 %s332, 4
    %s334 = smul.addr %s333, 4
    %s335 = scalar_lea.vmem [#allocation2], %s334
    %v336 = vld [vmem:[%s335] sm:$0xf]
    %v337 = vld [vmem:[%s335 + $0x4] sm:$0xf]
    %v338 = vld [vmem:[%s335 + $0x8] sm:$0xf]
    %v339 = vld [vmem:[%s335 + $0xc] sm:$0xf]
    %p340 = scmp.gt.s32.totalorder 0, 0
    %v341 = vmax.bf16 %v326, 0
    %v342 = vmax.bf16 %v327, 0
    %v343 = vmax.bf16 %v328, 0
    %v344 = vmax.bf16 %v329, 0
    %s345 = scalar_select %p340, 1, 0
    %v346 = vstv %s345
    %vm347 = vcmp.eq.s32.totalorder %v346, 1
    %v348 = vsel %vm347, %v341, 0
    %v349 = vsel %vm347, %v342, 0
    %v350 = vsel %vm347, %v343, 0
    %v351 = vsel %vm347, %v344, 0
    %p352 = scmp.lt.s32.totalorder 0, 0
    %v353 = vmax.bf16 %v336, 0
    %v354 = vmax.bf16 %v337, 0
    %v355 = vmax.bf16 %v338, 0
    %v356 = vmax.bf16 %v339, 0
    %s357 = scalar_select %p352, 1, 0
    %v358 = vstv %s357
    %vm359 = vcmp.eq.s32.totalorder %v358, 1
    %v360 = vsel %vm359, %v353, 0
    %v361 = vsel %vm359, %v354, 0
    %v362 = vsel %vm359, %v355, 0
    %v363 = vsel %vm359, %v356, 0
    %v500 = vunpack.c.l.b16 %v348
    %v501 = vunpack.c.l.b16 %v349
    %v502 = vunpack.c.l.b16 %v350
    %v503 = vunpack.c.l.b16 %v351
    %v504 = vunpack.c.l.b16 %v192
    %v505 = vunpack.c.l.b16 %v193
    %v506 = vunpack.c.l.b16 %v194
    %v507 = vunpack.c.l.b16 %v195
    %v508 = vunpack.c.l.b16 %v196
    %v509 = vunpack.c.l.b16 %v197
    %v510 = vunpack.c.l.b16 %v198
    %v511 = vunpack.c.l.b16 %v199
    %v512 = vunpack.c.l.b16 %v200
    %v513 = vunpack.c.l.b16 %v201
    %v514 = vunpack.c.l.b16 %v202
    %v515 = vunpack.c.l.b16 %v203
    %v516 = vunpack.c.l.b16 %v204
    %v517 = vunpack.c.l.b16 %v205
    %v518 = vunpack.c.l.b16 %v206
    %v519 = vunpack.c.l.b16 %v207
    %v520 = vunpack.c.l.b16 %v208
    %v521 = vunpack.c.l.b16 %v209
    %v522 = vunpack.c.l.b16 %v210
    %v523 = vunpack.c.l.b16 %v211
    %v524 = vunpack.c.l.b16 %v212
    %v525 = vunpack.c.l.b16 %v213
    %v526 = vunpack.c.l.b16 %v214
    %v527 = vunpack.c.l.b16 %v215
    %v528 = vunpack.c.l.b16 %v216
    %v529 = vunpack.c.l.b16 %v217
    %v530 = vunpack.c.l.b16 %v218
    %v531 = vunpack.c.l.b16 %v219
    %v532 = vunpack.c.l.b16 %v220
    %v533 = vunpack.c.l.b16 %v221
    %v534 = vunpack.c.l.b16 %v222
    %v535 = vunpack.c.l.b16 %v223
    %v536 = vunpack.c.l.b16 %v224
    %v537 = vunpack.c.l.b16 %v225
    %v538 = vunpack.c.l.b16 %v226
    %v539 = vunpack.c.l.b16 %v227
    %v540 = vunpack.c.l.b16 %v228
    %v541 = vunpack.c.l.b16 %v229
    %v542 = vunpack.c.l.b16 %v230
    %v543 = vunpack.c.l.b16 %v231
    %v544 = vunpack.c.l.b16 %v232
    %v545 = vunpack.c.l.b16 %v233
    %v546 = vunpack.c.l.b16 %v234
    %v547 = vunpack.c.l.b16 %v235
    %v548 = vunpack.c.l.b16 %v236
    %v549 = vunpack.c.l.b16 %v237
    %v550 = vunpack.c.l.b16 %v238
    %v551 = vunpack.c.l.b16 %v239
    %v552 = vunpack.c.l.b16 %v240
    %v553 = vunpack.c.l.b16 %v241
    %v554 = vunpack.c.l.b16 %v242
    %v555 = vunpack.c.l.b16 %v243
    %v556 = vunpack.c.l.b16 %v244
    %v557 = vunpack.c.l.b16 %v245
    %v558 = vunpack.c.l.b16 %v246
    %v559 = vunpack.c.l.b16 %v247
    %v560 = vunpack.c.l.b16 %v248
    %v561 = vunpack.c.l.b16 %v249
    %v562 = vunpack.c.l.b16 %v250
    %v563 = vunpack.c.l.b16 %v251
    %v564 = vunpack.c.l.b16 %v252
    %v565 = vunpack.c.l.b16 %v253
    %v566 = vunpack.c.l.b16 %v254
    %v567 = vunpack.c.l.b16 %v255
    %v568 = vunpack.c.l.b16 %v256
    %v569 = vunpack.c.l.b16 %v257
    %v570 = vunpack.c.l.b16 %v258
    %v571 = vunpack.c.l.b16 %v259
    %v572 = vunpack.c.l.b16 %v260
    %v573 = vunpack.c.l.b16 %v261
    %v574 = vunpack.c.l.b16 %v262
    %v575 = vunpack.c.l.b16 %v263
    %v576 = vunpack.c.l.b16 %v264
    %v577 = vunpack.c.l.b16 %v265
    %v578 = vunpack.c.l.b16 %v266
    %v579 = vunpack.c.l.b16 %v267
    %v580 = vunpack.c.l.b16 %v268
    %v581 = vunpack.c.l.b16 %v269
    %v582 = vunpack.c.l.b16 %v270
    %v583 = vunpack.c.l.b16 %v271
    %v584 = vunpack.c.l.b16 %v272
    %v585 = vunpack.c.l.b16 %v273
    %v586 = vunpack.c.l.b16 %v274
    %v587 = vunpack.c.l.b16 %v275
    %v588 = vunpack.c.l.b16 %v276
    %v589 = vunpack.c.l.b16 %v277
    %v590 = vunpack.c.l.b16 %v278
    %v591 = vunpack.c.l.b16 %v279
    %v592 = vunpack.c.l.b16 %v280
    %v593 = vunpack.c.l.b16 %v281
    %v594 = vunpack.c.l.b16 %v282
    %v595 = vunpack.c.l.b16 %v283
    %v596 = vunpack.c.l.b16 %v284
    %v597 = vunpack.c.l.b16 %v285
    %v598 = vunpack.c.l.b16 %v286
    %v599 = vunpack.c.l.b16 %v287
    %v600 = vunpack.c.l.b16 %v288
    %v601 = vunpack.c.l.b16 %v289
    %v602 = vunpack.c.l.b16 %v290
    %v603 = vunpack.c.l.b16 %v291
    %v604 = vunpack.c.l.b16 %v292
    %v605 = vunpack.c.l.b16 %v293
    %v606 = vunpack.c.l.b16 %v294
    %v607 = vunpack.c.l.b16 %v295
    %v608 = vunpack.c.l.b16 %v296
    %v609 = vunpack.c.l.b16 %v297
    %v610 = vunpack.c.l.b16 %v298
    %v611 = vunpack.c.l.b16 %v299
    %v612 = vunpack.c.l.b16 %v300
    %v613 = vunpack.c.l.b16 %v301
    %v614 = vunpack.c.l.b16 %v302
    %v615 = vunpack.c.l.b16 %v303
    %v616 = vunpack.c.l.b16 %v304
    %v617 = vunpack.c.l.b16 %v305
    %v618 = vunpack.c.l.b16 %v306
    %v619 = vunpack.c.l.b16 %v307
    %v620 = vunpack.c.l.b16 %v308
    %v621 = vunpack.c.l.b16 %v309
    %v622 = vunpack.c.l.b16 %v310
    %v623 = vunpack.c.l.b16 %v311
    %v624 = vunpack.c.l.b16 %v312
    %v625 = vunpack.c.l.b16 %v313
    %v626 = vunpack.c.l.b16 %v314
    %v627 = vunpack.c.l.b16 %v315
    %v628 = vunpack.c.l.b16 %v316
    %v629 = vunpack.c.l.b16 %v317
    %v630 = vunpack.c.l.b16 %v318
    %v631 = vunpack.c.l.b16 %v319
    %v632 = vunpack.c.l.b16 %v360
    %v633 = vunpack.c.l.b16 %v361
    %v634 = vunpack.c.l.b16 %v362
    %v635 = vunpack.c.l.b16 %v363
    %v636 = vpack.c.b16 %v501, %v500
    %v637 = vpack.c.b16 %v503, %v502
    %v638 = vpack.c.b16 %v505, %v504
    %v639 = vpack.c.b16 %v507, %v506
    %v640 = vpack.c.b16 %v509, %v508
    %v641 = vpack.c.b16 %v511, %v510
    %v642 = vpack.c.b16 %v513, %v512
    %v643 = vpack.c.b16 %v515, %v514
    %v644 = vpack.c.b16 %v517, %v516
    %v645 = vpack.c.b16 %v519, %v518
    %v646 = vpack.c.b16 %v521, %v520
    %v647 = vpack.c.b16 %v523, %v522
    %v648 = vpack.c.b16 %v525, %v524
    %v649 = vpack.c.b16 %v527, %v526
    %v650 = vpack.c.b16 %v529, %v528
    %v651 = vpack.c.b16 %v531, %v530
    %v652 = vpack.c.b16 %v533, %v532
    %v653 = vpack.c.b16 %v535, %v534
    %v654 = vpack.c.b16 %v537, %v536
    %v655 = vpack.c.b16 %v539, %v538
    %v656 = vpack.c.b16 %v541, %v540
    %v657 = vpack.c.b16 %v543, %v542
    %v658 = vpack.c.b16 %v545, %v544
    %v659 = vpack.c.b16 %v547, %v546
    %v660 = vpack.c.b16 %v549, %v548
    %v661 = vpack.c.b16 %v551, %v550
    %v662 = vpack.c.b16 %v553, %v552
    %v663 = vpack.c.b16 %v555, %v554
    %v664 = vpack.c.b16 %v557, %v556
    %v665 = vpack.c.b16 %v559, %v558
    %v666 = vpack.c.b16 %v561, %v560
    %v667 = vpack.c.b16 %v563, %v562
    %v668 = vpack.c.b16 %v565, %v564
    %v669 = vpack.c.b16 %v567, %v566
    %v670 = vpack.c.b16 %v569, %v568
    %v671 = vpack.c.b16 %v571, %v570
    %v672 = vpack.c.b16 %v573, %v572
    %v673 = vpack.c.b16 %v575, %v574
    %v674 = vpack.c.b16 %v577, %v576
    %v675 = vpack.c.b16 %v579, %v578
    %v676 = vpack.c.b16 %v581, %v580
    %v677 = vpack.c.b16 %v583, %v582
    %v678 = vpack.c.b16 %v585, %v584
    %v679 = vpack.c.b16 %v587, %v586
    %v680 = vpack.c.b16 %v589, %v588
    %v681 = vpack.c.b16 %v591, %v590
    %v682 = vpack.c.b16 %v593, %v592
    %v683 = vpack.c.b16 %v595, %v594
    %v684 = vpack.c.b16 %v597, %v596
    %v685 = vpack.c.b16 %v599, %v598
    %v686 = vpack.c.b16 %v601, %v600
    %v687 = vpack.c.b16 %v603, %v602
    %v688 = vpack.c.b16 %v605, %v604
    %v689 = vpack.c.b16 %v607, %v606
    %v690 = vpack.c.b16 %v609, %v608
    %v691 = vpack.c.b16 %v611, %v610
    %v692 = vpack.c.b16 %v613, %v612
    %v693 = vpack.c.b16 %v615, %v614
    %v694 = vpack.c.b16 %v617, %v616
    %v695 = vpack.c.b16 %v619, %v618
    %v696 = vpack.c.b16 %v621, %v620
    %v697 = vpack.c.b16 %v623, %v622
    %v698 = vpack.c.b16 %v625, %v624
    %v699 = vpack.c.b16 %v627, %v626
    %v700 = vpack.c.b16 %v629, %v628
    %v701 = vpack.c.b16 %v631, %v630
    %v702 = vpack.c.b16 %v633, %v632
    %v703 = vpack.c.b16 %v635, %v634
    %vm704 = vsmask.f32 256
    %v706 = vshrl.u32 %v636, 16
    %v708 = vrot.slane %v706, 7
    %v709 = vshll.u32 %v636, 16
    %v711 = vor.u32 %v708, %v709
    %v713 = vshrl.u32 %v637, 16
    %v715 = vrot.slane %v713, 7
    %v716 = vshll.u32 %v637, 16
    %v718 = vor.u32 %v715, %v716
    %v719 = vsel %vm704, %v708, %v718
    %v721 = vshrl.u32 %v638, 16
    %v723 = vrot.slane %v721, 7
    %v724 = vshll.u32 %v638, 16
    %v726 = vor.u32 %v723, %v724
    %v728 = vshrl.u32 %v639, 16
    %v730 = vrot.slane %v728, 7
    %v731 = vshll.u32 %v639, 16
    %v733 = vor.u32 %v730, %v731
    %v734 = vsel %vm704, %v723, %v733
    %v736 = vshrl.u32 %v640, 16
    %v738 = vrot.slane %v736, 7
    %v739 = vshll.u32 %v640, 16
    %v741 = vor.u32 %v738, %v739
    %v743 = vshrl.u32 %v641, 16
    %v745 = vrot.slane %v743, 7
    %v746 = vshll.u32 %v641, 16
    %v748 = vor.u32 %v745, %v746
    %v749 = vsel %vm704, %v738, %v748
    %v751 = vshrl.u32 %v642, 16
    %v753 = vrot.slane %v751, 7
    %v754 = vshll.u32 %v642, 16
    %v756 = vor.u32 %v753, %v754
    %v758 = vshrl.u32 %v643, 16
    %v760 = vrot.slane %v758, 7
    %v761 = vshll.u32 %v643, 16
    %v763 = vor.u32 %v760, %v761
    %v764 = vsel %vm704, %v753, %v763
    %v766 = vshrl.u32 %v644, 16
    %v768 = vrot.slane %v766, 7
    %v769 = vshll.u32 %v644, 16
    %v771 = vor.u32 %v768, %v769
    %v773 = vshrl.u32 %v645, 16
    %v775 = vrot.slane %v773, 7
    %v776 = vshll.u32 %v645, 16
    %v778 = vor.u32 %v775, %v776
    %v779 = vsel %vm704, %v768, %v778
    %v781 = vshrl.u32 %v646, 16
    %v783 = vrot.slane %v781, 7
    %v784 = vshll.u32 %v646, 16
    %v786 = vor.u32 %v783, %v784
    %v788 = vshrl.u32 %v647, 16
    %v790 = vrot.slane %v788, 7
    %v791 = vshll.u32 %v647, 16
    %v793 = vor.u32 %v790, %v791
    %v794 = vsel %vm704, %v783, %v793
    %v796 = vshrl.u32 %v648, 16
    %v798 = vrot.slane %v796, 7
    %v799 = vshll.u32 %v648, 16
    %v801 = vor.u32 %v798, %v799
    %v803 = vshrl.u32 %v649, 16
    %v805 = vrot.slane %v803, 7
    %v806 = vshll.u32 %v649, 16
    %v808 = vor.u32 %v805, %v806
    %v809 = vsel %vm704, %v798, %v808
    %v811 = vshrl.u32 %v650, 16
    %v813 = vrot.slane %v811, 7
    %v814 = vshll.u32 %v650, 16
    %v816 = vor.u32 %v813, %v814
    %v818 = vshrl.u32 %v651, 16
    %v820 = vrot.slane %v818, 7
    %v821 = vshll.u32 %v651, 16
    %v823 = vor.u32 %v820, %v821
    %v824 = vsel %vm704, %v813, %v823
    %v826 = vshrl.u32 %v652, 16
    %v828 = vrot.slane %v826, 7
    %v829 = vshll.u32 %v652, 16
    %v831 = vor.u32 %v828, %v829
    %v833 = vshrl.u32 %v653, 16
    %v835 = vrot.slane %v833, 7
    %v836 = vshll.u32 %v653, 16
    %v838 = vor.u32 %v835, %v836
    %v839 = vsel %vm704, %v828, %v838
    %v841 = vshrl.u32 %v654, 16
    %v843 = vrot.slane %v841, 7
    %v844 = vshll.u32 %v654, 16
    %v846 = vor.u32 %v843, %v844
    %v848 = vshrl.u32 %v655, 16
    %v850 = vrot.slane %v848, 7
    %v851 = vshll.u32 %v655, 16
    %v853 = vor.u32 %v850, %v851
    %v854 = vsel %vm704, %v843, %v853
    %v856 = vshrl.u32 %v656, 16
    %v858 = vrot.slane %v856, 7
    %v859 = vshll.u32 %v656, 16
    %v861 = vor.u32 %v858, %v859
    %v863 = vshrl.u32 %v657, 16
    %v865 = vrot.slane %v863, 7
    %v866 = vshll.u32 %v657, 16
    %v868 = vor.u32 %v865, %v866
    %v869 = vsel %vm704, %v858, %v868
    %v871 = vshrl.u32 %v658, 16
    %v873 = vrot.slane %v871, 7
    %v874 = vshll.u32 %v658, 16
    %v876 = vor.u32 %v873, %v874
    %v878 = vshrl.u32 %v659, 16
    %v880 = vrot.slane %v878, 7
    %v881 = vshll.u32 %v659, 16
    %v883 = vor.u32 %v880, %v881
    %v884 = vsel %vm704, %v873, %v883
    %v886 = vshrl.u32 %v660, 16
    %v888 = vrot.slane %v886, 7
    %v889 = vshll.u32 %v660, 16
    %v891 = vor.u32 %v888, %v889
    %v893 = vshrl.u32 %v661, 16
    %v895 = vrot.slane %v893, 7
    %v896 = vshll.u32 %v661, 16
    %v898 = vor.u32 %v895, %v896
    %v899 = vsel %vm704, %v888, %v898
    %v901 = vshrl.u32 %v662, 16
    %v903 = vrot.slane %v901, 7
    %v904 = vshll.u32 %v662, 16
    %v906 = vor.u32 %v903, %v904
    %v908 = vshrl.u32 %v663, 16
    %v910 = vrot.slane %v908, 7
    %v911 = vshll.u32 %v663, 16
    %v913 = vor.u32 %v910, %v911
    %v914 = vsel %vm704, %v903, %v913
    %v916 = vshrl.u32 %v664, 16
    %v918 = vrot.slane %v916, 7
    %v919 = vshll.u32 %v664, 16
    %v921 = vor.u32 %v918, %v919
    %v923 = vshrl.u32 %v665, 16
    %v925 = vrot.slane %v923, 7
    %v926 = vshll.u32 %v665, 16
    %v928 = vor.u32 %v925, %v926
    %v929 = vsel %vm704, %v918, %v928
    %v931 = vshrl.u32 %v666, 16
    %v933 = vrot.slane %v931, 7
    %v934 = vshll.u32 %v666, 16
    %v936 = vor.u32 %v933, %v934
    %v938 = vshrl.u32 %v667, 16
    %v940 = vrot.slane %v938, 7
    %v941 = vshll.u32 %v667, 16
    %v943 = vor.u32 %v940, %v941
    %v944 = vsel %vm704, %v933, %v943
    %v946 = vshrl.u32 %v668, 16
    %v948 = vrot.slane %v946, 7
    %v949 = vshll.u32 %v668, 16
    %v951 = vor.u32 %v948, %v949
    %v953 = vshrl.u32 %v669, 16
    %v955 = vrot.slane %v953, 7
    %v956 = vshll.u32 %v669, 16
    %v958 = vor.u32 %v955, %v956
    %v959 = vsel %vm704, %v948, %v958
    %v961 = vshrl.u32 %v670, 16
    %v963 = vrot.slane %v961, 7
    %v964 = vshll.u32 %v670, 16
    %v966 = vor.u32 %v963, %v964
    %v968 = vshrl.u32 %v671, 16
    %v970 = vrot.slane %v968, 7
    %v971 = vshll.u32 %v671, 16
    %v973 = vor.u32 %v970, %v971
    %v974 = vsel %vm704, %v963, %v973
    %v976 = vshrl.u32 %v672, 16
    %v978 = vrot.slane %v976, 7
    %v979 = vshll.u32 %v672, 16
    %v981 = vor.u32 %v978, %v979
    %v983 = vshrl.u32 %v673, 16
    %v985 = vrot.slane %v983, 7
    %v986 = vshll.u32 %v673, 16
    %v988 = vor.u32 %v985, %v986
    %v989 = vsel %vm704, %v978, %v988
    %v991 = vshrl.u32 %v674, 16
    %v993 = vrot.slane %v991, 7
    %v994 = vshll.u32 %v674, 16
    %v996 = vor.u32 %v993, %v994
    %v998 = vshrl.u32 %v675, 16
    %v1000 = vrot.slane %v998, 7
    %v1001 = vshll.u32 %v675, 16
    %v1003 = vor.u32 %v1000, %v1001
    %v1004 = vsel %vm704, %v993, %v1003
    %v1006 = vshrl.u32 %v676, 16
    %v1008 = vrot.slane %v1006, 7
    %v1009 = vshll.u32 %v676, 16
    %v1011 = vor.u32 %v1008, %v1009
    %v1013 = vshrl.u32 %v677, 16
    %v1015 = vrot.slane %v1013, 7
    %v1016 = vshll.u32 %v677, 16
    %v1018 = vor.u32 %v1015, %v1016
    %v1019 = vsel %vm704, %v1008, %v1018
    %v1021 = vshrl.u32 %v678, 16
    %v1023 = vrot.slane %v1021, 7
    %v1024 = vshll.u32 %v678, 16
    %v1026 = vor.u32 %v1023, %v1024
    %v1028 = vshrl.u32 %v679, 16
    %v1030 = vrot.slane %v1028, 7
    %v1031 = vshll.u32 %v679, 16
    %v1033 = vor.u32 %v1030, %v1031
    %v1034 = vsel %vm704, %v1023, %v1033
    %v1036 = vshrl.u32 %v680, 16
    %v1038 = vrot.slane %v1036, 7
    %v1039 = vshll.u32 %v680, 16
    %v1041 = vor.u32 %v1038, %v1039
    %v1043 = vshrl.u32 %v681, 16
    %v1045 = vrot.slane %v1043, 7
    %v1046 = vshll.u32 %v681, 16
    %v1048 = vor.u32 %v1045, %v1046
    %v1049 = vsel %vm704, %v1038, %v1048
    %v1051 = vshrl.u32 %v682, 16
    %v1053 = vrot.slane %v1051, 7
    %v1054 = vshll.u32 %v682, 16
    %v1056 = vor.u32 %v1053, %v1054
    %v1058 = vshrl.u32 %v683, 16
    %v1060 = vrot.slane %v1058, 7
    %v1061 = vshll.u32 %v683, 16
    %v1063 = vor.u32 %v1060, %v1061
    %v1064 = vsel %vm704, %v1053, %v1063
    %v1066 = vshrl.u32 %v684, 16
    %v1068 = vrot.slane %v1066, 7
    %v1069 = vshll.u32 %v684, 16
    %v1071 = vor.u32 %v1068, %v1069
    %v1073 = vshrl.u32 %v685, 16
    %v1075 = vrot.slane %v1073, 7
    %v1076 = vshll.u32 %v685, 16
    %v1078 = vor.u32 %v1075, %v1076
    %v1079 = vsel %vm704, %v1068, %v1078
    %v1081 = vshrl.u32 %v686, 16
    %v1083 = vrot.slane %v1081, 7
    %v1084 = vshll.u32 %v686, 16
    %v1086 = vor.u32 %v1083, %v1084
    %v1088 = vshrl.u32 %v687, 16
    %v1090 = vrot.slane %v1088, 7
    %v1091 = vshll.u32 %v687, 16
    %v1093 = vor.u32 %v1090, %v1091
    %v1094 = vsel %vm704, %v1083, %v1093
    %v1096 = vshrl.u32 %v688, 16
    %v1098 = vrot.slane %v1096, 7
    %v1099 = vshll.u32 %v688, 16
    %v1101 = vor.u32 %v1098, %v1099
    %v1103 = vshrl.u32 %v689, 16
    %v1105 = vrot.slane %v1103, 7
    %v1106 = vshll.u32 %v689, 16
    %v1108 = vor.u32 %v1105, %v1106
    %v1109 = vsel %vm704, %v1098, %v1108
    %v1111 = vshrl.u32 %v690, 16
    %v1113 = vrot.slane %v1111, 7
    %v1114 = vshll.u32 %v690, 16
    %v1116 = vor.u32 %v1113, %v1114
    %v1118 = vshrl.u32 %v691, 16
    %v1120 = vrot.slane %v1118, 7
    %v1121 = vshll.u32 %v691, 16
    %v1123 = vor.u32 %v1120, %v1121
    %v1124 = vsel %vm704, %v1113, %v1123
    %v1126 = vshrl.u32 %v692, 16
    %v1128 = vrot.slane %v1126, 7
    %v1129 = vshll.u32 %v692, 16
    %v1131 = vor.u32 %v1128, %v1129
    %v1133 = vshrl.u32 %v693, 16
    %v1135 = vrot.slane %v1133, 7
    %v1136 = vshll.u32 %v693, 16
    %v1138 = vor.u32 %v1135, %v1136
    %v1139 = vsel %vm704, %v1128, %v1138
    %v1141 = vshrl.u32 %v694, 16
    %v1143 = vrot.slane %v1141, 7
    %v1144 = vshll.u32 %v694, 16
    %v1146 = vor.u32 %v1143, %v1144
    %v1148 = vshrl.u32 %v695, 16
    %v1150 = vrot.slane %v1148, 7
    %v1151 = vshll.u32 %v695, 16
    %v1153 = vor.u32 %v1150, %v1151
    %v1154 = vsel %vm704, %v1143, %v1153
    %v1156 = vshrl.u32 %v696, 16
    %v1158 = vrot.slane %v1156, 7
    %v1159 = vshll.u32 %v696, 16
    %v1161 = vor.u32 %v1158, %v1159
    %v1163 = vshrl.u32 %v697, 16
    %v1165 = vrot.slane %v1163, 7
    %v1166 = vshll.u32 %v697, 16
    %v1168 = vor.u32 %v1165, %v1166
    %v1169 = vsel %vm704, %v1158, %v1168
    %v1171 = vshrl.u32 %v698, 16
    %v1173 = vrot.slane %v1171, 7
    %v1174 = vshll.u32 %v698, 16
    %v1176 = vor.u32 %v1173, %v1174
    %v1178 = vshrl.u32 %v699, 16
    %v1180 = vrot.slane %v1178, 7
    %v1181 = vshll.u32 %v699, 16
    %v1183 = vor.u32 %v1180, %v1181
    %v1184 = vsel %vm704, %v1173, %v1183
    %v1186 = vshrl.u32 %v700, 16
    %v1188 = vrot.slane %v1186, 7
    %v1189 = vshll.u32 %v700, 16
    %v1191 = vor.u32 %v1188, %v1189
    %v1193 = vshrl.u32 %v701, 16
    %v1195 = vrot.slane %v1193, 7
    %v1196 = vshll.u32 %v701, 16
    %v1198 = vor.u32 %v1195, %v1196
    %v1199 = vsel %vm704, %v1188, %v1198
    %v1201 = vshrl.u32 %v702, 16
    %v1203 = vrot.slane %v1201, 7
    %v1204 = vshll.u32 %v702, 16
    %v1206 = vor.u32 %v1203, %v1204
    %v1208 = vshrl.u32 %v703, 16
    %v1210 = vrot.slane %v1208, 7
    %v1211 = vshll.u32 %v703, 16
    %v1213 = vor.u32 %v1210, %v1211
    %v1214 = vsel %vm704, %v1203, %v1213
    %vm1283 = vcmask 1040384
    %vm1284 = vmand %vm1283, %vm704
    %v1285 = vsel %vm1284, 0, %v711
    %v1286 = vsel %vm1284, 0, %v726
    %v1287 = vsel %vm1284, 0, %v741
    %v1288 = vsel %vm1284, 0, %v756
    %v1289 = vsel %vm1284, 0, %v771
    %v1290 = vsel %vm1284, 0, %v786
    %v1291 = vsel %vm1284, 0, %v801
    %v1292 = vsel %vm1284, 0, %v816
    %v1293 = vsel %vm1284, 0, %v831
    %v1294 = vsel %vm1284, 0, %v846
    %v1295 = vsel %vm1284, 0, %v861
    %v1296 = vsel %vm1284, 0, %v876
    %v1297 = vsel %vm1284, 0, %v891
    %v1298 = vsel %vm1284, 0, %v906
    %v1299 = vsel %vm1284, 0, %v921
    %v1300 = vsel %vm1284, 0, %v936
    %v1301 = vsel %vm1284, 0, %v951
    %v1302 = vsel %vm1284, 0, %v966
    %v1303 = vsel %vm1284, 0, %v981
    %v1304 = vsel %vm1284, 0, %v996
    %v1305 = vsel %vm1284, 0, %v1011
    %v1306 = vsel %vm1284, 0, %v1026
    %v1307 = vsel %vm1284, 0, %v1041
    %v1308 = vsel %vm1284, 0, %v1056
    %v1309 = vsel %vm1284, 0, %v1071
    %v1310 = vsel %vm1284, 0, %v1086
    %v1311 = vsel %vm1284, 0, %v1101
    %v1312 = vsel %vm1284, 0, %v1116
    %v1313 = vsel %vm1284, 0, %v1131
    %v1314 = vsel %vm1284, 0, %v1146
    %v1315 = vsel %vm1284, 0, %v1161
    %v1316 = vsel %vm1284, 0, %v1176
    %v1317 = vsel %vm1284, 0, %v1191
    %v1318 = vsel %vm1284, 0, %v1206
    %vm1319 = vsmask.f32 7424
    %v1320 = vrot.slane %v709, 1
    %v1321 = vor.u32 %v706, %v1320
    %v1322 = vrot.slane %v716, 1
    %v1323 = vsel %vm1319, %v1321, %v1322
    %v1324 = vor.u32 %v713, %v1322
    %v1325 = vrot.slane %v724, 1
    %v1326 = vor.u32 %v721, %v1325
    %v1327 = vrot.slane %v731, 1
    %v1328 = vsel %vm1319, %v1326, %v1327
    %v1329 = vor.u32 %v728, %v1327
    %v1330 = vrot.slane %v739, 1
    %v1331 = vor.u32 %v736, %v1330
    %v1332 = vrot.slane %v746, 1
    %v1333 = vsel %vm1319, %v1331, %v1332
    %v1334 = vor.u32 %v743, %v1332
    %v1335 = vrot.slane %v754, 1
    %v1336 = vor.u32 %v751, %v1335
    %v1337 = vrot.slane %v761, 1
    %v1338 = vsel %vm1319, %v1336, %v1337
    %v1339 = vor.u32 %v758, %v1337
    %v1340 = vrot.slane %v769, 1
    %v1341 = vor.u32 %v766, %v1340
    %v1342 = vrot.slane %v776, 1
    %v1343 = vsel %vm1319, %v1341, %v1342
    %v1344 = vor.u32 %v773, %v1342
    %v1345 = vrot.slane %v784, 1
    %v1346 = vor.u32 %v781, %v1345
    %v1347 = vrot.slane %v791, 1
    %v1348 = vsel %vm1319, %v1346, %v1347
    %v1349 = vor.u32 %v788, %v1347
    %v1350 = vrot.slane %v799, 1
    %v1351 = vor.u32 %v796, %v1350
    %v1352 = vrot.slane %v806, 1
    %v1353 = vsel %vm1319, %v1351, %v1352
    %v1354 = vor.u32 %v803, %v1352
    %v1355 = vrot.slane %v814, 1
    %v1356 = vor.u32 %v811, %v1355
    %v1357 = vrot.slane %v821, 1
    %v1358 = vsel %vm1319, %v1356, %v1357
    %v1359 = vor.u32 %v818, %v1357
    %v1360 = vrot.slane %v829, 1
    %v1361 = vor.u32 %v826, %v1360
    %v1362 = vrot.slane %v836, 1
    %v1363 = vsel %vm1319, %v1361, %v1362
    %v1364 = vor.u32 %v833, %v1362
    %v1365 = vrot.slane %v844, 1
    %v1366 = vor.u32 %v841, %v1365
    %v1367 = vrot.slane %v851, 1
    %v1368 = vsel %vm1319, %v1366, %v1367
    %v1369 = vor.u32 %v848, %v1367
    %v1370 = vrot.slane %v859, 1
    %v1371 = vor.u32 %v856, %v1370
    %v1372 = vrot.slane %v866, 1
    %v1373 = vsel %vm1319, %v1371, %v1372
    %v1374 = vor.u32 %v863, %v1372
    %v1375 = vrot.slane %v874, 1
    %v1376 = vor.u32 %v871, %v1375
    %v1377 = vrot.slane %v881, 1
    %v1378 = vsel %vm1319, %v1376, %v1377
    %v1379 = vor.u32 %v878, %v1377
    %v1380 = vrot.slane %v889, 1
    %v1381 = vor.u32 %v886, %v1380
    %v1382 = vrot.slane %v896, 1
    %v1383 = vsel %vm1319, %v1381, %v1382
    %v1384 = vor.u32 %v893, %v1382
    %v1385 = vrot.slane %v904, 1
    %v1386 = vor.u32 %v901, %v1385
    %v1387 = vrot.slane %v911, 1
    %v1388 = vsel %vm1319, %v1386, %v1387
    %v1389 = vor.u32 %v908, %v1387
    %v1390 = vrot.slane %v919, 1
    %v1391 = vor.u32 %v916, %v1390
    %v1392 = vrot.slane %v926, 1
    %v1393 = vsel %vm1319, %v1391, %v1392
    %v1394 = vor.u32 %v923, %v1392
    %v1395 = vrot.slane %v934, 1
    %v1396 = vor.u32 %v931, %v1395
    %v1397 = vrot.slane %v941, 1
    %v1398 = vsel %vm1319, %v1396, %v1397
    %v1399 = vor.u32 %v938, %v1397
    %v1400 = vrot.slane %v949, 1
    %v1401 = vor.u32 %v946, %v1400
    %v1402 = vrot.slane %v956, 1
    %v1403 = vsel %vm1319, %v1401, %v1402
    %v1404 = vor.u32 %v953, %v1402
    %v1405 = vrot.slane %v964, 1
    %v1406 = vor.u32 %v961, %v1405
    %v1407 = vrot.slane %v971, 1
    %v1408 = vsel %vm1319, %v1406, %v1407
    %v1409 = vor.u32 %v968, %v1407
    %v1410 = vrot.slane %v979, 1
    %v1411 = vor.u32 %v976, %v1410
    %v1412 = vrot.slane %v986, 1
    %v1413 = vsel %vm1319, %v1411, %v1412
    %v1414 = vor.u32 %v983, %v1412
    %v1415 = vrot.slane %v994, 1
    %v1416 = vor.u32 %v991, %v1415
    %v1417 = vrot.slane %v1001, 1
    %v1418 = vsel %vm1319, %v1416, %v1417
    %v1419 = vor.u32 %v998, %v1417
    %v1420 = vrot.slane %v1009, 1
    %v1421 = vor.u32 %v1006, %v1420
    %v1422 = vrot.slane %v1016, 1
    %v1423 = vsel %vm1319, %v1421, %v1422
    %v1424 = vor.u32 %v1013, %v1422
    %v1425 = vrot.slane %v1024, 1
    %v1426 = vor.u32 %v1021, %v1425
    %v1427 = vrot.slane %v1031, 1
    %v1428 = vsel %vm1319, %v1426, %v1427
    %v1429 = vor.u32 %v1028, %v1427
    %v1430 = vrot.slane %v1039, 1
    %v1431 = vor.u32 %v1036, %v1430
    %v1432 = vrot.slane %v1046, 1
    %v1433 = vsel %vm1319, %v1431, %v1432
    %v1434 = vor.u32 %v1043, %v1432
    %v1435 = vrot.slane %v1054, 1
    %v1436 = vor.u32 %v1051, %v1435
    %v1437 = vrot.slane %v1061, 1
    %v1438 = vsel %vm1319, %v1436, %v1437
    %v1439 = vor.u32 %v1058, %v1437
    %v1440 = vrot.slane %v1069, 1
    %v1441 = vor.u32 %v1066, %v1440
    %v1442 = vrot.slane %v1076, 1
    %v1443 = vsel %vm1319, %v1441, %v1442
    %v1444 = vor.u32 %v1073, %v1442
    %v1445 = vrot.slane %v1084, 1
    %v1446 = vor.u32 %v1081, %v1445
    %v1447 = vrot.slane %v1091, 1
    %v1448 = vsel %vm1319, %v1446, %v1447
    %v1449 = vor.u32 %v1088, %v1447
    %v1450 = vrot.slane %v1099, 1
    %v1451 = vor.u32 %v1096, %v1450
    %v1452 = vrot.slane %v1106, 1
    %v1453 = vsel %vm1319, %v1451, %v1452
    %v1454 = vor.u32 %v1103, %v1452
    %v1455 = vrot.slane %v1114, 1
    %v1456 = vor.u32 %v1111, %v1455
    %v1457 = vrot.slane %v1121, 1
    %v1458 = vsel %vm1319, %v1456, %v1457
    %v1459 = vor.u32 %v1118, %v1457
    %v1460 = vrot.slane %v1129, 1
    %v1461 = vor.u32 %v1126, %v1460
    %v1462 = vrot.slane %v1136, 1
    %v1463 = vsel %vm1319, %v1461, %v1462
    %v1464 = vor.u32 %v1133, %v1462
    %v1465 = vrot.slane %v1144, 1
    %v1466 = vor.u32 %v1141, %v1465
    %v1467 = vrot.slane %v1151, 1
    %v1468 = vsel %vm1319, %v1466, %v1467
    %v1469 = vor.u32 %v1148, %v1467
    %v1470 = vrot.slane %v1159, 1
    %v1471 = vor.u32 %v1156, %v1470
    %v1472 = vrot.slane %v1166, 1
    %v1473 = vsel %vm1319, %v1471, %v1472
    %v1474 = vor.u32 %v1163, %v1472
    %v1475 = vrot.slane %v1174, 1
    %v1476 = vor.u32 %v1171, %v1475
    %v1477 = vrot.slane %v1181, 1
    %v1478 = vsel %vm1319, %v1476, %v1477
    %v1479 = vor.u32 %v1178, %v1477
    %v1480 = vrot.slane %v1189, 1
    %v1481 = vor.u32 %v1186, %v1480
    %v1482 = vrot.slane %v1196, 1
    %v1483 = vsel %vm1319, %v1481, %v1482
    %v1484 = vor.u32 %v1193, %v1482
    %v1485 = vrot.slane %v1204, 1
    %v1486 = vor.u32 %v1201, %v1485
    %v1487 = vrot.slane %v1211, 1
    %v1488 = vsel %vm1319, %v1486, %v1487
    %v1489 = vor.u32 %v1208, %v1487
    %vm1558 = vcmask 1047552
    %vm1559 = vmand %vm1558, %vm1319
    %v1560 = vsel %vm1559, %v1324, 0
    %v1561 = vsel %vm1559, %v1329, 0
    %v1562 = vsel %vm1559, %v1334, 0
    %v1563 = vsel %vm1559, %v1339, 0
    %v1564 = vsel %vm1559, %v1344, 0
    %v1565 = vsel %vm1559, %v1349, 0
    %v1566 = vsel %vm1559, %v1354, 0
    %v1567 = vsel %vm1559, %v1359, 0
    %v1568 = vsel %vm1559, %v1364, 0
    %v1569 = vsel %vm1559, %v1369, 0
    %v1570 = vsel %vm1559, %v1374, 0
    %v1571 = vsel %vm1559, %v1379, 0
    %v1572 = vsel %vm1559, %v1384, 0
    %v1573 = vsel %vm1559, %v1389, 0
    %v1574 = vsel %vm1559, %v1394, 0
    %v1575 = vsel %vm1559, %v1399, 0
    %v1576 = vsel %vm1559, %v1404, 0
    %v1577 = vsel %vm1559, %v1409, 0
    %v1578 = vsel %vm1559, %v1414, 0
    %v1579 = vsel %vm1559, %v1419, 0
    %v1580 = vsel %vm1559, %v1424, 0
    %v1581 = vsel %vm1559, %v1429, 0
    %v1582 = vsel %vm1559, %v1434, 0
    %v1583 = vsel %vm1559, %v1439, 0
    %v1584 = vsel %vm1559, %v1444, 0
    %v1585 = vsel %vm1559, %v1449, 0
    %v1586 = vsel %vm1559, %v1454, 0
    %v1587 = vsel %vm1559, %v1459, 0
    %v1588 = vsel %vm1559, %v1464, 0
    %v1589 = vsel %vm1559, %v1469, 0
    %v1590 = vsel %vm1559, %v1474, 0
    %v1591 = vsel %vm1559, %v1479, 0
    %v1592 = vsel %vm1559, %v1484, 0
    %v1593 = vsel %vm1559, %v1489, 0
    %v1662 = vld [vmem:[#allocation5] sm:$0xff]
    %v1663 = vld [vmem:[#allocation5 + $0x8] sm:$0xff]
    %v1664 = vld [vmem:[#allocation5 + $0x10] sm:$0xff]
    %v1665 = vld [vmem:[#allocation5 + $0x18] sm:$0xff]
    %v1666 = vld [vmem:[#allocation5 + $0x20] sm:$0xff]
    %v1667 = vld [vmem:[#allocation5 + $0x28] sm:$0xff]
    %v1668 = vld [vmem:[#allocation5 + $0x30] sm:$0xff]
    %v1669 = vld [vmem:[#allocation5 + $0x38] sm:$0xff]
    %v1670 = vld [vmem:[#allocation5 + $0x40] sm:$0xff]
    %v1671 = vld [vmem:[#allocation5 + $0x48] sm:$0xff]
    %v1672 = vld [vmem:[#allocation5 + $0x50] sm:$0xff]
    %v1673 = vld [vmem:[#allocation5 + $0x58] sm:$0xff]
    %v1674 = vld [vmem:[#allocation5 + $0x60] sm:$0xff]
    %v1675 = vld [vmem:[#allocation5 + $0x68] sm:$0xff]
    %v1676 = vld [vmem:[#allocation5 + $0x70] sm:$0xff]
    %v1677 = vld [vmem:[#allocation5 + $0x78] sm:$0xff]
    %v1678 = vld [vmem:[#allocation5 + $0x80] sm:$0xff]
    %v1679 = vld [vmem:[#allocation5 + $0x88] sm:$0xff]
    %v1680 = vld [vmem:[#allocation5 + $0x90] sm:$0xff]
    %v1681 = vld [vmem:[#allocation5 + $0x98] sm:$0xff]
    %v1682 = vld [vmem:[#allocation5 + $0xa0] sm:$0xff]
    %v1683 = vld [vmem:[#allocation5 + $0xa8] sm:$0xff]
    %v1684 = vld [vmem:[#allocation5 + $0xb0] sm:$0xff]
    %v1685 = vld [vmem:[#allocation5 + $0xb8] sm:$0xff]
    %v1686 = vld [vmem:[#allocation5 + $0xc0] sm:$0xff]
    %v1687 = vld [vmem:[#allocation5 + $0xc8] sm:$0xff]
    %v1688 = vld [vmem:[#allocation5 + $0xd0] sm:$0xff]
    %v1689 = vld [vmem:[#allocation5 + $0xd8] sm:$0xff]
    %v1690 = vld [vmem:[#allocation5 + $0xe0] sm:$0xff]
    %v1691 = vld [vmem:[#allocation5 + $0xe8] sm:$0xff]
    %v1692 = vld [vmem:[#allocation5 + $0xf0] sm:$0xff]
    %v1693 = vld [vmem:[#allocation5 + $0xf8] sm:$0xff]
    %v1694 = vld [vmem:[#allocation5 + $0x100] sm:$0xff]
    %v1695 = vld [vmem:[#allocation5 + $0x108] sm:$0xff]
    %v1696 = vld [vmem:[#allocation5 + $0x110] sm:$0xff]
    %v1697 = vld [vmem:[#allocation5 + $0x118] sm:$0xff]
    %v1698 = vld [vmem:[#allocation5 + $0x120] sm:$0xff]
    %v1699 = vld [vmem:[#allocation5 + $0x128] sm:$0xff]
    %v1700 = vld [vmem:[#allocation5 + $0x130] sm:$0xff]
    %v1701 = vld [vmem:[#allocation5 + $0x138] sm:$0xff]
    %v1702 = vld [vmem:[#allocation5 + $0x140] sm:$0xff]
    %v1703 = vld [vmem:[#allocation5 + $0x148] sm:$0xff]
    %v1704 = vld [vmem:[#allocation5 + $0x150] sm:$0xff]
    %v1705 = vld [vmem:[#allocation5 + $0x158] sm:$0xff]
    %v1706 = vld [vmem:[#allocation5 + $0x160] sm:$0xff]
    %v1707 = vld [vmem:[#allocation5 + $0x168] sm:$0xff]
    %v1708 = vld [vmem:[#allocation5 + $0x170] sm:$0xff]
    %v1709 = vld [vmem:[#allocation5 + $0x178] sm:$0xff]
    %v1758 = vunpack.c.l.b16 %v1662
    %v1759 = vunpack.c.h.b16 %v1662
    %v1760 = vunpack.c.l.b16 %v1663
    %v1761 = vunpack.c.h.b16 %v1663
    %v1762 = vunpack.c.l.b16 %v1664
    %v1763 = vunpack.c.h.b16 %v1664
    %v1764 = vunpack.c.l.b16 %v1665
    %v1765 = vunpack.c.h.b16 %v1665
    %v1766 = vunpack.c.l.b16 %v1666
    %v1767 = vunpack.c.h.b16 %v1666
    %v1768 = vunpack.c.l.b16 %v1667
    %v1769 = vunpack.c.h.b16 %v1667
    %v1770 = vunpack.c.l.b16 %v1668
    %v1771 = vunpack.c.h.b16 %v1668
    %v1772 = vunpack.c.l.b16 %v1669
    %v1773 = vunpack.c.h.b16 %v1669
    %v1774 = vunpack.c.l.b16 %v1670
    %v1775 = vunpack.c.h.b16 %v1670
    %v1776 = vunpack.c.l.b16 %v1671
    %v1777 = vunpack.c.h.b16 %v1671
    %v1778 = vunpack.c.l.b16 %v1672
    %v1779 = vunpack.c.h.b16 %v1672
    %v1780 = vunpack.c.l.b16 %v1673
    %v1781 = vunpack.c.h.b16 %v1673
    %v1782 = vunpack.c.l.b16 %v1674
    %v1783 = vunpack.c.h.b16 %v1674
    %v1784 = vunpack.c.l.b16 %v1675
    %v1785 = vunpack.c.h.b16 %v1675
    %v1786 = vunpack.c.l.b16 %v1676
    %v1787 = vunpack.c.h.b16 %v1676
    %v1788 = vunpack.c.l.b16 %v1677
    %v1789 = vunpack.c.h.b16 %v1677
    %v1790 = vunpack.c.l.b16 %v1678
    %v1791 = vunpack.c.h.b16 %v1678
    %v1792 = vunpack.c.l.b16 %v1679
    %v1793 = vunpack.c.h.b16 %v1679
    %v1794 = vunpack.c.l.b16 %v1680
    %v1795 = vunpack.c.h.b16 %v1680
    %v1796 = vunpack.c.l.b16 %v1681
    %v1797 = vunpack.c.h.b16 %v1681
    %v1798 = vunpack.c.l.b16 %v1682
    %v1799 = vunpack.c.h.b16 %v1682
    %v1800 = vunpack.c.l.b16 %v1683
    %v1801 = vunpack.c.h.b16 %v1683
    %v1802 = vunpack.c.l.b16 %v1684
    %v1803 = vunpack.c.h.b16 %v1684
    %v1804 = vunpack.c.l.b16 %v1685
    %v1805 = vunpack.c.h.b16 %v1685
    %v1806 = vunpack.c.l.b16 %v1686
    %v1807 = vunpack.c.h.b16 %v1686
    %v1808 = vunpack.c.l.b16 %v1687
    %v1809 = vunpack.c.h.b16 %v1687
    %v1810 = vunpack.c.l.b16 %v1688
    %v1811 = vunpack.c.h.b16 %v1688
    %v1812 = vunpack.c.l.b16 %v1689
    %v1813 = vunpack.c.h.b16 %v1689
    %v1814 = vunpack.c.l.b16 %v1690
    %v1815 = vunpack.c.h.b16 %v1690
    %v1816 = vunpack.c.l.b16 %v1691
    %v1817 = vunpack.c.h.b16 %v1691
    %v1818 = vunpack.c.l.b16 %v1692
    %v1819 = vunpack.c.h.b16 %v1692
    %v1820 = vunpack.c.l.b16 %v1693
    %v1821 = vunpack.c.h.b16 %v1693
    %v1822 = vunpack.c.l.b16 %v1694
    %v1823 = vunpack.c.h.b16 %v1694
    %v1824 = vunpack.c.l.b16 %v1695
    %v1825 = vunpack.c.h.b16 %v1695
    %v1826 = vunpack.c.l.b16 %v1696
    %v1827 = vunpack.c.h.b16 %v1696
    %v1828 = vunpack.c.l.b16 %v1697
    %v1829 = vunpack.c.h.b16 %v1697
    %v1830 = vunpack.c.l.b16 %v1698
    %v1831 = vunpack.c.h.b16 %v1698
    %v1832 = vunpack.c.l.b16 %v1699
    %v1833 = vunpack.c.h.b16 %v1699
    %v1834 = vunpack.c.l.b16 %v1700
    %v1835 = vunpack.c.h.b16 %v1700
    %v1836 = vunpack.c.l.b16 %v1701
    %v1837 = vunpack.c.h.b16 %v1701
    %v1838 = vunpack.c.l.b16 %v1702
    %v1839 = vunpack.c.h.b16 %v1702
    %v1840 = vunpack.c.l.b16 %v1703
    %v1841 = vunpack.c.h.b16 %v1703
    %v1842 = vunpack.c.l.b16 %v1704
    %v1843 = vunpack.c.h.b16 %v1704
    %v1844 = vunpack.c.l.b16 %v1705
    %v1845 = vunpack.c.h.b16 %v1705
    %v1846 = vunpack.c.l.b16 %v1706
    %v1847 = vunpack.c.h.b16 %v1706
    %v1848 = vunpack.c.l.b16 %v1707
    %v1849 = vunpack.c.h.b16 %v1707
    %v1850 = vunpack.c.l.b16 %v1708
    %v1851 = vunpack.c.h.b16 %v1708
    %v1852 = vunpack.c.l.b16 %v1709
    %v1853 = vunpack.c.h.b16 %v1709
    %v1854 = vpack.c.b16 %v1760, %v1758
    %v1855 = vpack.c.b16 %v1761, %v1759
    %v1856 = vpack.c.b16 %v1764, %v1762
    %v1857 = vpack.c.b16 %v1765, %v1763
    %v1858 = vpack.c.b16 %v1768, %v1766
    %v1859 = vpack.c.b16 %v1769, %v1767
    %v1860 = vpack.c.b16 %v1772, %v1770
    %v1861 = vpack.c.b16 %v1773, %v1771
    %v1862 = vpack.c.b16 %v1776, %v1774
    %v1863 = vpack.c.b16 %v1777, %v1775
    %v1864 = vpack.c.b16 %v1780, %v1778
    %v1865 = vpack.c.b16 %v1781, %v1779
    %v1866 = vpack.c.b16 %v1784, %v1782
    %v1867 = vpack.c.b16 %v1785, %v1783
    %v1868 = vpack.c.b16 %v1788, %v1786
    %v1869 = vpack.c.b16 %v1789, %v1787
    %v1870 = vpack.c.b16 %v1792, %v1790
    %v1871 = vpack.c.b16 %v1793, %v1791
    %v1872 = vpack.c.b16 %v1796, %v1794
    %v1873 = vpack.c.b16 %v1797, %v1795
    %v1874 = vpack.c.b16 %v1800, %v1798
    %v1875 = vpack.c.b16 %v1801, %v1799
    %v1876 = vpack.c.b16 %v1804, %v1802
    %v1877 = vpack.c.b16 %v1805, %v1803
    %v1878 = vpack.c.b16 %v1808, %v1806
    %v1879 = vpack.c.b16 %v1809, %v1807
    %v1880 = vpack.c.b16 %v1812, %v1810
    %v1881 = vpack.c.b16 %v1813, %v1811
    %v1882 = vpack.c.b16 %v1816, %v1814
    %v1883 = vpack.c.b16 %v1817, %v1815
    %v1884 = vpack.c.b16 %v1820, %v1818
    %v1885 = vpack.c.b16 %v1821, %v1819
    %v1886 = vpack.c.b16 %v1824, %v1822
    %v1887 = vpack.c.b16 %v1825, %v1823
    %v1888 = vpack.c.b16 %v1828, %v1826
    %v1889 = vpack.c.b16 %v1829, %v1827
    %v1890 = vpack.c.b16 %v1832, %v1830
    %v1891 = vpack.c.b16 %v1833, %v1831
    %v1892 = vpack.c.b16 %v1836, %v1834
    %v1893 = vpack.c.b16 %v1837, %v1835
    %v1894 = vpack.c.b16 %v1840, %v1838
    %v1895 = vpack.c.b16 %v1841, %v1839
    %v1896 = vpack.c.b16 %v1844, %v1842
    %v1897 = vpack.c.b16 %v1845, %v1843
    %v1898 = vpack.c.b16 %v1848, %v1846
    %v1899 = vpack.c.b16 %v1849, %v1847
    %v1900 = vpack.c.b16 %v1852, %v1850
    %v1901 = vpack.c.b16 %v1853, %v1851
    %1950 = vmatprep.subr.bf16.mxu0 %v1855
    %1951 = vmatpush1.bf16.msra.mxu0 %v1854
    %1952 = vmatprep.subr.bf16.mxu0 %v1857
    %1953 = vmatpush1.bf16.msra.mxu0 %v1856
    %1954 = vmatprep.subr.bf16.mxu0 %v1859
    %1955 = vmatpush1.bf16.msra.mxu0 %v1858
    %1956 = vmatprep.subr.bf16.mxu0 %v1861
    %1957 = vmatpush1.bf16.msra.mxu0 %v1860
    %1958 = vmatprep.subr.bf16.mxu0 %v1863
    %1959 = vmatpush1.bf16.msra.mxu0 %v1862
    %1960 = vmatprep.subr.bf16.mxu0 %v1865
    %1961 = vmatpush1.bf16.msra.mxu0 %v1864
    %1962 = vmatprep.subr.bf16.mxu0 %v1867
    %1963 = vmatpush1.bf16.msra.mxu0 %v1866
    %1964 = vmatprep.subr.bf16.mxu0 %v1869
    %1965 = vmatpush1.bf16.msra.mxu0 %v1868
    %1966 = vmatprep.subr.bf16.mxu0 %v1871
    %1967 = vmatpush1.bf16.msra.mxu0 %v1870
    %1968 = vmatprep.subr.bf16.mxu0 %v1873
    %1969 = vmatpush1.bf16.msra.mxu0 %v1872
    %1970 = vmatprep.subr.bf16.mxu0 %v1875
    %1971 = vmatpush1.bf16.msra.mxu0 %v1874
    %1972 = vmatprep.subr.bf16.mxu0 %v1877
    %1973 = vmatpush1.bf16.msra.mxu0 %v1876
    %1974 = vmatprep.subr.bf16.mxu0 %v1879
    %1975 = vmatpush1.bf16.msra.mxu0 %v1878
    %1976 = vmatprep.subr.bf16.mxu0 %v1881
    %1977 = vmatpush1.bf16.msra.mxu0 %v1880
    %1978 = vmatprep.subr.bf16.mxu0 %v1883
    %1979 = vmatpush1.bf16.msra.mxu0 %v1882
    %1980 = vmatprep.subr.bf16.mxu0 %v1885
    %1981 = vmatpush1.bf16.msra.mxu0 %v1884
    %1982 = vmatprep.mubr.bf16.mxu0 %v636
    %1983 = vmatmul.mubr.bf16.gmra.mrb[0].mxu0 %v1285
    %v1984 = vpop.f32.mrb[0].mxu0
    %v1985 = vadd.f32 0.0, %v1984
    %v1986 = vpop.f32.mrb[0].mxu0
    %v1987 = vpop.f32.mrb[0].mxu0
    %v1988 = vadd.f32 0.0, %v1987
    %v1989 = vpop.f32.mrb[0].mxu0
    %1990 = vmatprep.mubr.bf16.mxu0 %v637
    %1991 = vmatmul.mubr.bf16.gmra.mrb[0].mxu0 %v719
    %v1992 = vpop.f32.mrb[0].mxu0
    %v1993 = vadd.f32 0.0, %v1992
    %v1994 = vpop.f32.mrb[0].mxu0
    %v1995 = vpop.f32.mrb[0].mxu0
    %v1996 = vadd.f32 0.0, %v1995
    %v1997 = vpop.f32.mrb[0].mxu0
    %1998 = vmatprep.mubr.bf16.mxu0 %v638
    %1999 = vmatmul.mubr.bf16.gmra.mrb[0].mxu0 %v1286
    %v2000 = vpop.f32.mrb[0].mxu0
    %v2001 = vadd.f32 0.0, %v2000
    %v2002 = vpop.f32.mrb[0].mxu0
    %v2003 = vadd.f32 0.0, %v2002
    %v2004 = vpop.f32.mrb[0].mxu0
    %v2005 = vadd.f32 0.0, %v2004
    %v2006 = vpop.f32.mrb[0].mxu0
    %v2007 = vadd.f32 0.0, %v2006
    %2008 = vmatprep.mubr.bf16.mxu0 %v639
    %2009 = vmatmul.mubr.bf16.gmra.mrb[0].mxu0 %v734
    %v2010 = vpop.f32.mrb[0].mxu0
    %v2011 = vadd.f32 0.0, %v2010
    %v2012 = vpop.f32.mrb[0].mxu0
    %v2013 = vadd.f32 0.0, %v2012
    %v2014 = vpop.f32.mrb[0].mxu0
    %v2015 = vadd.f32 0.0, %v2014
    %v2016 = vpop.f32.mrb[0].mxu0
    %v2017 = vadd.f32 0.0, %v2016
    %2018 = vmatprep.mubr.bf16.mxu0 %v640
    %2019 = vmatmul.mubr.bf16.gmra.mrb[0].mxu0 %v1287
    %v2020 = vpop.f32.mrb[0].mxu0
    %v2021 = vadd.f32 0.0, %v2020
    %v2022 = vpop.f32.mrb[0].mxu0
    %v2023 = vadd.f32 0.0, %v2022
    %v2024 = vpop.f32.mrb[0].mxu0
    %v2025 = vadd.f32 0.0, %v2024
    %v2026 = vpop.f32.mrb[0].mxu0
    %v2027 = vadd.f32 0.0, %v2026
    %2028 = vmatprep.mubr.bf16.mxu0 %v641
    %2029 = vmatmul.mubr.bf16.gmra.mrb[0].mxu0 %v749
    %v2030 = vpop.f32.mrb[0].mxu0
    %v2031 = vadd.f32 0.0, %v2030
    %v2032 = vpop.f32.mrb[0].mxu0
    %v2033 = vadd.f32 0.0, %v2032
    %v2034 = vpop.f32.mrb[0].mxu0
    %v2035 = vadd.f32 0.0, %v2034
    %v2036 = vpop.f32.mrb[0].mxu0
    %v2037 = vadd.f32 0.0, %v2036
    %2038 = vmatprep.mubr.bf16.mxu0 %v642
    %2039 = vmatmul.mubr.bf16.gmra.mrb[0].mxu0 %v1288
    %v2040 = vpop.f32.mrb[0].mxu0
    %v2041 = vadd.f32 0.0, %v2040
    %v2042 = vpop.f32.mrb[0].mxu0
    %v2043 = vadd.f32 0.0, %v2042
    %v2044 = vpop.f32.mrb[0].mxu0
    %v2045 = vadd.f32 0.0, %v2044
    %v2046 = vpop.f32.mrb[0].mxu0
    %v2047 = vadd.f32 0.0, %v2046
    %2048 = vmatprep.mubr.bf16.mxu0 %v643
    %2049 = vmatmul.mubr.bf16.gmra.mrb[0].mxu0 %v764
    %v2050 = vpop.f32.mrb[0].mxu0
    %v2051 = vadd.f32 0.0, %v2050
    %v2052 = vpop.f32.mrb[0].mxu0
    %v2053 = vadd.f32 0.0, %v2052
    %v2054 = vpop.f32.mrb[0].mxu0
    %v2055 = vadd.f32 0.0, %v2054
    %v2056 = vpop.f32.mrb[0].mxu0
    %v2057 = vadd.f32 0.0, %v2056
    %2058 = vmatprep.mubr.bf16.mxu0 %v644
    %2059 = vmatmul.mubr.bf16.gmra.mrb[0].mxu0 %v1289
    %v2060 = vpop.f32.mrb[0].mxu0
    %v2061 = vadd.f32 0.0, %v2060
    %v2062 = vpop.f32.mrb[0].mxu0
    %v2063 = vadd.f32 0.0, %v2062
    %v2064 = vpop.f32.mrb[0].mxu0
    %v2065 = vadd.f32 0.0, %v2064
    %v2066 = vpop.f32.mrb[0].mxu0
    %v2067 = vadd.f32 0.0, %v2066
    %2068 = vmatprep.mubr.bf16.mxu0 %v645
    %2069 = vmatmul.mubr.bf16.gmra.mrb[0].mxu0 %v779
    %v2070 = vpop.f32.mrb[0].mxu0
    %v2071 = vadd.f32 0.0, %v2070
    %v2072 = vpop.f32.mrb[0].mxu0
    %v2073 = vadd.f32 0.0, %v2072
    %v2074 = vpop.f32.mrb[0].mxu0
    %v2075 = vadd.f32 0.0, %v2074
    %v2076 = vpop.f32.mrb[0].mxu0
    %v2077 = vadd.f32 0.0, %v2076
    %2078 = vmatprep.mubr.bf16.mxu0 %v646
    %2079 = vmatmul.mubr.bf16.gmra.mrb[0].mxu0 %v1290
    %v2080 = vpop.f32.mrb[0].mxu0
    %v2081 = vadd.f32 0.0, %v2080
    %v2082 = vpop.f32.mrb[0].mxu0
    %v2083 = vadd.f32 0.0, %v2082
    %v2084 = vpop.f32.mrb[0].mxu0
    %v2085 = vadd.f32 0.0, %v2084
    %v2086 = vpop.f32.mrb[0].mxu0
    %v2087 = vadd.f32 0.0, %v2086
    %2088 = vmatprep.mubr.bf16.mxu0 %v647
    %2089 = vmatmul.mubr.bf16.gmra.mrb[0].mxu0 %v794
    %v2090 = vpop.f32.mrb[0].mxu0
    %v2091 = vadd.f32 0.0, %v2090
    %v2092 = vpop.f32.mrb[0].mxu0
    %v2093 = vadd.f32 0.0, %v2092
    %v2094 = vpop.f32.mrb[0].mxu0
    %v2095 = vadd.f32 0.0, %v2094
    %v2096 = vpop.f32.mrb[0].mxu0
    %v2097 = vadd.f32 0.0, %v2096
    %2098 = vmatprep.mubr.bf16.mxu0 %v648
    %2099 = vmatmul.mubr.bf16.gmra.mrb[0].mxu0 %v1291
    %v2100 = vpop.f32.mrb[0].mxu0
    %v2101 = vadd.f32 0.0, %v2100
    %v2102 = vpop.f32.mrb[0].mxu0
    %v2103 = vadd.f32 0.0, %v2102
    %v2104 = vpop.f32.mrb[0].mxu0
    %v2105 = vadd.f32 0.0, %v2104
    %v2106 = vpop.f32.mrb[0].mxu0
    %v2107 = vadd.f32 0.0, %v2106
    %2108 = vmatprep.mubr.bf16.mxu0 %v649
    %2109 = vmatmul.mubr.bf16.gmra.mrb[0].mxu0 %v809
    %v2110 = vpop.f32.mrb[0].mxu0
    %v2111 = vadd.f32 0.0, %v2110
    %v2112 = vpop.f32.mrb[0].mxu0
    %v2113 = vadd.f32 0.0, %v2112
    %v2114 = vpop.f32.mrb[0].mxu0
    %v2115 = vadd.f32 0.0, %v2114
    %v2116 = vpop.f32.mrb[0].mxu0
    %v2117 = vadd.f32 0.0, %v2116
    %2118 = vmatprep.mubr.bf16.mxu0 %v650
    %2119 = vmatmul.mubr.bf16.gmra.mrb[0].mxu0 %v1292
    %v2120 = vpop.f32.mrb[0].mxu0
    %v2121 = vadd.f32 0.0, %v2120
    %v2122 = vpop.f32.mrb[0].mxu0
    %v2123 = vadd.f32 0.0, %v2122
    %v2124 = vpop.f32.mrb[0].mxu0
    %v2125 = vadd.f32 0.0, %v2124
    %v2126 = vpop.f32.mrb[0].mxu0
    %v2127 = vadd.f32 0.0, %v2126
    %2128 = vmatprep.mubr.bf16.mxu0 %v651
    %2129 = vmatmul.mubr.bf16.gmra.mrb[0].mxu0 %v824
    %v2130 = vpop.f32.mrb[0].mxu0
    %v2131 = vadd.f32 0.0, %v2130
    %v2132 = vpop.f32.mrb[0].mxu0
    %v2133 = vadd.f32 0.0, %v2132
    %v2134 = vpop.f32.mrb[0].mxu0
    %v2135 = vadd.f32 0.0, %v2134
    %v2136 = vpop.f32.mrb[0].mxu0
    %v2137 = vadd.f32 0.0, %v2136
    %2138 = vmatprep.mubr.bf16.mxu0 %v652
    %2139 = vmatmul.mubr.bf16.gmra.mrb[0].mxu0 %v1293
    %v2140 = vpop.f32.mrb[0].mxu0
    %v2141 = vadd.f32 0.0, %v2140
    %v2142 = vpop.f32.mrb[0].mxu0
    %v2143 = vadd.f32 0.0, %v2142
    %v2144 = vpop.f32.mrb[0].mxu0
    %v2145 = vadd.f32 0.0, %v2144
    %v2146 = vpop.f32.mrb[0].mxu0
    %v2147 = vadd.f32 0.0, %v2146
    %2148 = vmatprep.mubr.bf16.mxu0 %v653
    %2149 = vmatmul.mubr.bf16.gmra.mrb[0].mxu0 %v839
    %v2150 = vpop.f32.mrb[0].mxu0
    %v2151 = vadd.f32 0.0, %v2150
    %v2152 = vpop.f32.mrb[0].mxu0
    %v2153 = vadd.f32 0.0, %v2152
    %v2154 = vpop.f32.mrb[0].mxu0
    %v2155 = vadd.f32 0.0, %v2154
    %v2156 = vpop.f32.mrb[0].mxu0
    %v2157 = vadd.f32 0.0, %v2156
    %2158 = vmatprep.mubr.bf16.mxu0 %v654
    %2159 = vmatmul.mubr.bf16.gmra.mrb[0].mxu0 %v1294
    %v2160 = vpop.f32.mrb[0].mxu0
    %v2161 = vadd.f32 0.0, %v2160
    %v2162 = vpop.f32.mrb[0].mxu0
    %v2163 = vadd.f32 0.0, %v2162
    %v2164 = vpop.f32.mrb[0].mxu0
    %v2165 = vadd.f32 0.0, %v2164
    %v2166 = vpop.f32.mrb[0].mxu0
    %v2167 = vadd.f32 0.0, %v2166
    %2168 = vmatprep.mubr.bf16.mxu0 %v655
    %2169 = vmatmul.mubr.bf16.gmra.mrb[0].mxu0 %v854
    %v2170 = vpop.f32.mrb[0].mxu0
    %v2171 = vadd.f32 0.0, %v2170
    %v2172 = vpop.f32.mrb[0].mxu0
    %v2173 = vadd.f32 0.0, %v2172
    %v2174 = vpop.f32.mrb[0].mxu0
    %v2175 = vadd.f32 0.0, %v2174
    %v2176 = vpop.f32.mrb[0].mxu0
    %v2177 = vadd.f32 0.0, %v2176
    %2178 = vmatprep.mubr.bf16.mxu0 %v656
    %2179 = vmatmul.mubr.bf16.gmra.mrb[0].mxu0 %v1295
    %v2180 = vpop.f32.mrb[0].mxu0
    %v2181 = vadd.f32 0.0, %v2180
    %v2182 = vpop.f32.mrb[0].mxu0
    %v2183 = vadd.f32 0.0, %v2182
    %v2184 = vpop.f32.mrb[0].mxu0
    %v2185 = vadd.f32 0.0, %v2184
    %v2186 = vpop.f32.mrb[0].mxu0
    %v2187 = vadd.f32 0.0, %v2186
    %2188 = vmatprep.mubr.bf16.mxu0 %v657
    %2189 = vmatmul.mubr.bf16.gmra.mrb[0].mxu0 %v869
    %v2190 = vpop.f32.mrb[0].mxu0
    %v2191 = vadd.f32 0.0, %v2190
    %v2192 = vpop.f32.mrb[0].mxu0
    %v2193 = vadd.f32 0.0, %v2192
    %v2194 = vpop.f32.mrb[0].mxu0
    %v2195 = vadd.f32 0.0, %v2194
    %v2196 = vpop.f32.mrb[0].mxu0
    %v2197 = vadd.f32 0.0, %v2196
    %2198 = vmatprep.mubr.bf16.mxu0 %v658
    %2199 = vmatmul.mubr.bf16.gmra.mrb[0].mxu0 %v1296
    %v2200 = vpop.f32.mrb[0].mxu0
    %v2201 = vadd.f32 0.0, %v2200
    %v2202 = vpop.f32.mrb[0].mxu0
    %v2203 = vadd.f32 0.0, %v2202
    %v2204 = vpop.f32.mrb[0].mxu0
    %v2205 = vadd.f32 0.0, %v2204
    %v2206 = vpop.f32.mrb[0].mxu0
    %v2207 = vadd.f32 0.0, %v2206
    %2208 = vmatprep.mubr.bf16.mxu0 %v659
    %2209 = vmatmul.mubr.bf16.gmra.mrb[0].mxu0 %v884
    %v2210 = vpop.f32.mrb[0].mxu0
    %v2211 = vadd.f32 0.0, %v2210
    %v2212 = vpop.f32.mrb[0].mxu0
    %v2213 = vadd.f32 0.0, %v2212
    %v2214 = vpop.f32.mrb[0].mxu0
    %v2215 = vadd.f32 0.0, %v2214
    %v2216 = vpop.f32.mrb[0].mxu0
    %v2217 = vadd.f32 0.0, %v2216
    %2218 = vmatprep.mubr.bf16.mxu0 %v660
    %2219 = vmatmul.mubr.bf16.gmra.mrb[0].mxu0 %v1297
    %v2220 = vpop.f32.mrb[0].mxu0
    %v2221 = vadd.f32 0.0, %v2220
    %v2222 = vpop.f32.mrb[0].mxu0
    %v2223 = vadd.f32 0.0, %v2222
    %v2224 = vpop.f32.mrb[0].mxu0
    %v2225 = vadd.f32 0.0, %v2224
    %v2226 = vpop.f32.mrb[0].mxu0
    %v2227 = vadd.f32 0.0, %v2226
    %2228 = vmatprep.mubr.bf16.mxu0 %v661
    %2229 = vmatmul.mubr.bf16.gmra.mrb[0].mxu0 %v899
    %v2230 = vpop.f32.mrb[0].mxu0
    %v2231 = vadd.f32 0.0, %v2230
    %v2232 = vpop.f32.mrb[0].mxu0
    %v2233 = vadd.f32 0.0, %v2232
    %v2234 = vpop.f32.mrb[0].mxu0
    %v2235 = vadd.f32 0.0, %v2234
    %v2236 = vpop.f32.mrb[0].mxu0
    %v2237 = vadd.f32 0.0, %v2236
    %2238 = vmatprep.mubr.bf16.mxu0 %v662
    %2239 = vmatmul.mubr.bf16.gmra.mrb[0].mxu0 %v1298
    %v2240 = vpop.f32.mrb[0].mxu0
    %v2241 = vadd.f32 0.0, %v2240
    %v2242 = vpop.f32.mrb[0].mxu0
    %v2243 = vadd.f32 0.0, %v2242
    %v2244 = vpop.f32.mrb[0].mxu0
    %v2245 = vadd.f32 0.0, %v2244
    %v2246 = vpop.f32.mrb[0].mxu0
    %v2247 = vadd.f32 0.0, %v2246
    %2248 = vmatprep.mubr.bf16.mxu0 %v663
    %2249 = vmatmul.mubr.bf16.gmra.mrb[0].mxu0 %v914
    %v2250 = vpop.f32.mrb[0].mxu0
    %v2251 = vadd.f32 0.0, %v2250
    %v2252 = vpop.f32.mrb[0].mxu0
    %v2253 = vadd.f32 0.0, %v2252
    %v2254 = vpop.f32.mrb[0].mxu0
    %v2255 = vadd.f32 0.0, %v2254
    %v2256 = vpop.f32.mrb[0].mxu0
    %v2257 = vadd.f32 0.0, %v2256
    %2258 = vmatprep.mubr.bf16.mxu0 %v664
    %2259 = vmatmul.mubr.bf16.gmra.mrb[0].mxu0 %v1299
    %v2260 = vpop.f32.mrb[0].mxu0
    %v2261 = vadd.f32 0.0, %v2260
    %v2262 = vpop.f32.mrb[0].mxu0
    %v2263 = vadd.f32 0.0, %v2262
    %v2264 = vpop.f32.mrb[0].mxu0
    %v2265 = vadd.f32 0.0, %v2264
    %v2266 = vpop.f32.mrb[0].mxu0
    %v2267 = vadd.f32 0.0, %v2266
    %2268 = vmatprep.mubr.bf16.mxu0 %v665
    %2269 = vmatmul.mubr.bf16.gmra.mrb[0].mxu0 %v929
    %v2270 = vpop.f32.mrb[0].mxu0
    %v2271 = vadd.f32 0.0, %v2270
    %v2272 = vpop.f32.mrb[0].mxu0
    %v2273 = vadd.f32 0.0, %v2272
    %v2274 = vpop.f32.mrb[0].mxu0
    %v2275 = vadd.f32 0.0, %v2274
    %v2276 = vpop.f32.mrb[0].mxu0
    %v2277 = vadd.f32 0.0, %v2276
    %2278 = vmatprep.mubr.bf16.mxu0 %v666
    %2279 = vmatmul.mubr.bf16.gmra.mrb[0].mxu0 %v1300
    %v2280 = vpop.f32.mrb[0].mxu0
    %v2281 = vadd.f32 0.0, %v2280
    %v2282 = vpop.f32.mrb[0].mxu0
    %v2283 = vadd.f32 0.0, %v2282
    %v2284 = vpop.f32.mrb[0].mxu0
    %v2285 = vadd.f32 0.0, %v2284
    %v2286 = vpop.f32.mrb[0].mxu0
    %v2287 = vadd.f32 0.0, %v2286
    %2288 = vmatprep.mubr.bf16.mxu0 %v667
    %2289 = vmatmul.mubr.bf16.gmra.mrb[0].mxu0 %v944
    %v2290 = vpop.f32.mrb[0].mxu0
    %v2291 = vadd.f32 0.0, %v2290
    %v2292 = vpop.f32.mrb[0].mxu0
    %v2293 = vadd.f32 0.0, %v2292
    %v2294 = vpop.f32.mrb[0].mxu0
    %v2295 = vadd.f32 0.0, %v2294
    %v2296 = vpop.f32.mrb[0].mxu0
    %v2297 = vadd.f32 0.0, %v2296
    %2298 = vmatprep.mubr.bf16.mxu0 %v668
    %2299 = vmatmul.mubr.bf16.gmra.mrb[0].mxu0 %v1301
    %v2300 = vpop.f32.mrb[0].mxu0
    %v2301 = vadd.f32 0.0, %v2300
    %v2302 = vpop.f32.mrb[0].mxu0
    %v2303 = vadd.f32 0.0, %v2302
    %v2304 = vpop.f32.mrb[0].mxu0
    %v2305 = vadd.f32 0.0, %v2304
    %v2306 = vpop.f32.mrb[0].mxu0
    %v2307 = vadd.f32 0.0, %v2306
    %2308 = vmatprep.mubr.bf16.mxu0 %v669
    %2309 = vmatmul.mubr.bf16.gmra.mrb[0].mxu0 %v959
    %v2310 = vpop.f32.mrb[0].mxu0
    %v2311 = vadd.f32 0.0, %v2310
    %v2312 = vpop.f32.mrb[0].mxu0
    %v2313 = vadd.f32 0.0, %v2312
    %v2314 = vpop.f32.mrb[0].mxu0
    %v2315 = vadd.f32 0.0, %v2314
    %v2316 = vpop.f32.mrb[0].mxu0
    %v2317 = vadd.f32 0.0, %v2316
    %2318 = vmatprep.mubr.bf16.mxu0 %v670
    %2319 = vmatmul.mubr.bf16.gmra.mrb[0].mxu0 %v1302
    %v2320 = vpop.f32.mrb[0].mxu0
    %v2321 = vadd.f32 0.0, %v2320
    %v2322 = vpop.f32.mrb[0].mxu0
    %v2323 = vadd.f32 0.0, %v2322
    %v2324 = vpop.f32.mrb[0].mxu0
    %v2325 = vadd.f32 0.0, %v2324
    %v2326 = vpop.f32.mrb[0].mxu0
    %v2327 = vadd.f32 0.0, %v2326
    %2328 = vmatprep.mubr.bf16.mxu0 %v671
    %2329 = vmatmul.mubr.bf16.gmra.mrb[0].mxu0 %v974
    %v2330 = vpop.f32.mrb[0].mxu0
    %v2331 = vadd.f32 0.0, %v2330
    %v2332 = vpop.f32.mrb[0].mxu0
    %v2333 = vadd.f32 0.0, %v2332
    %v2334 = vpop.f32.mrb[0].mxu0
    %v2335 = vadd.f32 0.0, %v2334
    %v2336 = vpop.f32.mrb[0].mxu0
    %v2337 = vadd.f32 0.0, %v2336
    %2338 = vmatprep.mubr.bf16.mxu0 %v672
    %2339 = vmatmul.mubr.bf16.gmra.mrb[0].mxu0 %v1303
    %v2340 = vpop.f32.mrb[0].mxu0
    %v2341 = vadd.f32 0.0, %v2340
    %v2342 = vpop.f32.mrb[0].mxu0
    %v2343 = vadd.f32 0.0, %v2342
    %v2344 = vpop.f32.mrb[0].mxu0
    %v2345 = vadd.f32 0.0, %v2344
    %v2346 = vpop.f32.mrb[0].mxu0
    %v2347 = vadd.f32 0.0, %v2346
    %2348 = vmatprep.mubr.bf16.mxu0 %v673
    %2349 = vmatmul.mubr.bf16.gmra.mrb[0].mxu0 %v989
    %v2350 = vpop.f32.mrb[0].mxu0
    %v2351 = vadd.f32 0.0, %v2350
    %v2352 = vpop.f32.mrb[0].mxu0
    %v2353 = vadd.f32 0.0, %v2352
    %v2354 = vpop.f32.mrb[0].mxu0
    %v2355 = vadd.f32 0.0, %v2354
    %v2356 = vpop.f32.mrb[0].mxu0
    %v2357 = vadd.f32 0.0, %v2356
    %2358 = vmatprep.mubr.bf16.mxu0 %v674
    %2359 = vmatmul.mubr.bf16.gmra.mrb[0].mxu0 %v1304
    %v2360 = vpop.f32.mrb[0].mxu0
    %v2361 = vadd.f32 0.0, %v2360
    %v2362 = vpop.f32.mrb[0].mxu0
    %v2363 = vadd.f32 0.0, %v2362
    %v2364 = vpop.f32.mrb[0].mxu0
    %v2365 = vadd.f32 0.0, %v2364
    %v2366 = vpop.f32.mrb[0].mxu0
    %v2367 = vadd.f32 0.0, %v2366
    %2368 = vmatprep.mubr.bf16.mxu0 %v675
    %2369 = vmatmul.mubr.bf16.gmra.mrb[0].mxu0 %v1004
    %v2370 = vpop.f32.mrb[0].mxu0
    %v2371 = vadd.f32 0.0, %v2370
    %v2372 = vpop.f32.mrb[0].mxu0
    %v2373 = vadd.f32 0.0, %v2372
    %v2374 = vpop.f32.mrb[0].mxu0
    %v2375 = vadd.f32 0.0, %v2374
    %v2376 = vpop.f32.mrb[0].mxu0
    %v2377 = vadd.f32 0.0, %v2376
    %2378 = vmatprep.mubr.bf16.mxu0 %v676
    %2379 = vmatmul.mubr.bf16.gmra.mrb[0].mxu0 %v1305
    %v2380 = vpop.f32.mrb[0].mxu0
    %v2381 = vadd.f32 0.0, %v2380
    %v2382 = vpop.f32.mrb[0].mxu0
    %v2383 = vadd.f32 0.0, %v2382
    %v2384 = vpop.f32.mrb[0].mxu0
    %v2385 = vadd.f32 0.0, %v2384
    %v2386 = vpop.f32.mrb[0].mxu0
    %v2387 = vadd.f32 0.0, %v2386
    %2388 = vmatprep.mubr.bf16.mxu0 %v677
    %2389 = vmatmul.mubr.bf16.gmra.mrb[0].mxu0 %v1019
    %v2390 = vpop.f32.mrb[0].mxu0
    %v2391 = vadd.f32 0.0, %v2390
    %v2392 = vpop.f32.mrb[0].mxu0
    %v2393 = vadd.f32 0.0, %v2392
    %v2394 = vpop.f32.mrb[0].mxu0
    %v2395 = vadd.f32 0.0, %v2394
    %v2396 = vpop.f32.mrb[0].mxu0
    %v2397 = vadd.f32 0.0, %v2396
    %2398 = vmatprep.mubr.bf16.mxu0 %v678
    %2399 = vmatmul.mubr.bf16.gmra.mrb[0].mxu0 %v1306
    %v2400 = vpop.f32.mrb[0].mxu0
    %v2401 = vadd.f32 0.0, %v2400
    %v2402 = vpop.f32.mrb[0].mxu0
    %v2403 = vadd.f32 0.0, %v2402
    %v2404 = vpop.f32.mrb[0].mxu0
    %v2405 = vadd.f32 0.0, %v2404
    %v2406 = vpop.f32.mrb[0].mxu0
    %v2407 = vadd.f32 0.0, %v2406
    %2408 = vmatprep.mubr.bf16.mxu0 %v679
    %2409 = vmatmul.mubr.bf16.gmra.mrb[0].mxu0 %v1034
    %v2410 = vpop.f32.mrb[0].mxu0
    %v2411 = vadd.f32 0.0, %v2410
    %v2412 = vpop.f32.mrb[0].mxu0
    %v2413 = vadd.f32 0.0, %v2412
    %v2414 = vpop.f32.mrb[0].mxu0
    %v2415 = vadd.f32 0.0, %v2414
    %v2416 = vpop.f32.mrb[0].mxu0
    %v2417 = vadd.f32 0.0, %v2416
    %2418 = vmatprep.mubr.bf16.mxu0 %v680
    %2419 = vmatmul.mubr.bf16.gmra.mrb[0].mxu0 %v1307
    %v2420 = vpop.f32.mrb[0].mxu0
    %v2421 = vadd.f32 0.0, %v2420
    %v2422 = vpop.f32.mrb[0].mxu0
    %v2423 = vadd.f32 0.0, %v2422
    %v2424 = vpop.f32.mrb[0].mxu0
    %v2425 = vadd.f32 0.0, %v2424
    %v2426 = vpop.f32.mrb[0].mxu0
    %v2427 = vadd.f32 0.0, %v2426
    %2428 = vmatprep.mubr.bf16.mxu0 %v681
    %2429 = vmatmul.mubr.bf16.gmra.mrb[0].mxu0 %v1049
    %v2430 = vpop.f32.mrb[0].mxu0
    %v2431 = vadd.f32 0.0, %v2430
    %v2432 = vpop.f32.mrb[0].mxu0
    %v2433 = vadd.f32 0.0, %v2432
    %v2434 = vpop.f32.mrb[0].mxu0
    %v2435 = vadd.f32 0.0, %v2434
    %v2436 = vpop.f32.mrb[0].mxu0
    %v2437 = vadd.f32 0.0, %v2436
    %2438 = vmatprep.mubr.bf16.mxu0 %v682
    %2439 = vmatmul.mubr.bf16.gmra.mrb[0].mxu0 %v1308
    %v2440 = vpop.f32.mrb[0].mxu0
    %v2441 = vadd.f32 0.0, %v2440
    %v2442 = vpop.f32.mrb[0].mxu0
    %v2443 = vadd.f32 0.0, %v2442
    %v2444 = vpop.f32.mrb[0].mxu0
    %v2445 = vadd.f32 0.0, %v2444
    %v2446 = vpop.f32.mrb[0].mxu0
    %v2447 = vadd.f32 0.0, %v2446
    %2448 = vmatprep.mubr.bf16.mxu0 %v683
    %2449 = vmatmul.mubr.bf16.gmra.mrb[0].mxu0 %v1064
    %v2450 = vpop.f32.mrb[0].mxu0
    %v2451 = vadd.f32 0.0, %v2450
    %v2452 = vpop.f32.mrb[0].mxu0
    %v2453 = vadd.f32 0.0, %v2452
    %v2454 = vpop.f32.mrb[0].mxu0
    %v2455 = vadd.f32 0.0, %v2454
    %v2456 = vpop.f32.mrb[0].mxu0
    %v2457 = vadd.f32 0.0, %v2456
    %2458 = vmatprep.mubr.bf16.mxu0 %v684
    %2459 = vmatmul.mubr.bf16.gmra.mrb[0].mxu0 %v1309
    %v2460 = vpop.f32.mrb[0].mxu0
    %v2461 = vadd.f32 0.0, %v2460
    %v2462 = vpop.f32.mrb[0].mxu0
    %v2463 = vadd.f32 0.0, %v2462
    %v2464 = vpop.f32.mrb[0].mxu0
    %v2465 = vadd.f32 0.0, %v2464
    %v2466 = vpop.f32.mrb[0].mxu0
    %v2467 = vadd.f32 0.0, %v2466
    %2468 = vmatprep.mubr.bf16.mxu0 %v685
    %2469 = vmatmul.mubr.bf16.gmra.mrb[0].mxu0 %v1079
    %v2470 = vpop.f32.mrb[0].mxu0
    %v2471 = vadd.f32 0.0, %v2470
    %v2472 = vpop.f32.mrb[0].mxu0
    %v2473 = vadd.f32 0.0, %v2472
    %v2474 = vpop.f32.mrb[0].mxu0
    %v2475 = vadd.f32 0.0, %v2474
    %v2476 = vpop.f32.mrb[0].mxu0
    %v2477 = vadd.f32 0.0, %v2476
    %2478 = vmatprep.mubr.bf16.mxu0 %v686
    %2479 = vmatmul.mubr.bf16.gmra.mrb[0].mxu0 %v1310
    %v2480 = vpop.f32.mrb[0].mxu0
    %v2481 = vadd.f32 0.0, %v2480
    %v2482 = vpop.f32.mrb[0].mxu0
    %v2483 = vadd.f32 0.0, %v2482
    %v2484 = vpop.f32.mrb[0].mxu0
    %v2485 = vadd.f32 0.0, %v2484
    %v2486 = vpop.f32.mrb[0].mxu0
    %v2487 = vadd.f32 0.0, %v2486
    %2488 = vmatprep.mubr.bf16.mxu0 %v687
    %2489 = vmatmul.mubr.bf16.gmra.mrb[0].mxu0 %v1094
    %v2490 = vpop.f32.mrb[0].mxu0
    %v2491 = vadd.f32 0.0, %v2490
    %v2492 = vpop.f32.mrb[0].mxu0
    %v2493 = vadd.f32 0.0, %v2492
    %v2494 = vpop.f32.mrb[0].mxu0
    %v2495 = vadd.f32 0.0, %v2494
    %v2496 = vpop.f32.mrb[0].mxu0
    %v2497 = vadd.f32 0.0, %v2496
    %2498 = vmatprep.mubr.bf16.mxu0 %v688
    %2499 = vmatmul.mubr.bf16.gmra.mrb[0].mxu0 %v1311
    %v2500 = vpop.f32.mrb[0].mxu0
    %v2501 = vadd.f32 0.0, %v2500
    %v2502 = vpop.f32.mrb[0].mxu0
    %v2503 = vadd.f32 0.0, %v2502
    %v2504 = vpop.f32.mrb[0].mxu0
    %v2505 = vadd.f32 0.0, %v2504
    %v2506 = vpop.f32.mrb[0].mxu0
    %v2507 = vadd.f32 0.0, %v2506
    %2508 = vmatprep.mubr.bf16.mxu0 %v689
    %2509 = vmatmul.mubr.bf16.gmra.mrb[0].mxu0 %v1109
    %v2510 = vpop.f32.mrb[0].mxu0
    %v2511 = vadd.f32 0.0, %v2510
    %v2512 = vpop.f32.mrb[0].mxu0
    %v2513 = vadd.f32 0.0, %v2512
    %v2514 = vpop.f32.mrb[0].mxu0
    %v2515 = vadd.f32 0.0, %v2514
    %v2516 = vpop.f32.mrb[0].mxu0
    %v2517 = vadd.f32 0.0, %v2516
    %2518 = vmatprep.mubr.bf16.mxu0 %v690
    %2519 = vmatmul.mubr.bf16.gmra.mrb[0].mxu0 %v1312
    %v2520 = vpop.f32.mrb[0].mxu0
    %v2521 = vadd.f32 0.0, %v2520
    %v2522 = vpop.f32.mrb[0].mxu0
    %v2523 = vadd.f32 0.0, %v2522
    %v2524 = vpop.f32.mrb[0].mxu0
    %v2525 = vadd.f32 0.0, %v2524
    %v2526 = vpop.f32.mrb[0].mxu0
    %v2527 = vadd.f32 0.0, %v2526
    %2528 = vmatprep.mubr.bf16.mxu0 %v691
    %2529 = vmatmul.mubr.bf16.gmra.mrb[0].mxu0 %v1124
    %v2530 = vpop.f32.mrb[0].mxu0
    %v2531 = vadd.f32 0.0, %v2530
    %v2532 = vpop.f32.mrb[0].mxu0
    %v2533 = vadd.f32 0.0, %v2532
    %v2534 = vpop.f32.mrb[0].mxu0
    %v2535 = vadd.f32 0.0, %v2534
    %v2536 = vpop.f32.mrb[0].mxu0
    %v2537 = vadd.f32 0.0, %v2536
    %2538 = vmatprep.mubr.bf16.mxu0 %v692
    %2539 = vmatmul.mubr.bf16.gmra.mrb[0].mxu0 %v1313
    %v2540 = vpop.f32.mrb[0].mxu0
    %v2541 = vadd.f32 0.0, %v2540
    %v2542 = vpop.f32.mrb[0].mxu0
    %v2543 = vadd.f32 0.0, %v2542
    %v2544 = vpop.f32.mrb[0].mxu0
    %v2545 = vadd.f32 0.0, %v2544
    %v2546 = vpop.f32.mrb[0].mxu0
    %v2547 = vadd.f32 0.0, %v2546
    %2548 = vmatprep.mubr.bf16.mxu0 %v693
    %2549 = vmatmul.mubr.bf16.gmra.mrb[0].mxu0 %v1139
    %v2550 = vpop.f32.mrb[0].mxu0
    %v2551 = vadd.f32 0.0, %v2550
    %v2552 = vpop.f32.mrb[0].mxu0
    %v2553 = vadd.f32 0.0, %v2552
    %v2554 = vpop.f32.mrb[0].mxu0
    %v2555 = vadd.f32 0.0, %v2554
    %v2556 = vpop.f32.mrb[0].mxu0
    %v2557 = vadd.f32 0.0, %v2556
    %2558 = vmatprep.mubr.bf16.mxu0 %v694
    %2559 = vmatmul.mubr.bf16.gmra.mrb[0].mxu0 %v1314
    %v2560 = vpop.f32.mrb[0].mxu0
    %v2561 = vadd.f32 0.0, %v2560
    %v2562 = vpop.f32.mrb[0].mxu0
    %v2563 = vadd.f32 0.0, %v2562
    %v2564 = vpop.f32.mrb[0].mxu0
    %v2565 = vadd.f32 0.0, %v2564
    %v2566 = vpop.f32.mrb[0].mxu0
    %v2567 = vadd.f32 0.0, %v2566
    %2568 = vmatprep.mubr.bf16.mxu0 %v695
    %2569 = vmatmul.mubr.bf16.gmra.mrb[0].mxu0 %v1154
    %v2570 = vpop.f32.mrb[0].mxu0
    %v2571 = vadd.f32 0.0, %v2570
    %v2572 = vpop.f32.mrb[0].mxu0
    %v2573 = vadd.f32 0.0, %v2572
    %v2574 = vpop.f32.mrb[0].mxu0
    %v2575 = vadd.f32 0.0, %v2574
    %v2576 = vpop.f32.mrb[0].mxu0
    %v2577 = vadd.f32 0.0, %v2576
    %2578 = vmatprep.mubr.bf16.mxu0 %v696
    %2579 = vmatmul.mubr.bf16.gmra.mrb[0].mxu0 %v1315
    %v2580 = vpop.f32.mrb[0].mxu0
    %v2581 = vadd.f32 0.0, %v2580
    %v2582 = vpop.f32.mrb[0].mxu0
    %v2583 = vadd.f32 0.0, %v2582
    %v2584 = vpop.f32.mrb[0].mxu0
    %v2585 = vadd.f32 0.0, %v2584
    %v2586 = vpop.f32.mrb[0].mxu0
    %v2587 = vadd.f32 0.0, %v2586
    %2588 = vmatprep.mubr.bf16.mxu0 %v697
    %2589 = vmatmul.mubr.bf16.gmra.mrb[0].mxu0 %v1169
    %v2590 = vpop.f32.mrb[0].mxu0
    %v2591 = vadd.f32 0.0, %v2590
    %v2592 = vpop.f32.mrb[0].mxu0
    %v2593 = vadd.f32 0.0, %v2592
    %v2594 = vpop.f32.mrb[0].mxu0
    %v2595 = vadd.f32 0.0, %v2594
    %v2596 = vpop.f32.mrb[0].mxu0
    %v2597 = vadd.f32 0.0, %v2596
    %2598 = vmatprep.mubr.bf16.mxu0 %v698
    %2599 = vmatmul.mubr.bf16.gmra.mrb[0].mxu0 %v1316
    %v2600 = vpop.f32.mrb[0].mxu0
    %v2601 = vadd.f32 0.0, %v2600
    %v2602 = vpop.f32.mrb[0].mxu0
    %v2603 = vadd.f32 0.0, %v2602
    %v2604 = vpop.f32.mrb[0].mxu0
    %v2605 = vadd.f32 0.0, %v2604
    %v2606 = vpop.f32.mrb[0].mxu0
    %v2607 = vadd.f32 0.0, %v2606
    %2608 = vmatprep.mubr.bf16.mxu0 %v699
    %2609 = vmatmul.mubr.bf16.gmra.mrb[0].mxu0 %v1184
    %v2610 = vpop.f32.mrb[0].mxu0
    %v2611 = vadd.f32 0.0, %v2610
    %v2612 = vpop.f32.mrb[0].mxu0
    %v2613 = vadd.f32 0.0, %v2612
    %v2614 = vpop.f32.mrb[0].mxu0
    %v2615 = vadd.f32 0.0, %v2614
    %v2616 = vpop.f32.mrb[0].mxu0
    %v2617 = vadd.f32 0.0, %v2616
    %2618 = vmatprep.mubr.bf16.mxu0 %v700
    %2619 = vmatmul.mubr.bf16.gmra.mrb[0].mxu0 %v1317
    %v2620 = vpop.f32.mrb[0].mxu0
    %v2621 = vpop.f32.mrb[0].mxu0
    %v2622 = vadd.f32 0.0, %v2621
    %v2623 = vpop.f32.mrb[0].mxu0
    %v2624 = vpop.f32.mrb[0].mxu0
    %v2625 = vadd.f32 0.0, %v2624
    %2626 = vmatprep.mubr.bf16.mxu0 %v701
    %2627 = vmatmul.mubr.bf16.gmra.mrb[0].mxu0 %v1199
    %v2628 = vpop.f32.mrb[0].mxu0
    %v2629 = vpop.f32.mrb[0].mxu0
    %v2630 = vadd.f32 0.0, %v2629
    %v2631 = vpop.f32.mrb[0].mxu0
    %v2632 = vpop.f32.mrb[0].mxu0
    %v2633 = vadd.f32 0.0, %v2632
    %2634 = vmatprep.mubr.bf16.mxu0 %v702
    %2635 = vmatmul.mubr.bf16.gmra.mrb[0].mxu0 %v1318
    %v2636 = vpop.f32.mrb[0].mxu0
    %v2637 = vpop.f32.mrb[0].mxu0
    %v2638 = vpop.f32.mrb[0].mxu0
    %v2639 = vpop.f32.mrb[0].mxu0
    %2640 = vmatprep.mubr.bf16.mxu0 %v703
    %2641 = vmatmul.mubr.bf16.gmra.mrb[0].mxu0 %v1214
    %v2642 = vpop.f32.mrb[0].mxu0
    %v2643 = vpop.f32.mrb[0].mxu0
    %v2644 = vpop.f32.mrb[0].mxu0
    %v2645 = vpop.f32.mrb[0].mxu0
    %2646 = vdwg.mxu0
    %2647 = vmatprep.subr.bf16.mxu0 %v1887
    %2648 = vmatpush1.bf16.msra.mxu0 %v1886
    %2649 = vmatprep.subr.bf16.mxu0 %v1889
    %2650 = vmatpush1.bf16.msra.mxu0 %v1888
    %2651 = vmatprep.subr.bf16.mxu0 %v1891
    %2652 = vmatpush1.bf16.msra.mxu0 %v1890
    %2653 = vmatprep.subr.bf16.mxu0 %v1893
    %2654 = vmatpush1.bf16.msra.mxu0 %v1892
    %2655 = vmatprep.subr.bf16.mxu0 %v1895
    %2656 = vmatpush1.bf16.msra.mxu0 %v1894
    %2657 = vmatprep.subr.bf16.mxu0 %v1897
    %2658 = vmatpush1.bf16.msra.mxu0 %v1896
    %2659 = vmatprep.subr.bf16.mxu0 %v1899
    %2660 = vmatpush1.bf16.msra.mxu0 %v1898
    %2661 = vmatprep.subr.bf16.mxu0 %v1901
    %2662 = vmatpush1.bf16.msra.mxu0 %v1900
    %2663 = vmatprep.subr.bf16.mxu0 0
    %2664 = vmatpush1.bf16.msra.mxu0 0
    %2665 = vmatprep.subr.bf16.mxu0 0
    %2666 = vmatpush1.bf16.msra.mxu0 0
    %2667 = vmatprep.subr.bf16.mxu0 0
    %2668 = vmatpush1.bf16.msra.mxu0 0
    %2669 = vmatprep.subr.bf16.mxu0 0
    %2670 = vmatpush1.bf16.msra.mxu0 0
    %2671 = vmatprep.subr.bf16.mxu0 0
    %2672 = vmatpush1.bf16.msra.mxu0 0
    %2673 = vmatprep.subr.bf16.mxu0 0
    %2674 = vmatpush1.bf16.msra.mxu0 0
    %2675 = vmatprep.subr.bf16.mxu0 0
    %2676 = vmatpush1.bf16.msra.mxu0 0
    %2677 = vmatprep.subr.bf16.mxu0 0
    %2678 = vmatpush1.bf16.msra.mxu0 0
    %2679 = vmatprep.mubr.bf16.mxu0 0
    %2680 = vmatmul.mubr.bf16.gmra.mrb[0].mxu0 %v1323
    %v2681 = vpop.f32.mrb[0].mxu0
    %v2682 = vadd.f32 %v1985, %v2681
    %v2683 = vpop.f32.mrb[0].mxu0
    %v2684 = vpop.f32.mrb[0].mxu0
    %v2685 = vadd.f32 %v1988, %v2684
    %v2686 = vpop.f32.mrb[0].mxu0
    %2687 = vmatprep.mubr.bf16.mxu0 0
    %2688 = vmatmul.mubr.bf16.gmra.mrb[0].mxu0 %v1560
    %v2689 = vpop.f32.mrb[0].mxu0
    %v2690 = vadd.f32 %v1993, %v2689
    %v2691 = vpop.f32.mrb[0].mxu0
    %v2692 = vpop.f32.mrb[0].mxu0
    %v2693 = vadd.f32 %v1996, %v2692
    %v2694 = vpop.f32.mrb[0].mxu0
    %2695 = vmatprep.mubr.bf16.mxu0 0
    %2696 = vmatmul.mubr.bf16.gmra.mrb[0].mxu0 %v1328
    %v2697 = vpop.f32.mrb[0].mxu0
    %v2698 = vadd.f32 %v2001, %v2697
    %v2699 = vpop.f32.mrb[0].mxu0
    %v2700 = vadd.f32 %v2003, %v2699
    %v2701 = vpop.f32.mrb[0].mxu0
    %v2702 = vadd.f32 %v2005, %v2701
    %v2703 = vpop.f32.mrb[0].mxu0
    %v2704 = vadd.f32 %v2007, %v2703
    %2705 = vmatprep.mubr.bf16.mxu0 0
    %2706 = vmatmul.mubr.bf16.gmra.mrb[0].mxu0 %v1561
    %v2707 = vpop.f32.mrb[0].mxu0
    %v2708 = vadd.f32 %v2011, %v2707
    %v2709 = vpop.f32.mrb[0].mxu0
    %v2710 = vadd.f32 %v2013, %v2709
    %v2711 = vpop.f32.mrb[0].mxu0
    %v2712 = vadd.f32 %v2015, %v2711
    %v2713 = vpop.f32.mrb[0].mxu0
    %v2714 = vadd.f32 %v2017, %v2713
    %2715 = vmatprep.mubr.bf16.mxu0 0
    %2716 = vmatmul.mubr.bf16.gmra.mrb[0].mxu0 %v1333
    %v2717 = vpop.f32.mrb[0].mxu0
    %v2718 = vadd.f32 %v2021, %v2717
    %v2719 = vpop.f32.mrb[0].mxu0
    %v2720 = vadd.f32 %v2023, %v2719
    %v2721 = vpop.f32.mrb[0].mxu0
    %v2722 = vadd.f32 %v2025, %v2721
    %v2723 = vpop.f32.mrb[0].mxu0
    %v2724 = vadd.f32 %v2027, %v2723
    %2725 = vmatprep.mubr.bf16.mxu0 0
    %2726 = vmatmul.mubr.bf16.gmra.mrb[0].mxu0 %v1562
    %v2727 = vpop.f32.mrb[0].mxu0
    %v2728 = vadd.f32 %v2031, %v2727
    %v2729 = vpop.f32.mrb[0].mxu0
    %v2730 = vadd.f32 %v2033, %v2729
    %v2731 = vpop.f32.mrb[0].mxu0
    %v2732 = vadd.f32 %v2035, %v2731
    %v2733 = vpop.f32.mrb[0].mxu0
    %v2734 = vadd.f32 %v2037, %v2733
    %2735 = vmatprep.mubr.bf16.mxu0 0
    %2736 = vmatmul.mubr.bf16.gmra.mrb[0].mxu0 %v1338
    %v2737 = vpop.f32.mrb[0].mxu0
    %v2738 = vadd.f32 %v2041, %v2737
    %v2739 = vpop.f32.mrb[0].mxu0
    %v2740 = vadd.f32 %v2043, %v2739
    %v2741 = vpop.f32.mrb[0].mxu0
    %v2742 = vadd.f32 %v2045, %v2741
    %v2743 = vpop.f32.mrb[0].mxu0
    %v2744 = vadd.f32 %v2047, %v2743
    %2745 = vmatprep.mubr.bf16.mxu0 0
    %2746 = vmatmul.mubr.bf16.gmra.mrb[0].mxu0 %v1563
    %v2747 = vpop.f32.mrb[0].mxu0
    %v2748 = vadd.f32 %v2051, %v2747
    %v2749 = vpop.f32.mrb[0].mxu0
    %v2750 = vadd.f32 %v2053, %v2749
    %v2751 = vpop.f32.mrb[0].mxu0
    %v2752 = vadd.f32 %v2055, %v2751
    %v2753 = vpop.f32.mrb[0].mxu0
    %v2754 = vadd.f32 %v2057, %v2753
    %2755 = vmatprep.mubr.bf16.mxu0 0
    %2756 = vmatmul.mubr.bf16.gmra.mrb[0].mxu0 %v1343
    %v2757 = vpop.f32.mrb[0].mxu0
    %v2758 = vadd.f32 %v2061, %v2757
    %v2759 = vpop.f32.mrb[0].mxu0
    %v2760 = vadd.f32 %v2063, %v2759
    %v2761 = vpop.f32.mrb[0].mxu0
    %v2762 = vadd.f32 %v2065, %v2761
    %v2763 = vpop.f32.mrb[0].mxu0
    %v2764 = vadd.f32 %v2067, %v2763
    %2765 = vmatprep.mubr.bf16.mxu0 0
    %2766 = vmatmul.mubr.bf16.gmra.mrb[0].mxu0 %v1564
    %v2767 = vpop.f32.mrb[0].mxu0
    %v2768 = vadd.f32 %v2071, %v2767
    %v2769 = vpop.f32.mrb[0].mxu0
    %v2770 = vadd.f32 %v2073, %v2769
    %v2771 = vpop.f32.mrb[0].mxu0
    %v2772 = vadd.f32 %v2075, %v2771
    %v2773 = vpop.f32.mrb[0].mxu0
    %v2774 = vadd.f32 %v2077, %v2773
    %2775 = vmatprep.mubr.bf16.mxu0 0
    %2776 = vmatmul.mubr.bf16.gmra.mrb[0].mxu0 %v1348
    %v2777 = vpop.f32.mrb[0].mxu0
    %v2778 = vadd.f32 %v2081, %v2777
    %v2779 = vpop.f32.mrb[0].mxu0
    %v2780 = vadd.f32 %v2083, %v2779
    %v2781 = vpop.f32.mrb[0].mxu0
    %v2782 = vadd.f32 %v2085, %v2781
    %v2783 = vpop.f32.mrb[0].mxu0
    %v2784 = vadd.f32 %v2087, %v2783
    %2785 = vmatprep.mubr.bf16.mxu0 0
    %2786 = vmatmul.mubr.bf16.gmra.mrb[0].mxu0 %v1565
    %v2787 = vpop.f32.mrb[0].mxu0
    %v2788 = vadd.f32 %v2091, %v2787
    %v2789 = vpop.f32.mrb[0].mxu0
    %v2790 = vadd.f32 %v2093, %v2789
    %v2791 = vpop.f32.mrb[0].mxu0
    %v2792 = vadd.f32 %v2095, %v2791
    %v2793 = vpop.f32.mrb[0].mxu0
    %v2794 = vadd.f32 %v2097, %v2793
    %2795 = vmatprep.mubr.bf16.mxu0 0
    %2796 = vmatmul.mubr.bf16.gmra.mrb[0].mxu0 %v1353
    %v2797 = vpop.f32.mrb[0].mxu0
    %v2798 = vadd.f32 %v2101, %v2797
    %v2799 = vpop.f32.mrb[0].mxu0
    %v2800 = vadd.f32 %v2103, %v2799
    %v2801 = vpop.f32.mrb[0].mxu0
    %v2802 = vadd.f32 %v2105, %v2801
    %v2803 = vpop.f32.mrb[0].mxu0
    %v2804 = vadd.f32 %v2107, %v2803
    %2805 = vmatprep.mubr.bf16.mxu0 0
    %2806 = vmatmul.mubr.bf16.gmra.mrb[0].mxu0 %v1566
    %v2807 = vpop.f32.mrb[0].mxu0
    %v2808 = vadd.f32 %v2111, %v2807
    %v2809 = vpop.f32.mrb[0].mxu0
    %v2810 = vadd.f32 %v2113, %v2809
    %v2811 = vpop.f32.mrb[0].mxu0
    %v2812 = vadd.f32 %v2115, %v2811
    %v2813 = vpop.f32.mrb[0].mxu0
    %v2814 = vadd.f32 %v2117, %v2813
    %2815 = vmatprep.mubr.bf16.mxu0 0
    %2816 = vmatmul.mubr.bf16.gmra.mrb[0].mxu0 %v1358
    %v2817 = vpop.f32.mrb[0].mxu0
    %v2818 = vadd.f32 %v2121, %v2817
    %v2819 = vpop.f32.mrb[0].mxu0
    %v2820 = vadd.f32 %v2123, %v2819
    %v2821 = vpop.f32.mrb[0].mxu0
    %v2822 = vadd.f32 %v2125, %v2821
    %v2823 = vpop.f32.mrb[0].mxu0
    %v2824 = vadd.f32 %v2127, %v2823
    %2825 = vmatprep.mubr.bf16.mxu0 0
    %2826 = vmatmul.mubr.bf16.gmra.mrb[0].mxu0 %v1567
    %v2827 = vpop.f32.mrb[0].mxu0
    %v2828 = vadd.f32 %v2131, %v2827
    %v2829 = vpop.f32.mrb[0].mxu0
    %v2830 = vadd.f32 %v2133, %v2829
    %v2831 = vpop.f32.mrb[0].mxu0
    %v2832 = vadd.f32 %v2135, %v2831
    %v2833 = vpop.f32.mrb[0].mxu0
    %v2834 = vadd.f32 %v2137, %v2833
    %2835 = vmatprep.mubr.bf16.mxu0 0
    %2836 = vmatmul.mubr.bf16.gmra.mrb[0].mxu0 %v1363
    %v2837 = vpop.f32.mrb[0].mxu0
    %v2838 = vadd.f32 %v2141, %v2837
    %v2839 = vpop.f32.mrb[0].mxu0
    %v2840 = vadd.f32 %v2143, %v2839
    %v2841 = vpop.f32.mrb[0].mxu0
    %v2842 = vadd.f32 %v2145, %v2841
    %v2843 = vpop.f32.mrb[0].mxu0
    %v2844 = vadd.f32 %v2147, %v2843
    %2845 = vmatprep.mubr.bf16.mxu0 0
    %2846 = vmatmul.mubr.bf16.gmra.mrb[0].mxu0 %v1568
    %v2847 = vpop.f32.mrb[0].mxu0
    %v2848 = vadd.f32 %v2151, %v2847
    %v2849 = vpop.f32.mrb[0].mxu0
    %v2850 = vadd.f32 %v2153, %v2849
    %v2851 = vpop.f32.mrb[0].mxu0
    %v2852 = vadd.f32 %v2155, %v2851
    %v2853 = vpop.f32.mrb[0].mxu0
    %v2854 = vadd.f32 %v2157, %v2853
    %2855 = vmatprep.mubr.bf16.mxu0 0
    %2856 = vmatmul.mubr.bf16.gmra.mrb[0].mxu0 %v1368
    %v2857 = vpop.f32.mrb[0].mxu0
    %v2858 = vadd.f32 %v2161, %v2857
    %v2859 = vpop.f32.mrb[0].mxu0
    %v2860 = vadd.f32 %v2163, %v2859
    %v2861 = vpop.f32.mrb[0].mxu0
    %v2862 = vadd.f32 %v2165, %v2861
    %v2863 = vpop.f32.mrb[0].mxu0
    %v2864 = vadd.f32 %v2167, %v2863
    %2865 = vmatprep.mubr.bf16.mxu0 0
    %2866 = vmatmul.mubr.bf16.gmra.mrb[0].mxu0 %v1569
    %v2867 = vpop.f32.mrb[0].mxu0
    %v2868 = vadd.f32 %v2171, %v2867
    %v2869 = vpop.f32.mrb[0].mxu0
    %v2870 = vadd.f32 %v2173, %v2869
    %v2871 = vpop.f32.mrb[0].mxu0
    %v2872 = vadd.f32 %v2175, %v2871
    %v2873 = vpop.f32.mrb[0].mxu0
    %v2874 = vadd.f32 %v2177, %v2873
    %2875 = vmatprep.mubr.bf16.mxu0 0
    %2876 = vmatmul.mubr.bf16.gmra.mrb[0].mxu0 %v1373
    %v2877 = vpop.f32.mrb[0].mxu0
    %v2878 = vadd.f32 %v2181, %v2877
    %v2879 = vpop.f32.mrb[0].mxu0
    %v2880 = vadd.f32 %v2183, %v2879
    %v2881 = vpop.f32.mrb[0].mxu0
    %v2882 = vadd.f32 %v2185, %v2881
    %v2883 = vpop.f32.mrb[0].mxu0
    %v2884 = vadd.f32 %v2187, %v2883
    %2885 = vmatprep.mubr.bf16.mxu0 0
    %2886 = vmatmul.mubr.bf16.gmra.mrb[0].mxu0 %v1570
    %v2887 = vpop.f32.mrb[0].mxu0
    %v2888 = vadd.f32 %v2191, %v2887
    %v2889 = vpop.f32.mrb[0].mxu0
    %v2890 = vadd.f32 %v2193, %v2889
    %v2891 = vpop.f32.mrb[0].mxu0
    %v2892 = vadd.f32 %v2195, %v2891
    %v2893 = vpop.f32.mrb[0].mxu0
    %v2894 = vadd.f32 %v2197, %v2893
    %2895 = vmatprep.mubr.bf16.mxu0 0
    %2896 = vmatmul.mubr.bf16.gmra.mrb[0].mxu0 %v1378
    %v2897 = vpop.f32.mrb[0].mxu0
    %v2898 = vadd.f32 %v2201, %v2897
    %v2899 = vpop.f32.mrb[0].mxu0
    %v2900 = vadd.f32 %v2203, %v2899
    %v2901 = vpop.f32.mrb[0].mxu0
    %v2902 = vadd.f32 %v2205, %v2901
    %v2903 = vpop.f32.mrb[0].mxu0
    %v2904 = vadd.f32 %v2207, %v2903
    %2905 = vmatprep.mubr.bf16.mxu0 0
    %2906 = vmatmul.mubr.bf16.gmra.mrb[0].mxu0 %v1571
    %v2907 = vpop.f32.mrb[0].mxu0
    %v2908 = vadd.f32 %v2211, %v2907
    %v2909 = vpop.f32.mrb[0].mxu0
    %v2910 = vadd.f32 %v2213, %v2909
    %v2911 = vpop.f32.mrb[0].mxu0
    %v2912 = vadd.f32 %v2215, %v2911
    %v2913 = vpop.f32.mrb[0].mxu0
    %v2914 = vadd.f32 %v2217, %v2913
    %2915 = vmatprep.mubr.bf16.mxu0 0
    %2916 = vmatmul.mubr.bf16.gmra.mrb[0].mxu0 %v1383
    %v2917 = vpop.f32.mrb[0].mxu0
    %v2918 = vadd.f32 %v2221, %v2917
    %v2919 = vpop.f32.mrb[0].mxu0
    %v2920 = vadd.f32 %v2223, %v2919
    %v2921 = vpop.f32.mrb[0].mxu0
    %v2922 = vadd.f32 %v2225, %v2921
    %v2923 = vpop.f32.mrb[0].mxu0
    %v2924 = vadd.f32 %v2227, %v2923
    %2925 = vmatprep.mubr.bf16.mxu0 0
    %2926 = vmatmul.mubr.bf16.gmra.mrb[0].mxu0 %v1572
    %v2927 = vpop.f32.mrb[0].mxu0
    %v2928 = vadd.f32 %v2231, %v2927
    %v2929 = vpop.f32.mrb[0].mxu0
    %v2930 = vadd.f32 %v2233, %v2929
    %v2931 = vpop.f32.mrb[0].mxu0
    %v2932 = vadd.f32 %v2235, %v2931
    %v2933 = vpop.f32.mrb[0].mxu0
    %v2934 = vadd.f32 %v2237, %v2933
    %2935 = vmatprep.mubr.bf16.mxu0 0
    %2936 = vmatmul.mubr.bf16.gmra.mrb[0].mxu0 %v1388
    %v2937 = vpop.f32.mrb[0].mxu0
    %v2938 = vadd.f32 %v2241, %v2937
    %v2939 = vpop.f32.mrb[0].mxu0
    %v2940 = vadd.f32 %v2243, %v2939
    %v2941 = vpop.f32.mrb[0].mxu0
    %v2942 = vadd.f32 %v2245, %v2941
    %v2943 = vpop.f32.mrb[0].mxu0
    %v2944 = vadd.f32 %v2247, %v2943
    %2945 = vmatprep.mubr.bf16.mxu0 0
    %2946 = vmatmul.mubr.bf16.gmra.mrb[0].mxu0 %v1573
    %v2947 = vpop.f32.mrb[0].mxu0
    %v2948 = vadd.f32 %v2251, %v2947
    %v2949 = vpop.f32.mrb[0].mxu0
    %v2950 = vadd.f32 %v2253, %v2949
    %v2951 = vpop.f32.mrb[0].mxu0
    %v2952 = vadd.f32 %v2255, %v2951
    %v2953 = vpop.f32.mrb[0].mxu0
    %v2954 = vadd.f32 %v2257, %v2953
    %2955 = vmatprep.mubr.bf16.mxu0 0
    %2956 = vmatmul.mubr.bf16.gmra.mrb[0].mxu0 %v1393
    %v2957 = vpop.f32.mrb[0].mxu0
    %v2958 = vadd.f32 %v2261, %v2957
    %v2959 = vpop.f32.mrb[0].mxu0
    %v2960 = vadd.f32 %v2263, %v2959
    %v2961 = vpop.f32.mrb[0].mxu0
    %v2962 = vadd.f32 %v2265, %v2961
    %v2963 = vpop.f32.mrb[0].mxu0
    %v2964 = vadd.f32 %v2267, %v2963
    %2965 = vmatprep.mubr.bf16.mxu0 0
    %2966 = vmatmul.mubr.bf16.gmra.mrb[0].mxu0 %v1574
    %v2967 = vpop.f32.mrb[0].mxu0
    %v2968 = vadd.f32 %v2271, %v2967
    %v2969 = vpop.f32.mrb[0].mxu0
    %v2970 = vadd.f32 %v2273, %v2969
    %v2971 = vpop.f32.mrb[0].mxu0
    %v2972 = vadd.f32 %v2275, %v2971
    %v2973 = vpop.f32.mrb[0].mxu0
    %v2974 = vadd.f32 %v2277, %v2973
    %2975 = vmatprep.mubr.bf16.mxu0 0
    %2976 = vmatmul.mubr.bf16.gmra.mrb[0].mxu0 %v1398
    %v2977 = vpop.f32.mrb[0].mxu0
    %v2978 = vadd.f32 %v2281, %v2977
    %v2979 = vpop.f32.mrb[0].mxu0
    %v2980 = vadd.f32 %v2283, %v2979
    %v2981 = vpop.f32.mrb[0].mxu0
    %v2982 = vadd.f32 %v2285, %v2981
    %v2983 = vpop.f32.mrb[0].mxu0
    %v2984 = vadd.f32 %v2287, %v2983
    %2985 = vmatprep.mubr.bf16.mxu0 0
    %2986 = vmatmul.mubr.bf16.gmra.mrb[0].mxu0 %v1575
    %v2987 = vpop.f32.mrb[0].mxu0
    %v2988 = vadd.f32 %v2291, %v2987
    %v2989 = vpop.f32.mrb[0].mxu0
    %v2990 = vadd.f32 %v2293, %v2989
    %v2991 = vpop.f32.mrb[0].mxu0
    %v2992 = vadd.f32 %v2295, %v2991
    %v2993 = vpop.f32.mrb[0].mxu0
    %v2994 = vadd.f32 %v2297, %v2993
    %2995 = vmatprep.mubr.bf16.mxu0 0
    %2996 = vmatmul.mubr.bf16.gmra.mrb[0].mxu0 %v1403
    %v2997 = vpop.f32.mrb[0].mxu0
    %v2998 = vadd.f32 %v2301, %v2997
    %v2999 = vpop.f32.mrb[0].mxu0
    %v3000 = vadd.f32 %v2303, %v2999
    %v3001 = vpop.f32.mrb[0].mxu0
    %v3002 = vadd.f32 %v2305, %v3001
    %v3003 = vpop.f32.mrb[0].mxu0
    %v3004 = vadd.f32 %v2307, %v3003
    %3005 = vmatprep.mubr.bf16.mxu0 0
    %3006 = vmatmul.mubr.bf16.gmra.mrb[0].mxu0 %v1576
    %v3007 = vpop.f32.mrb[0].mxu0
    %v3008 = vadd.f32 %v2311, %v3007
    %v3009 = vpop.f32.mrb[0].mxu0
    %v3010 = vadd.f32 %v2313, %v3009
    %v3011 = vpop.f32.mrb[0].mxu0
    %v3012 = vadd.f32 %v2315, %v3011
    %v3013 = vpop.f32.mrb[0].mxu0
    %v3014 = vadd.f32 %v2317, %v3013
    %3015 = vmatprep.mubr.bf16.mxu0 0
    %3016 = vmatmul.mubr.bf16.gmra.mrb[0].mxu0 %v1408
    %v3017 = vpop.f32.mrb[0].mxu0
    %v3018 = vadd.f32 %v2321, %v3017
    %v3019 = vpop.f32.mrb[0].mxu0
    %v3020 = vadd.f32 %v2323, %v3019
    %v3021 = vpop.f32.mrb[0].mxu0
    %v3022 = vadd.f32 %v2325, %v3021
    %v3023 = vpop.f32.mrb[0].mxu0
    %v3024 = vadd.f32 %v2327, %v3023
    %3025 = vmatprep.mubr.bf16.mxu0 0
    %3026 = vmatmul.mubr.bf16.gmra.mrb[0].mxu0 %v1577
    %v3027 = vpop.f32.mrb[0].mxu0
    %v3028 = vadd.f32 %v2331, %v3027
    %v3029 = vpop.f32.mrb[0].mxu0
    %v3030 = vadd.f32 %v2333, %v3029
    %v3031 = vpop.f32.mrb[0].mxu0
    %v3032 = vadd.f32 %v2335, %v3031
    %v3033 = vpop.f32.mrb[0].mxu0
    %v3034 = vadd.f32 %v2337, %v3033
    %3035 = vmatprep.mubr.bf16.mxu0 0
    %3036 = vmatmul.mubr.bf16.gmra.mrb[0].mxu0 %v1413
    %v3037 = vpop.f32.mrb[0].mxu0
    %v3038 = vadd.f32 %v2341, %v3037
    %v3039 = vpop.f32.mrb[0].mxu0
    %v3040 = vadd.f32 %v2343, %v3039
    %v3041 = vpop.f32.mrb[0].mxu0
    %v3042 = vadd.f32 %v2345, %v3041
    %v3043 = vpop.f32.mrb[0].mxu0
    %v3044 = vadd.f32 %v2347, %v3043
    %3045 = vmatprep.mubr.bf16.mxu0 0
    %3046 = vmatmul.mubr.bf16.gmra.mrb[0].mxu0 %v1578
    %v3047 = vpop.f32.mrb[0].mxu0
    %v3048 = vadd.f32 %v2351, %v3047
    %v3049 = vpop.f32.mrb[0].mxu0
    %v3050 = vadd.f32 %v2353, %v3049
    %v3051 = vpop.f32.mrb[0].mxu0
    %v3052 = vadd.f32 %v2355, %v3051
    %v3053 = vpop.f32.mrb[0].mxu0
    %v3054 = vadd.f32 %v2357, %v3053
    %3055 = vmatprep.mubr.bf16.mxu0 0
    %3056 = vmatmul.mubr.bf16.gmra.mrb[0].mxu0 %v1418
    %v3057 = vpop.f32.mrb[0].mxu0
    %v3058 = vadd.f32 %v2361, %v3057
    %v3059 = vpop.f32.mrb[0].mxu0
    %v3060 = vadd.f32 %v2363, %v3059
    %v3061 = vpop.f32.mrb[0].mxu0
    %v3062 = vadd.f32 %v2365, %v3061
    %v3063 = vpop.f32.mrb[0].mxu0
    %v3064 = vadd.f32 %v2367, %v3063
    %3065 = vmatprep.mubr.bf16.mxu0 0
    %3066 = vmatmul.mubr.bf16.gmra.mrb[0].mxu0 %v1579
    %v3067 = vpop.f32.mrb[0].mxu0
    %v3068 = vadd.f32 %v2371, %v3067
    %v3069 = vpop.f32.mrb[0].mxu0
    %v3070 = vadd.f32 %v2373, %v3069
    %v3071 = vpop.f32.mrb[0].mxu0
    %v3072 = vadd.f32 %v2375, %v3071
    %v3073 = vpop.f32.mrb[0].mxu0
    %v3074 = vadd.f32 %v2377, %v3073
    %3075 = vmatprep.mubr.bf16.mxu0 0
    %3076 = vmatmul.mubr.bf16.gmra.mrb[0].mxu0 %v1423
    %v3077 = vpop.f32.mrb[0].mxu0
    %v3078 = vadd.f32 %v2381, %v3077
    %v3079 = vpop.f32.mrb[0].mxu0
    %v3080 = vadd.f32 %v2383, %v3079
    %v3081 = vpop.f32.mrb[0].mxu0
    %v3082 = vadd.f32 %v2385, %v3081
    %v3083 = vpop.f32.mrb[0].mxu0
    %v3084 = vadd.f32 %v2387, %v3083
    %3085 = vmatprep.mubr.bf16.mxu0 0
    %3086 = vmatmul.mubr.bf16.gmra.mrb[0].mxu0 %v1580
    %v3087 = vpop.f32.mrb[0].mxu0
    %v3088 = vadd.f32 %v2391, %v3087
    %v3089 = vpop.f32.mrb[0].mxu0
    %v3090 = vadd.f32 %v2393, %v3089
    %v3091 = vpop.f32.mrb[0].mxu0
    %v3092 = vadd.f32 %v2395, %v3091
    %v3093 = vpop.f32.mrb[0].mxu0
    %v3094 = vadd.f32 %v2397, %v3093
    %3095 = vmatprep.mubr.bf16.mxu0 0
    %3096 = vmatmul.mubr.bf16.gmra.mrb[0].mxu0 %v1428
    %v3097 = vpop.f32.mrb[0].mxu0
    %v3098 = vadd.f32 %v2401, %v3097
    %v3099 = vpop.f32.mrb[0].mxu0
    %v3100 = vadd.f32 %v2403, %v3099
    %v3101 = vpop.f32.mrb[0].mxu0
    %v3102 = vadd.f32 %v2405, %v3101
    %v3103 = vpop.f32.mrb[0].mxu0
    %v3104 = vadd.f32 %v2407, %v3103
    %3105 = vmatprep.mubr.bf16.mxu0 0
    %3106 = vmatmul.mubr.bf16.gmra.mrb[0].mxu0 %v1581
    %v3107 = vpop.f32.mrb[0].mxu0
    %v3108 = vadd.f32 %v2411, %v3107
    %v3109 = vpop.f32.mrb[0].mxu0
    %v3110 = vadd.f32 %v2413, %v3109
    %v3111 = vpop.f32.mrb[0].mxu0
    %v3112 = vadd.f32 %v2415, %v3111
    %v3113 = vpop.f32.mrb[0].mxu0
    %v3114 = vadd.f32 %v2417, %v3113
    %3115 = vmatprep.mubr.bf16.mxu0 0
    %3116 = vmatmul.mubr.bf16.gmra.mrb[0].mxu0 %v1433
    %v3117 = vpop.f32.mrb[0].mxu0
    %v3118 = vadd.f32 %v2421, %v3117
    %v3119 = vpop.f32.mrb[0].mxu0
    %v3120 = vadd.f32 %v2423, %v3119
    %v3121 = vpop.f32.mrb[0].mxu0
    %v3122 = vadd.f32 %v2425, %v3121
    %v3123 = vpop.f32.mrb[0].mxu0
    %v3124 = vadd.f32 %v2427, %v3123
    %3125 = vmatprep.mubr.bf16.mxu0 0
    %3126 = vmatmul.mubr.bf16.gmra.mrb[0].mxu0 %v1582
    %v3127 = vpop.f32.mrb[0].mxu0
    %v3128 = vadd.f32 %v2431, %v3127
    %v3129 = vpop.f32.mrb[0].mxu0
    %v3130 = vadd.f32 %v2433, %v3129
    %v3131 = vpop.f32.mrb[0].mxu0
    %v3132 = vadd.f32 %v2435, %v3131
    %v3133 = vpop.f32.mrb[0].mxu0
    %v3134 = vadd.f32 %v2437, %v3133
    %3135 = vmatprep.mubr.bf16.mxu0 0
    %3136 = vmatmul.mubr.bf16.gmra.mrb[0].mxu0 %v1438
    %v3137 = vpop.f32.mrb[0].mxu0
    %v3138 = vadd.f32 %v2441, %v3137
    %v3139 = vpop.f32.mrb[0].mxu0
    %v3140 = vadd.f32 %v2443, %v3139
    %v3141 = vpop.f32.mrb[0].mxu0
    %v3142 = vadd.f32 %v2445, %v3141
    %v3143 = vpop.f32.mrb[0].mxu0
    %v3144 = vadd.f32 %v2447, %v3143
    %3145 = vmatprep.mubr.bf16.mxu0 0
    %3146 = vmatmul.mubr.bf16.gmra.mrb[0].mxu0 %v1583
    %v3147 = vpop.f32.mrb[0].mxu0
    %v3148 = vadd.f32 %v2451, %v3147
    %v3149 = vpop.f32.mrb[0].mxu0
    %v3150 = vadd.f32 %v2453, %v3149
    %v3151 = vpop.f32.mrb[0].mxu0
    %v3152 = vadd.f32 %v2455, %v3151
    %v3153 = vpop.f32.mrb[0].mxu0
    %v3154 = vadd.f32 %v2457, %v3153
    %3155 = vmatprep.mubr.bf16.mxu0 0
    %3156 = vmatmul.mubr.bf16.gmra.mrb[0].mxu0 %v1443
    %v3157 = vpop.f32.mrb[0].mxu0
    %v3158 = vadd.f32 %v2461, %v3157
    %v3159 = vpop.f32.mrb[0].mxu0
    %v3160 = vadd.f32 %v2463, %v3159
    %v3161 = vpop.f32.mrb[0].mxu0
    %v3162 = vadd.f32 %v2465, %v3161
    %v3163 = vpop.f32.mrb[0].mxu0
    %v3164 = vadd.f32 %v2467, %v3163
    %3165 = vmatprep.mubr.bf16.mxu0 0
    %3166 = vmatmul.mubr.bf16.gmra.mrb[0].mxu0 %v1584
    %v3167 = vpop.f32.mrb[0].mxu0
    %v3168 = vadd.f32 %v2471, %v3167
    %v3169 = vpop.f32.mrb[0].mxu0
    %v3170 = vadd.f32 %v2473, %v3169
    %v3171 = vpop.f32.mrb[0].mxu0
    %v3172 = vadd.f32 %v2475, %v3171
    %v3173 = vpop.f32.mrb[0].mxu0
    %v3174 = vadd.f32 %v2477, %v3173
    %3175 = vmatprep.mubr.bf16.mxu0 0
    %3176 = vmatmul.mubr.bf16.gmra.mrb[0].mxu0 %v1448
    %v3177 = vpop.f32.mrb[0].mxu0
    %v3178 = vadd.f32 %v2481, %v3177
    %v3179 = vpop.f32.mrb[0].mxu0
    %v3180 = vadd.f32 %v2483, %v3179
    %v3181 = vpop.f32.mrb[0].mxu0
    %v3182 = vadd.f32 %v2485, %v3181
    %v3183 = vpop.f32.mrb[0].mxu0
    %v3184 = vadd.f32 %v2487, %v3183
    %3185 = vmatprep.mubr.bf16.mxu0 0
    %3186 = vmatmul.mubr.bf16.gmra.mrb[0].mxu0 %v1585
    %v3187 = vpop.f32.mrb[0].mxu0
    %v3188 = vadd.f32 %v2491, %v3187
    %v3189 = vpop.f32.mrb[0].mxu0
    %v3190 = vadd.f32 %v2493, %v3189
    %v3191 = vpop.f32.mrb[0].mxu0
    %v3192 = vadd.f32 %v2495, %v3191
    %v3193 = vpop.f32.mrb[0].mxu0
    %v3194 = vadd.f32 %v2497, %v3193
    %3195 = vmatprep.mubr.bf16.mxu0 0
    %3196 = vmatmul.mubr.bf16.gmra.mrb[0].mxu0 %v1453
    %v3197 = vpop.f32.mrb[0].mxu0
    %v3198 = vadd.f32 %v2501, %v3197
    %v3199 = vpop.f32.mrb[0].mxu0
    %v3200 = vadd.f32 %v2503, %v3199
    %v3201 = vpop.f32.mrb[0].mxu0
    %v3202 = vadd.f32 %v2505, %v3201
    %v3203 = vpop.f32.mrb[0].mxu0
    %v3204 = vadd.f32 %v2507, %v3203
    %3205 = vmatprep.mubr.bf16.mxu0 0
    %3206 = vmatmul.mubr.bf16.gmra.mrb[0].mxu0 %v1586
    %v3207 = vpop.f32.mrb[0].mxu0
    %v3208 = vadd.f32 %v2511, %v3207
    %v3209 = vpop.f32.mrb[0].mxu0
    %v3210 = vadd.f32 %v2513, %v3209
    %v3211 = vpop.f32.mrb[0].mxu0
    %v3212 = vadd.f32 %v2515, %v3211
    %v3213 = vpop.f32.mrb[0].mxu0
    %v3214 = vadd.f32 %v2517, %v3213
    %3215 = vmatprep.mubr.bf16.mxu0 0
    %3216 = vmatmul.mubr.bf16.gmra.mrb[0].mxu0 %v1458
    %v3217 = vpop.f32.mrb[0].mxu0
    %v3218 = vadd.f32 %v2521, %v3217
    %v3219 = vpop.f32.mrb[0].mxu0
    %v3220 = vadd.f32 %v2523, %v3219
    %v3221 = vpop.f32.mrb[0].mxu0
    %v3222 = vadd.f32 %v2525, %v3221
    %v3223 = vpop.f32.mrb[0].mxu0
    %v3224 = vadd.f32 %v2527, %v3223
    %3225 = vmatprep.mubr.bf16.mxu0 0
    %3226 = vmatmul.mubr.bf16.gmra.mrb[0].mxu0 %v1587
    %v3227 = vpop.f32.mrb[0].mxu0
    %v3228 = vadd.f32 %v2531, %v3227
    %v3229 = vpop.f32.mrb[0].mxu0
    %v3230 = vadd.f32 %v2533, %v3229
    %v3231 = vpop.f32.mrb[0].mxu0
    %v3232 = vadd.f32 %v2535, %v3231
    %v3233 = vpop.f32.mrb[0].mxu0
    %v3234 = vadd.f32 %v2537, %v3233
    %3235 = vmatprep.mubr.bf16.mxu0 0
    %3236 = vmatmul.mubr.bf16.gmra.mrb[0].mxu0 %v1463
    %v3237 = vpop.f32.mrb[0].mxu0
    %v3238 = vadd.f32 %v2541, %v3237
    %v3239 = vpop.f32.mrb[0].mxu0
    %v3240 = vadd.f32 %v2543, %v3239
    %v3241 = vpop.f32.mrb[0].mxu0
    %v3242 = vadd.f32 %v2545, %v3241
    %v3243 = vpop.f32.mrb[0].mxu0
    %v3244 = vadd.f32 %v2547, %v3243
    %3245 = vmatprep.mubr.bf16.mxu0 0
    %3246 = vmatmul.mubr.bf16.gmra.mrb[0].mxu0 %v1588
    %v3247 = vpop.f32.mrb[0].mxu0
    %v3248 = vadd.f32 %v2551, %v3247
    %v3249 = vpop.f32.mrb[0].mxu0
    %v3250 = vadd.f32 %v2553, %v3249
    %v3251 = vpop.f32.mrb[0].mxu0
    %v3252 = vadd.f32 %v2555, %v3251
    %v3253 = vpop.f32.mrb[0].mxu0
    %v3254 = vadd.f32 %v2557, %v3253
    %3255 = vmatprep.mubr.bf16.mxu0 0
    %3256 = vmatmul.mubr.bf16.gmra.mrb[0].mxu0 %v1468
    %v3257 = vpop.f32.mrb[0].mxu0
    %v3258 = vadd.f32 %v2561, %v3257
    %v3259 = vpop.f32.mrb[0].mxu0
    %v3260 = vadd.f32 %v2563, %v3259
    %v3261 = vpop.f32.mrb[0].mxu0
    %v3262 = vadd.f32 %v2565, %v3261
    %v3263 = vpop.f32.mrb[0].mxu0
    %v3264 = vadd.f32 %v2567, %v3263
    %3265 = vmatprep.mubr.bf16.mxu0 0
    %3266 = vmatmul.mubr.bf16.gmra.mrb[0].mxu0 %v1589
    %v3267 = vpop.f32.mrb[0].mxu0
    %v3268 = vadd.f32 %v2571, %v3267
    %v3269 = vpop.f32.mrb[0].mxu0
    %v3270 = vadd.f32 %v2573, %v3269
    %v3271 = vpop.f32.mrb[0].mxu0
    %v3272 = vadd.f32 %v2575, %v3271
    %v3273 = vpop.f32.mrb[0].mxu0
    %v3274 = vadd.f32 %v2577, %v3273
    %3275 = vmatprep.mubr.bf16.mxu0 0
    %3276 = vmatmul.mubr.bf16.gmra.mrb[0].mxu0 %v1473
    %v3277 = vpop.f32.mrb[0].mxu0
    %v3278 = vadd.f32 %v2581, %v3277
    %v3279 = vpop.f32.mrb[0].mxu0
    %v3280 = vadd.f32 %v2583, %v3279
    %v3281 = vpop.f32.mrb[0].mxu0
    %v3282 = vadd.f32 %v2585, %v3281
    %v3283 = vpop.f32.mrb[0].mxu0
    %v3284 = vadd.f32 %v2587, %v3283
    %3285 = vmatprep.mubr.bf16.mxu0 0
    %3286 = vmatmul.mubr.bf16.gmra.mrb[0].mxu0 %v1590
    %v3287 = vpop.f32.mrb[0].mxu0
    %v3288 = vadd.f32 %v2591, %v3287
    %v3289 = vpop.f32.mrb[0].mxu0
    %v3290 = vadd.f32 %v2593, %v3289
    %v3291 = vpop.f32.mrb[0].mxu0
    %v3292 = vadd.f32 %v2595, %v3291
    %v3293 = vpop.f32.mrb[0].mxu0
    %v3294 = vadd.f32 %v2597, %v3293
    %3295 = vmatprep.mubr.bf16.mxu0 0
    %3296 = vmatmul.mubr.bf16.gmra.mrb[0].mxu0 %v1478
    %v3297 = vpop.f32.mrb[0].mxu0
    %v3298 = vadd.f32 %v2601, %v3297
    %v3299 = vpop.f32.mrb[0].mxu0
    %v3300 = vadd.f32 %v2603, %v3299
    %v3301 = vpop.f32.mrb[0].mxu0
    %v3302 = vadd.f32 %v2605, %v3301
    %v3303 = vpop.f32.mrb[0].mxu0
    %v3304 = vadd.f32 %v2607, %v3303
    %3305 = vmatprep.mubr.bf16.mxu0 0
    %3306 = vmatmul.mubr.bf16.gmra.mrb[0].mxu0 %v1591
    %v3307 = vpop.f32.mrb[0].mxu0
    %v3308 = vadd.f32 %v2611, %v3307
    %v3309 = vpop.f32.mrb[0].mxu0
    %v3310 = vadd.f32 %v2613, %v3309
    %v3311 = vpop.f32.mrb[0].mxu0
    %v3312 = vadd.f32 %v2615, %v3311
    %v3313 = vpop.f32.mrb[0].mxu0
    %v3314 = vadd.f32 %v2617, %v3313
    %3315 = vmatprep.mubr.bf16.mxu0 0
    %3316 = vmatmul.mubr.bf16.gmra.mrb[0].mxu0 %v1483
    %v3317 = vpop.f32.mrb[0].mxu0
    %v3318 = vpop.f32.mrb[0].mxu0
    %v3319 = vadd.f32 %v2622, %v3318
    %v3320 = vpop.f32.mrb[0].mxu0
    %v3321 = vpop.f32.mrb[0].mxu0
    %v3322 = vadd.f32 %v2625, %v3321
    %3323 = vmatprep.mubr.bf16.mxu0 0
    %3324 = vmatmul.mubr.bf16.gmra.mrb[0].mxu0 %v1592
    %v3325 = vpop.f32.mrb[0].mxu0
    %v3326 = vpop.f32.mrb[0].mxu0
    %v3327 = vadd.f32 %v2630, %v3326
    %v3328 = vpop.f32.mrb[0].mxu0
    %v3329 = vpop.f32.mrb[0].mxu0
    %v3330 = vadd.f32 %v2633, %v3329
    %3331 = vmatprep.mubr.bf16.mxu0 0
    %3332 = vmatmul.mubr.bf16.gmra.mrb[0].mxu0 %v1488
    %v3333 = vpop.f32.mrb[0].mxu0
    %v3334 = vpop.f32.mrb[0].mxu0
    %v3335 = vpop.f32.mrb[0].mxu0
    %v3336 = vpop.f32.mrb[0].mxu0
    %3337 = vmatprep.mubr.bf16.mxu0 0
    %3338 = vmatmul.mubr.bf16.gmra.mrb[0].mxu0 %v1593
    %v3339 = vpop.f32.mrb[0].mxu0
    %v3340 = vpop.f32.mrb[0].mxu0
    %v3341 = vpop.f32.mrb[0].mxu0
    %v3342 = vpop.f32.mrb[0].mxu0
    %3343 = vdwg.mxu0
    %v3344 = vadd.f32 %v2682, %v2700
    %v3345 = vadd.f32 %v2685, %v2704
    %v3346 = vadd.f32 %v2690, %v2710
    %v3347 = vadd.f32 %v2693, %v2714
    %v3348 = vadd.f32 %v2698, %v2720
    %v3349 = vadd.f32 %v2702, %v2724
    %v3350 = vadd.f32 %v2708, %v2730
    %v3351 = vadd.f32 %v2712, %v2734
    %v3352 = vadd.f32 %v2718, %v2740
    %v3353 = vadd.f32 %v2722, %v2744
    %v3354 = vadd.f32 %v2728, %v2750
    %v3355 = vadd.f32 %v2732, %v2754
    %v3356 = vadd.f32 %v2738, %v2760
    %v3357 = vadd.f32 %v2742, %v2764
    %v3358 = vadd.f32 %v2748, %v2770
    %v3359 = vadd.f32 %v2752, %v2774
    %v3360 = vadd.f32 %v2758, %v2780
    %v3361 = vadd.f32 %v2762, %v2784
    %v3362 = vadd.f32 %v2768, %v2790
    %v3363 = vadd.f32 %v2772, %v2794
    %v3364 = vadd.f32 %v2778, %v2800
    %v3365 = vadd.f32 %v2782, %v2804
    %v3366 = vadd.f32 %v2788, %v2810
    %v3367 = vadd.f32 %v2792, %v2814
    %v3368 = vadd.f32 %v2798, %v2820
    %v3369 = vadd.f32 %v2802, %v2824
    %v3370 = vadd.f32 %v2808, %v2830
    %v3371 = vadd.f32 %v2812, %v2834
    %v3372 = vadd.f32 %v2818, %v2840
    %v3373 = vadd.f32 %v2822, %v2844
    %v3374 = vadd.f32 %v2828, %v2850
    %v3375 = vadd.f32 %v2832, %v2854
    %v3376 = vadd.f32 %v2838, %v2860
    %v3377 = vadd.f32 %v2842, %v2864
    %v3378 = vadd.f32 %v2848, %v2870
    %v3379 = vadd.f32 %v2852, %v2874
    %v3380 = vadd.f32 %v2858, %v2880
    %v3381 = vadd.f32 %v2862, %v2884
    %v3382 = vadd.f32 %v2868, %v2890
    %v3383 = vadd.f32 %v2872, %v2894
    %v3384 = vadd.f32 %v2878, %v2900
    %v3385 = vadd.f32 %v2882, %v2904
    %v3386 = vadd.f32 %v2888, %v2910
    %v3387 = vadd.f32 %v2892, %v2914
    %v3388 = vadd.f32 %v2898, %v2920
    %v3389 = vadd.f32 %v2902, %v2924
    %v3390 = vadd.f32 %v2908, %v2930
    %v3391 = vadd.f32 %v2912, %v2934
    %v3392 = vadd.f32 %v2918, %v2940
    %v3393 = vadd.f32 %v2922, %v2944
    %v3394 = vadd.f32 %v2928, %v2950
    %v3395 = vadd.f32 %v2932, %v2954
    %v3396 = vadd.f32 %v2938, %v2960
    %v3397 = vadd.f32 %v2942, %v2964
    %v3398 = vadd.f32 %v2948, %v2970
    %v3399 = vadd.f32 %v2952, %v2974
    %v3400 = vadd.f32 %v2958, %v2980
    %v3401 = vadd.f32 %v2962, %v2984
    %v3402 = vadd.f32 %v2968, %v2990
    %v3403 = vadd.f32 %v2972, %v2994
    %v3404 = vadd.f32 %v2978, %v3000
    %v3405 = vadd.f32 %v2982, %v3004
    %v3406 = vadd.f32 %v2988, %v3010
    %v3407 = vadd.f32 %v2992, %v3014
    %v3408 = vadd.f32 %v2998, %v3020
    %v3409 = vadd.f32 %v3002, %v3024
    %v3410 = vadd.f32 %v3008, %v3030
    %v3411 = vadd.f32 %v3012, %v3034
    %v3412 = vadd.f32 %v3018, %v3040
    %v3413 = vadd.f32 %v3022, %v3044
    %v3414 = vadd.f32 %v3028, %v3050
    %v3415 = vadd.f32 %v3032, %v3054
    %v3416 = vadd.f32 %v3038, %v3060
    %v3417 = vadd.f32 %v3042, %v3064
    %v3418 = vadd.f32 %v3048, %v3070
    %v3419 = vadd.f32 %v3052, %v3074
    %v3420 = vadd.f32 %v3058, %v3080
    %v3421 = vadd.f32 %v3062, %v3084
    %v3422 = vadd.f32 %v3068, %v3090
    %v3423 = vadd.f32 %v3072, %v3094
    %v3424 = vadd.f32 %v3078, %v3100
    %v3425 = vadd.f32 %v3082, %v3104
    %v3426 = vadd.f32 %v3088, %v3110
    %v3427 = vadd.f32 %v3092, %v3114
    %v3428 = vadd.f32 %v3098, %v3120
    %v3429 = vadd.f32 %v3102, %v3124
    %v3430 = vadd.f32 %v3108, %v3130
    %v3431 = vadd.f32 %v3112, %v3134
    %v3432 = vadd.f32 %v3118, %v3140
    %v3433 = vadd.f32 %v3122, %v3144
    %v3434 = vadd.f32 %v3128, %v3150
    %v3435 = vadd.f32 %v3132, %v3154
    %v3436 = vadd.f32 %v3138, %v3160
    %v3437 = vadd.f32 %v3142, %v3164
    %v3438 = vadd.f32 %v3148, %v3170
    %v3439 = vadd.f32 %v3152, %v3174
    %v3440 = vadd.f32 %v3158, %v3180
    %v3441 = vadd.f32 %v3162, %v3184
    %v3442 = vadd.f32 %v3168, %v3190
    %v3443 = vadd.f32 %v3172, %v3194
    %v3444 = vadd.f32 %v3178, %v3200
    %v3445 = vadd.f32 %v3182, %v3204
    %v3446 = vadd.f32 %v3188, %v3210
    %v3447 = vadd.f32 %v3192, %v3214
    %v3448 = vadd.f32 %v3198, %v3220
    %v3449 = vadd.f32 %v3202, %v3224
    %v3450 = vadd.f32 %v3208, %v3230
    %v3451 = vadd.f32 %v3212, %v3234
    %v3452 = vadd.f32 %v3218, %v3240
    %v3453 = vadd.f32 %v3222, %v3244
    %v3454 = vadd.f32 %v3228, %v3250
    %v3455 = vadd.f32 %v3232, %v3254
    %v3456 = vadd.f32 %v3238, %v3260
    %v3457 = vadd.f32 %v3242, %v3264
    %v3458 = vadd.f32 %v3248, %v3270
    %v3459 = vadd.f32 %v3252, %v3274
    %v3460 = vadd.f32 %v3258, %v3280
    %v3461 = vadd.f32 %v3262, %v3284
    %v3462 = vadd.f32 %v3268, %v3290
    %v3463 = vadd.f32 %v3272, %v3294
    %v3464 = vadd.f32 %v3278, %v3300
    %v3465 = vadd.f32 %v3282, %v3304
    %v3466 = vadd.f32 %v3288, %v3310
    %v3467 = vadd.f32 %v3292, %v3314
    %v3468 = vadd.f32 %v3298, %v3319
    %v3469 = vadd.f32 %v3302, %v3322
    %v3470 = vadd.f32 %v3308, %v3327
    %v3471 = vadd.f32 %v3312, %v3330
    %v3472 = vld [vmem:[#allocation7] sm:$0xf]
    %v3473 = vld [vmem:[#allocation7 + $0x4] sm:$0xf]
    %v3474 = vld [vmem:[#allocation7 + $0x8] sm:$0xf]
    %v3475 = vld [vmem:[#allocation7 + $0xc] sm:$0xf]
    %v3476 = vld [vmem:[#allocation7 + $0x10] sm:$0xf]
    %v3477 = vld [vmem:[#allocation7 + $0x14] sm:$0xf]
    %v3478 = vld [vmem:[#allocation7 + $0x18] sm:$0xf]
    %v3479 = vld [vmem:[#allocation7 + $0x1c] sm:$0xf]
    %v3480 = vld [vmem:[#allocation7 + $0x20] sm:$0xf]
    %v3481 = vld [vmem:[#allocation7 + $0x24] sm:$0xf]
    %v3482 = vld [vmem:[#allocation7 + $0x28] sm:$0xf]
    %v3483 = vld [vmem:[#allocation7 + $0x2c] sm:$0xf]
    %v3484 = vld [vmem:[#allocation7 + $0x30] sm:$0xf]
    %v3485 = vld [vmem:[#allocation7 + $0x34] sm:$0xf]
    %v3486 = vld [vmem:[#allocation7 + $0x38] sm:$0xf]
    %v3487 = vld [vmem:[#allocation7 + $0x3c] sm:$0xf]
    %v3488 = vld [vmem:[#allocation7 + $0x40] sm:$0xf]
    %v3489 = vld [vmem:[#allocation7 + $0x44] sm:$0xf]
    %v3490 = vld [vmem:[#allocation7 + $0x48] sm:$0xf]
    %v3491 = vld [vmem:[#allocation7 + $0x4c] sm:$0xf]
    %v3492 = vld [vmem:[#allocation7 + $0x50] sm:$0xf]
    %v3493 = vld [vmem:[#allocation7 + $0x54] sm:$0xf]
    %v3494 = vld [vmem:[#allocation7 + $0x58] sm:$0xf]
    %v3495 = vld [vmem:[#allocation7 + $0x5c] sm:$0xf]
    %v3496 = vld [vmem:[#allocation7 + $0x60] sm:$0xf]
    %v3497 = vld [vmem:[#allocation7 + $0x64] sm:$0xf]
    %v3498 = vld [vmem:[#allocation7 + $0x68] sm:$0xf]
    %v3499 = vld [vmem:[#allocation7 + $0x6c] sm:$0xf]
    %v3500 = vld [vmem:[#allocation7 + $0x70] sm:$0xf]
    %v3501 = vld [vmem:[#allocation7 + $0x74] sm:$0xf]
    %v3502 = vld [vmem:[#allocation7 + $0x78] sm:$0xf]
    %v3503 = vld [vmem:[#allocation7 + $0x7c] sm:$0xf]
    %v3504 = vld [vmem:[#allocation7 + $0x80] sm:$0xf]
    %v3505 = vld [vmem:[#allocation7 + $0x84] sm:$0xf]
    %v3506 = vld [vmem:[#allocation7 + $0x88] sm:$0xf]
    %v3507 = vld [vmem:[#allocation7 + $0x8c] sm:$0xf]
    %v3508 = vld [vmem:[#allocation7 + $0x90] sm:$0xf]
    %v3509 = vld [vmem:[#allocation7 + $0x94] sm:$0xf]
    %v3510 = vld [vmem:[#allocation7 + $0x98] sm:$0xf]
    %v3511 = vld [vmem:[#allocation7 + $0x9c] sm:$0xf]
    %v3512 = vld [vmem:[#allocation7 + $0xa0] sm:$0xf]
    %v3513 = vld [vmem:[#allocation7 + $0xa4] sm:$0xf]
    %v3514 = vld [vmem:[#allocation7 + $0xa8] sm:$0xf]
    %v3515 = vld [vmem:[#allocation7 + $0xac] sm:$0xf]
    %v3516 = vld [vmem:[#allocation7 + $0xb0] sm:$0xf]
    %v3517 = vld [vmem:[#allocation7 + $0xb4] sm:$0xf]
    %v3518 = vld [vmem:[#allocation7 + $0xb8] sm:$0xf]
    %v3519 = vld [vmem:[#allocation7 + $0xbc] sm:$0xf]
    %v3568 = vunpack.c.l.b16 %v3472
    %v3569 = vunpack.c.l.b16 %v3473
    %v3570 = vunpack.c.l.b16 %v3474
    %v3571 = vunpack.c.l.b16 %v3475
    %v3572 = vunpack.c.l.b16 %v3476
    %v3573 = vunpack.c.l.b16 %v3477
    %v3574 = vunpack.c.l.b16 %v3478
    %v3575 = vunpack.c.l.b16 %v3479
    %v3576 = vunpack.c.l.b16 %v3480
    %v3577 = vunpack.c.l.b16 %v3481
    %v3578 = vunpack.c.l.b16 %v3482
    %v3579 = vunpack.c.l.b16 %v3483
    %v3580 = vunpack.c.l.b16 %v3484
    %v3581 = vunpack.c.l.b16 %v3485
    %v3582 = vunpack.c.l.b16 %v3486
    %v3583 = vunpack.c.l.b16 %v3487
    %v3584 = vunpack.c.l.b16 %v3488
    %v3585 = vunpack.c.l.b16 %v3489
    %v3586 = vunpack.c.l.b16 %v3490
    %v3587 = vunpack.c.l.b16 %v3491
    %v3588 = vunpack.c.l.b16 %v3492
    %v3589 = vunpack.c.l.b16 %v3493
    %v3590 = vunpack.c.l.b16 %v3494
    %v3591 = vunpack.c.l.b16 %v3495
    %v3592 = vunpack.c.l.b16 %v3496
    %v3593 = vunpack.c.l.b16 %v3497
    %v3594 = vunpack.c.l.b16 %v3498
    %v3595 = vunpack.c.l.b16 %v3499
    %v3596 = vunpack.c.l.b16 %v3500
    %v3597 = vunpack.c.l.b16 %v3501
    %v3598 = vunpack.c.l.b16 %v3502
    %v3599 = vunpack.c.l.b16 %v3503
    %v3600 = vunpack.c.l.b16 %v3504
    %v3601 = vunpack.c.l.b16 %v3505
    %v3602 = vunpack.c.l.b16 %v3506
    %v3603 = vunpack.c.l.b16 %v3507
    %v3604 = vunpack.c.l.b16 %v3508
    %v3605 = vunpack.c.l.b16 %v3509
    %v3606 = vunpack.c.l.b16 %v3510
    %v3607 = vunpack.c.l.b16 %v3511
    %v3608 = vunpack.c.l.b16 %v3512
    %v3609 = vunpack.c.l.b16 %v3513
    %v3610 = vunpack.c.l.b16 %v3514
    %v3611 = vunpack.c.l.b16 %v3515
    %v3612 = vunpack.c.l.b16 %v3516
    %v3613 = vunpack.c.l.b16 %v3517
    %v3614 = vunpack.c.l.b16 %v3518
    %v3615 = vunpack.c.l.b16 %v3519
    %v3616 = vpack.c.b16 %v3569, %v3568
    %v3617 = vpack.c.b16 %v3571, %v3570
    %v3618 = vpack.c.b16 %v3573, %v3572
    %v3619 = vpack.c.b16 %v3575, %v3574
    %v3620 = vpack.c.b16 %v3577, %v3576
    %v3621 = vpack.c.b16 %v3579, %v3578
    %v3622 = vpack.c.b16 %v3581, %v3580
    %v3623 = vpack.c.b16 %v3583, %v3582
    %v3624 = vpack.c.b16 %v3585, %v3584
    %v3625 = vpack.c.b16 %v3587, %v3586
    %v3626 = vpack.c.b16 %v3589, %v3588
    %v3627 = vpack.c.b16 %v3591, %v3590
    %v3628 = vpack.c.b16 %v3593, %v3592
    %v3629 = vpack.c.b16 %v3595, %v3594
    %v3630 = vpack.c.b16 %v3597, %v3596
    %v3631 = vpack.c.b16 %v3599, %v3598
    %v3632 = vpack.c.b16 %v3601, %v3600
    %v3633 = vpack.c.b16 %v3603, %v3602
    %v3634 = vpack.c.b16 %v3605, %v3604
    %v3635 = vpack.c.b16 %v3607, %v3606
    %v3636 = vpack.c.b16 %v3609, %v3608
    %v3637 = vpack.c.b16 %v3611, %v3610
    %v3638 = vpack.c.b16 %v3613, %v3612
    %v3639 = vpack.c.b16 %v3615, %v3614
    %3664 = vmatprep.subr.bf16.mxu0 0
    %3665 = vmatpush1.bf16.msra.mxu0 %v3616
    %3666 = vmatprep.subr.bf16.mxu0 0
    %3667 = vmatpush1.bf16.msra.mxu0 %v3617
    %3668 = vmatprep.subr.bf16.mxu0 0
    %3669 = vmatpush1.bf16.msra.mxu0 %v3618
    %3670 = vmatprep.subr.bf16.mxu0 0
    %3671 = vmatpush1.bf16.msra.mxu0 %v3619
    %3672 = vmatprep.subr.bf16.mxu0 0
    %3673 = vmatpush1.bf16.msra.mxu0 %v3620
    %3674 = vmatprep.subr.bf16.mxu0 0
    %3675 = vmatpush1.bf16.msra.mxu0 %v3621
    %3676 = vmatprep.subr.bf16.mxu0 0
    %3677 = vmatpush1.bf16.msra.mxu0 %v3622
    %3678 = vmatprep.subr.bf16.mxu0 0
    %3679 = vmatpush1.bf16.msra.mxu0 %v3623
    %3680 = vmatprep.subr.bf16.mxu0 0
    %3681 = vmatpush1.bf16.msra.mxu0 %v3624
    %3682 = vmatprep.subr.bf16.mxu0 0
    %3683 = vmatpush1.bf16.msra.mxu0 %v3625
    %3684 = vmatprep.subr.bf16.mxu0 0
    %3685 = vmatpush1.bf16.msra.mxu0 %v3626
    %3686 = vmatprep.subr.bf16.mxu0 0
    %3687 = vmatpush1.bf16.msra.mxu0 %v3627
    %3688 = vmatprep.subr.bf16.mxu0 0
    %3689 = vmatpush1.bf16.msra.mxu0 %v3628
    %3690 = vmatprep.subr.bf16.mxu0 0
    %3691 = vmatpush1.bf16.msra.mxu0 %v3629
    %3692 = vmatprep.subr.bf16.mxu0 0
    %3693 = vmatpush1.bf16.msra.mxu0 %v3630
    %3694 = vmatprep.subr.bf16.mxu0 0
    %3695 = vmatpush1.bf16.msra.mxu0 %v3631
    %3696 = vmatprep.mubr.bf16.mxu0 %v640
    %3697 = vmatmul.mubr.bf16.gmra.mrb[0].mxu0 %v1287
    %v3698 = vpop.f32.mrb[0].mxu0
    %v3699 = vadd.f32 0.0, %v3698
    %v3700 = vpop.f32.mrb[0].mxu0
    %v3701 = vpop.f32.mrb[0].mxu0
    %v3702 = vadd.f32 0.0, %v3701
    %v3703 = vpop.f32.mrb[0].mxu0
    %3704 = vmatprep.mubr.bf16.mxu0 %v641
    %3705 = vmatmul.mubr.bf16.gmra.mrb[0].mxu0 %v749
    %v3706 = vpop.f32.mrb[0].mxu0
    %v3707 = vadd.f32 0.0, %v3706
    %v3708 = vpop.f32.mrb[0].mxu0
    %v3709 = vpop.f32.mrb[0].mxu0
    %v3710 = vadd.f32 0.0, %v3709
    %v3711 = vpop.f32.mrb[0].mxu0
    %3712 = vmatprep.mubr.bf16.mxu0 %v642
    %3713 = vmatmul.mubr.bf16.gmra.mrb[0].mxu0 %v1288
    %v3714 = vpop.f32.mrb[0].mxu0
    %v3715 = vadd.f32 0.0, %v3714
    %v3716 = vpop.f32.mrb[0].mxu0
    %v3717 = vpop.f32.mrb[0].mxu0
    %v3718 = vadd.f32 0.0, %v3717
    %v3719 = vpop.f32.mrb[0].mxu0
    %3720 = vmatprep.mubr.bf16.mxu0 %v643
    %3721 = vmatmul.mubr.bf16.gmra.mrb[0].mxu0 %v764
    %v3722 = vpop.f32.mrb[0].mxu0
    %v3723 = vadd.f32 0.0, %v3722
    %v3724 = vpop.f32.mrb[0].mxu0
    %v3725 = vpop.f32.mrb[0].mxu0
    %v3726 = vadd.f32 0.0, %v3725
    %v3727 = vpop.f32.mrb[0].mxu0
    %3728 = vmatprep.mubr.bf16.mxu0 %v644
    %3729 = vmatmul.mubr.bf16.gmra.mrb[0].mxu0 %v1289
    %v3730 = vpop.f32.mrb[0].mxu0
    %v3731 = vadd.f32 0.0, %v3730
    %v3732 = vpop.f32.mrb[0].mxu0
    %v3733 = vpop.f32.mrb[0].mxu0
    %v3734 = vadd.f32 0.0, %v3733
    %v3735 = vpop.f32.mrb[0].mxu0
    %3736 = vmatprep.mubr.bf16.mxu0 %v645
    %3737 = vmatmul.mubr.bf16.gmra.mrb[0].mxu0 %v779
    %v3738 = vpop.f32.mrb[0].mxu0
    %v3739 = vadd.f32 0.0, %v3738
    %v3740 = vpop.f32.mrb[0].mxu0
    %v3741 = vpop.f32.mrb[0].mxu0
    %v3742 = vadd.f32 0.0, %v3741
    %v3743 = vpop.f32.mrb[0].mxu0
    %3744 = vmatprep.mubr.bf16.mxu0 %v646
    %3745 = vmatmul.mubr.bf16.gmra.mrb[0].mxu0 %v1290
    %v3746 = vpop.f32.mrb[0].mxu0
    %v3747 = vadd.f32 0.0, %v3746
    %v3748 = vpop.f32.mrb[0].mxu0
    %v3749 = vpop.f32.mrb[0].mxu0
    %v3750 = vadd.f32 0.0, %v3749
    %v3751 = vpop.f32.mrb[0].mxu0
    %3752 = vmatprep.mubr.bf16.mxu0 %v647
    %3753 = vmatmul.mubr.bf16.gmra.mrb[0].mxu0 %v794
    %v3754 = vpop.f32.mrb[0].mxu0
    %v3755 = vadd.f32 0.0, %v3754
    %v3756 = vpop.f32.mrb[0].mxu0
    %v3757 = vpop.f32.mrb[0].mxu0
    %v3758 = vadd.f32 0.0, %v3757
    %v3759 = vpop.f32.mrb[0].mxu0
    %3760 = vmatprep.mubr.bf16.mxu0 %v648
    %3761 = vmatmul.mubr.bf16.gmra.mrb[0].mxu0 %v1291
    %v3762 = vpop.f32.mrb[0].mxu0
    %v3763 = vadd.f32 0.0, %v3762
    %v3764 = vpop.f32.mrb[0].mxu0
    %v3765 = vpop.f32.mrb[0].mxu0
    %v3766 = vadd.f32 0.0, %v3765
    %v3767 = vpop.f32.mrb[0].mxu0
    %3768 = vmatprep.mubr.bf16.mxu0 %v649
    %3769 = vmatmul.mubr.bf16.gmra.mrb[0].mxu0 %v809
    %v3770 = vpop.f32.mrb[0].mxu0
    %v3771 = vadd.f32 0.0, %v3770
    %v3772 = vpop.f32.mrb[0].mxu0
    %v3773 = vpop.f32.mrb[0].mxu0
    %v3774 = vadd.f32 0.0, %v3773
    %v3775 = vpop.f32.mrb[0].mxu0
    %3776 = vmatprep.mubr.bf16.mxu0 %v650
    %3777 = vmatmul.mubr.bf16.gmra.mrb[0].mxu0 %v1292
    %v3778 = vpop.f32.mrb[0].mxu0
    %v3779 = vadd.f32 0.0, %v3778
    %v3780 = vpop.f32.mrb[0].mxu0
    %v3781 = vpop.f32.mrb[0].mxu0
    %v3782 = vadd.f32 0.0, %v3781
    %v3783 = vpop.f32.mrb[0].mxu0
    %3784 = vmatprep.mubr.bf16.mxu0 %v651
    %3785 = vmatmul.mubr.bf16.gmra.mrb[0].mxu0 %v824
    %v3786 = vpop.f32.mrb[0].mxu0
    %v3787 = vadd.f32 0.0, %v3786
    %v3788 = vpop.f32.mrb[0].mxu0
    %v3789 = vpop.f32.mrb[0].mxu0
    %v3790 = vadd.f32 0.0, %v3789
    %v3791 = vpop.f32.mrb[0].mxu0
    %3792 = vmatprep.mubr.bf16.mxu0 %v652
    %3793 = vmatmul.mubr.bf16.gmra.mrb[0].mxu0 %v1293
    %v3794 = vpop.f32.mrb[0].mxu0
    %v3795 = vadd.f32 0.0, %v3794
    %v3796 = vpop.f32.mrb[0].mxu0
    %v3797 = vpop.f32.mrb[0].mxu0
    %v3798 = vadd.f32 0.0, %v3797
    %v3799 = vpop.f32.mrb[0].mxu0
    %3800 = vmatprep.mubr.bf16.mxu0 %v653
    %3801 = vmatmul.mubr.bf16.gmra.mrb[0].mxu0 %v839
    %v3802 = vpop.f32.mrb[0].mxu0
    %v3803 = vadd.f32 0.0, %v3802
    %v3804 = vpop.f32.mrb[0].mxu0
    %v3805 = vpop.f32.mrb[0].mxu0
    %v3806 = vadd.f32 0.0, %v3805
    %v3807 = vpop.f32.mrb[0].mxu0
    %3808 = vmatprep.mubr.bf16.mxu0 %v654
    %3809 = vmatmul.mubr.bf16.gmra.mrb[0].mxu0 %v1294
    %v3810 = vpop.f32.mrb[0].mxu0
    %v3811 = vadd.f32 0.0, %v3810
    %v3812 = vpop.f32.mrb[0].mxu0
    %v3813 = vpop.f32.mrb[0].mxu0
    %v3814 = vadd.f32 0.0, %v3813
    %v3815 = vpop.f32.mrb[0].mxu0
    %3816 = vmatprep.mubr.bf16.mxu0 %v655
    %3817 = vmatmul.mubr.bf16.gmra.mrb[0].mxu0 %v854
    %v3818 = vpop.f32.mrb[0].mxu0
    %v3819 = vadd.f32 0.0, %v3818
    %v3820 = vpop.f32.mrb[0].mxu0
    %v3821 = vpop.f32.mrb[0].mxu0
    %v3822 = vadd.f32 0.0, %v3821
    %v3823 = vpop.f32.mrb[0].mxu0
    %3824 = vmatprep.mubr.bf16.mxu0 %v656
    %3825 = vmatmul.mubr.bf16.gmra.mrb[0].mxu0 %v1295
    %v3826 = vpop.f32.mrb[0].mxu0
    %v3827 = vadd.f32 0.0, %v3826
    %v3828 = vpop.f32.mrb[0].mxu0
    %v3829 = vpop.f32.mrb[0].mxu0
    %v3830 = vadd.f32 0.0, %v3829
    %v3831 = vpop.f32.mrb[0].mxu0
    %3832 = vmatprep.mubr.bf16.mxu0 %v657
    %3833 = vmatmul.mubr.bf16.gmra.mrb[0].mxu0 %v869
    %v3834 = vpop.f32.mrb[0].mxu0
    %v3835 = vadd.f32 0.0, %v3834
    %v3836 = vpop.f32.mrb[0].mxu0
    %v3837 = vpop.f32.mrb[0].mxu0
    %v3838 = vadd.f32 0.0, %v3837
    %v3839 = vpop.f32.mrb[0].mxu0
    %3840 = vmatprep.mubr.bf16.mxu0 %v658
    %3841 = vmatmul.mubr.bf16.gmra.mrb[0].mxu0 %v1296
    %v3842 = vpop.f32.mrb[0].mxu0
    %v3843 = vadd.f32 0.0, %v3842
    %v3844 = vpop.f32.mrb[0].mxu0
    %v3845 = vpop.f32.mrb[0].mxu0
    %v3846 = vadd.f32 0.0, %v3845
    %v3847 = vpop.f32.mrb[0].mxu0
    %3848 = vmatprep.mubr.bf16.mxu0 %v659
    %3849 = vmatmul.mubr.bf16.gmra.mrb[0].mxu0 %v884
    %v3850 = vpop.f32.mrb[0].mxu0
    %v3851 = vadd.f32 0.0, %v3850
    %v3852 = vpop.f32.mrb[0].mxu0
    %v3853 = vpop.f32.mrb[0].mxu0
    %v3854 = vadd.f32 0.0, %v3853
    %v3855 = vpop.f32.mrb[0].mxu0
    %3856 = vmatprep.mubr.bf16.mxu0 %v660
    %3857 = vmatmul.mubr.bf16.gmra.mrb[0].mxu0 %v1297
    %v3858 = vpop.f32.mrb[0].mxu0
    %v3859 = vadd.f32 0.0, %v3858
    %v3860 = vpop.f32.mrb[0].mxu0
    %v3861 = vpop.f32.mrb[0].mxu0
    %v3862 = vadd.f32 0.0, %v3861
    %v3863 = vpop.f32.mrb[0].mxu0
    %3864 = vmatprep.mubr.bf16.mxu0 %v661
    %3865 = vmatmul.mubr.bf16.gmra.mrb[0].mxu0 %v899
    %v3866 = vpop.f32.mrb[0].mxu0
    %v3867 = vadd.f32 0.0, %v3866
    %v3868 = vpop.f32.mrb[0].mxu0
    %v3869 = vpop.f32.mrb[0].mxu0
    %v3870 = vadd.f32 0.0, %v3869
    %v3871 = vpop.f32.mrb[0].mxu0
    %3872 = vmatprep.mubr.bf16.mxu0 %v662
    %3873 = vmatmul.mubr.bf16.gmra.mrb[0].mxu0 %v1298
    %v3874 = vpop.f32.mrb[0].mxu0
    %v3875 = vadd.f32 0.0, %v3874
    %v3876 = vpop.f32.mrb[0].mxu0
    %v3877 = vpop.f32.mrb[0].mxu0
    %v3878 = vadd.f32 0.0, %v3877
    %v3879 = vpop.f32.mrb[0].mxu0
    %3880 = vmatprep.mubr.bf16.mxu0 %v663
    %3881 = vmatmul.mubr.bf16.gmra.mrb[0].mxu0 %v914
    %v3882 = vpop.f32.mrb[0].mxu0
    %v3883 = vadd.f32 0.0, %v3882
    %v3884 = vpop.f32.mrb[0].mxu0
    %v3885 = vpop.f32.mrb[0].mxu0
    %v3886 = vadd.f32 0.0, %v3885
    %v3887 = vpop.f32.mrb[0].mxu0
    %3888 = vmatprep.mubr.bf16.mxu0 %v664
    %3889 = vmatmul.mubr.bf16.gmra.mrb[0].mxu0 %v1299
    %v3890 = vpop.f32.mrb[0].mxu0
    %v3891 = vadd.f32 0.0, %v3890
    %v3892 = vpop.f32.mrb[0].mxu0
    %v3893 = vpop.f32.mrb[0].mxu0
    %v3894 = vadd.f32 0.0, %v3893
    %v3895 = vpop.f32.mrb[0].mxu0
    %3896 = vmatprep.mubr.bf16.mxu0 %v665
    %3897 = vmatmul.mubr.bf16.gmra.mrb[0].mxu0 %v929
    %v3898 = vpop.f32.mrb[0].mxu0
    %v3899 = vadd.f32 0.0, %v3898
    %v3900 = vpop.f32.mrb[0].mxu0
    %v3901 = vpop.f32.mrb[0].mxu0
    %v3902 = vadd.f32 0.0, %v3901
    %v3903 = vpop.f32.mrb[0].mxu0
    %3904 = vmatprep.mubr.bf16.mxu0 %v666
    %3905 = vmatmul.mubr.bf16.gmra.mrb[0].mxu0 %v1300
    %v3906 = vpop.f32.mrb[0].mxu0
    %v3907 = vadd.f32 0.0, %v3906
    %v3908 = vpop.f32.mrb[0].mxu0
    %v3909 = vpop.f32.mrb[0].mxu0
    %v3910 = vadd.f32 0.0, %v3909
    %v3911 = vpop.f32.mrb[0].mxu0
    %3912 = vmatprep.mubr.bf16.mxu0 %v667
    %3913 = vmatmul.mubr.bf16.gmra.mrb[0].mxu0 %v944
    %v3914 = vpop.f32.mrb[0].mxu0
    %v3915 = vadd.f32 0.0, %v3914
    %v3916 = vpop.f32.mrb[0].mxu0
    %v3917 = vpop.f32.mrb[0].mxu0
    %v3918 = vadd.f32 0.0, %v3917
    %v3919 = vpop.f32.mrb[0].mxu0
    %3920 = vmatprep.mubr.bf16.mxu0 %v668
    %3921 = vmatmul.mubr.bf16.gmra.mrb[0].mxu0 %v1301
    %v3922 = vpop.f32.mrb[0].mxu0
    %v3923 = vadd.f32 0.0, %v3922
    %v3924 = vpop.f32.mrb[0].mxu0
    %v3925 = vpop.f32.mrb[0].mxu0
    %v3926 = vadd.f32 0.0, %v3925
    %v3927 = vpop.f32.mrb[0].mxu0
    %3928 = vmatprep.mubr.bf16.mxu0 %v669
    %3929 = vmatmul.mubr.bf16.gmra.mrb[0].mxu0 %v959
    %v3930 = vpop.f32.mrb[0].mxu0
    %v3931 = vadd.f32 0.0, %v3930
    %v3932 = vpop.f32.mrb[0].mxu0
    %v3933 = vpop.f32.mrb[0].mxu0
    %v3934 = vadd.f32 0.0, %v3933
    %v3935 = vpop.f32.mrb[0].mxu0
    %3936 = vmatprep.mubr.bf16.mxu0 %v670
    %3937 = vmatmul.mubr.bf16.gmra.mrb[0].mxu0 %v1302
    %v3938 = vpop.f32.mrb[0].mxu0
    %v3939 = vadd.f32 0.0, %v3938
    %v3940 = vpop.f32.mrb[0].mxu0
    %v3941 = vpop.f32.mrb[0].mxu0
    %v3942 = vadd.f32 0.0, %v3941
    %v3943 = vpop.f32.mrb[0].mxu0
    %3944 = vmatprep.mubr.bf16.mxu0 %v671
    %3945 = vmatmul.mubr.bf16.gmra.mrb[0].mxu0 %v974
    %v3946 = vpop.f32.mrb[0].mxu0
    %v3947 = vadd.f32 0.0, %v3946
    %v3948 = vpop.f32.mrb[0].mxu0
    %v3949 = vpop.f32.mrb[0].mxu0
    %v3950 = vadd.f32 0.0, %v3949
    %v3951 = vpop.f32.mrb[0].mxu0
    %3952 = vmatprep.mubr.bf16.mxu0 %v672
    %3953 = vmatmul.mubr.bf16.gmra.mrb[0].mxu0 %v1303
    %v3954 = vpop.f32.mrb[0].mxu0
    %v3955 = vadd.f32 0.0, %v3954
    %v3956 = vpop.f32.mrb[0].mxu0
    %v3957 = vpop.f32.mrb[0].mxu0
    %v3958 = vadd.f32 0.0, %v3957
    %v3959 = vpop.f32.mrb[0].mxu0
    %3960 = vmatprep.mubr.bf16.mxu0 %v673
    %3961 = vmatmul.mubr.bf16.gmra.mrb[0].mxu0 %v989
    %v3962 = vpop.f32.mrb[0].mxu0
    %v3963 = vadd.f32 0.0, %v3962
    %v3964 = vpop.f32.mrb[0].mxu0
    %v3965 = vpop.f32.mrb[0].mxu0
    %v3966 = vadd.f32 0.0, %v3965
    %v3967 = vpop.f32.mrb[0].mxu0
    %3968 = vmatprep.mubr.bf16.mxu0 %v674
    %3969 = vmatmul.mubr.bf16.gmra.mrb[0].mxu0 %v1304
    %v3970 = vpop.f32.mrb[0].mxu0
    %v3971 = vadd.f32 0.0, %v3970
    %v3972 = vpop.f32.mrb[0].mxu0
    %v3973 = vpop.f32.mrb[0].mxu0
    %v3974 = vadd.f32 0.0, %v3973
    %v3975 = vpop.f32.mrb[0].mxu0
    %3976 = vmatprep.mubr.bf16.mxu0 %v675
    %3977 = vmatmul.mubr.bf16.gmra.mrb[0].mxu0 %v1004
    %v3978 = vpop.f32.mrb[0].mxu0
    %v3979 = vadd.f32 0.0, %v3978
    %v3980 = vpop.f32.mrb[0].mxu0
    %v3981 = vpop.f32.mrb[0].mxu0
    %v3982 = vadd.f32 0.0, %v3981
    %v3983 = vpop.f32.mrb[0].mxu0
    %3984 = vmatprep.mubr.bf16.mxu0 %v676
    %3985 = vmatmul.mubr.bf16.gmra.mrb[0].mxu0 %v1305
    %v3986 = vpop.f32.mrb[0].mxu0
    %v3987 = vadd.f32 0.0, %v3986
    %v3988 = vpop.f32.mrb[0].mxu0
    %v3989 = vpop.f32.mrb[0].mxu0
    %v3990 = vadd.f32 0.0, %v3989
    %v3991 = vpop.f32.mrb[0].mxu0
    %3992 = vmatprep.mubr.bf16.mxu0 %v677
    %3993 = vmatmul.mubr.bf16.gmra.mrb[0].mxu0 %v1019
    %v3994 = vpop.f32.mrb[0].mxu0
    %v3995 = vadd.f32 0.0, %v3994
    %v3996 = vpop.f32.mrb[0].mxu0
    %v3997 = vpop.f32.mrb[0].mxu0
    %v3998 = vadd.f32 0.0, %v3997
    %v3999 = vpop.f32.mrb[0].mxu0
    %4000 = vmatprep.mubr.bf16.mxu0 %v678
    %4001 = vmatmul.mubr.bf16.gmra.mrb[0].mxu0 %v1306
    %v4002 = vpop.f32.mrb[0].mxu0
    %v4003 = vadd.f32 0.0, %v4002
    %v4004 = vpop.f32.mrb[0].mxu0
    %v4005 = vpop.f32.mrb[0].mxu0
    %v4006 = vadd.f32 0.0, %v4005
    %v4007 = vpop.f32.mrb[0].mxu0
    %4008 = vmatprep.mubr.bf16.mxu0 %v679
    %4009 = vmatmul.mubr.bf16.gmra.mrb[0].mxu0 %v1034
    %v4010 = vpop.f32.mrb[0].mxu0
    %v4011 = vadd.f32 0.0, %v4010
    %v4012 = vpop.f32.mrb[0].mxu0
    %v4013 = vpop.f32.mrb[0].mxu0
    %v4014 = vadd.f32 0.0, %v4013
    %v4015 = vpop.f32.mrb[0].mxu0
    %4016 = vmatprep.mubr.bf16.mxu0 %v680
    %4017 = vmatmul.mubr.bf16.gmra.mrb[0].mxu0 %v1307
    %v4018 = vpop.f32.mrb[0].mxu0
    %v4019 = vadd.f32 0.0, %v4018
    %v4020 = vpop.f32.mrb[0].mxu0
    %v4021 = vpop.f32.mrb[0].mxu0
    %v4022 = vadd.f32 0.0, %v4021
    %v4023 = vpop.f32.mrb[0].mxu0
    %4024 = vmatprep.mubr.bf16.mxu0 %v681
    %4025 = vmatmul.mubr.bf16.gmra.mrb[0].mxu0 %v1049
    %v4026 = vpop.f32.mrb[0].mxu0
    %v4027 = vadd.f32 0.0, %v4026
    %v4028 = vpop.f32.mrb[0].mxu0
    %v4029 = vpop.f32.mrb[0].mxu0
    %v4030 = vadd.f32 0.0, %v4029
    %v4031 = vpop.f32.mrb[0].mxu0
    %4032 = vmatprep.mubr.bf16.mxu0 %v682
    %4033 = vmatmul.mubr.bf16.gmra.mrb[0].mxu0 %v1308
    %v4034 = vpop.f32.mrb[0].mxu0
    %v4035 = vadd.f32 0.0, %v4034
    %v4036 = vpop.f32.mrb[0].mxu0
    %v4037 = vpop.f32.mrb[0].mxu0
    %v4038 = vadd.f32 0.0, %v4037
    %v4039 = vpop.f32.mrb[0].mxu0
    %4040 = vmatprep.mubr.bf16.mxu0 %v683
    %4041 = vmatmul.mubr.bf16.gmra.mrb[0].mxu0 %v1064
    %v4042 = vpop.f32.mrb[0].mxu0
    %v4043 = vadd.f32 0.0, %v4042
    %v4044 = vpop.f32.mrb[0].mxu0
    %v4045 = vpop.f32.mrb[0].mxu0
    %v4046 = vadd.f32 0.0, %v4045
    %v4047 = vpop.f32.mrb[0].mxu0
    %4048 = vmatprep.mubr.bf16.mxu0 %v684
    %4049 = vmatmul.mubr.bf16.gmra.mrb[0].mxu0 %v1309
    %v4050 = vpop.f32.mrb[0].mxu0
    %v4051 = vadd.f32 0.0, %v4050
    %v4052 = vpop.f32.mrb[0].mxu0
    %v4053 = vpop.f32.mrb[0].mxu0
    %v4054 = vadd.f32 0.0, %v4053
    %v4055 = vpop.f32.mrb[0].mxu0
    %4056 = vmatprep.mubr.bf16.mxu0 %v685
    %4057 = vmatmul.mubr.bf16.gmra.mrb[0].mxu0 %v1079
    %v4058 = vpop.f32.mrb[0].mxu0
    %v4059 = vadd.f32 0.0, %v4058
    %v4060 = vpop.f32.mrb[0].mxu0
    %v4061 = vpop.f32.mrb[0].mxu0
    %v4062 = vadd.f32 0.0, %v4061
    %v4063 = vpop.f32.mrb[0].mxu0
    %4064 = vmatprep.mubr.bf16.mxu0 %v686
    %4065 = vmatmul.mubr.bf16.gmra.mrb[0].mxu0 %v1310
    %v4066 = vpop.f32.mrb[0].mxu0
    %v4067 = vadd.f32 0.0, %v4066
    %v4068 = vpop.f32.mrb[0].mxu0
    %v4069 = vpop.f32.mrb[0].mxu0
    %v4070 = vadd.f32 0.0, %v4069
    %v4071 = vpop.f32.mrb[0].mxu0
    %4072 = vmatprep.mubr.bf16.mxu0 %v687
    %4073 = vmatmul.mubr.bf16.gmra.mrb[0].mxu0 %v1094
    %v4074 = vpop.f32.mrb[0].mxu0
    %v4075 = vadd.f32 0.0, %v4074
    %v4076 = vpop.f32.mrb[0].mxu0
    %v4077 = vpop.f32.mrb[0].mxu0
    %v4078 = vadd.f32 0.0, %v4077
    %v4079 = vpop.f32.mrb[0].mxu0
    %4080 = vmatprep.mubr.bf16.mxu0 %v688
    %4081 = vmatmul.mubr.bf16.gmra.mrb[0].mxu0 %v1311
    %v4082 = vpop.f32.mrb[0].mxu0
    %v4083 = vadd.f32 0.0, %v4082
    %v4084 = vpop.f32.mrb[0].mxu0
    %v4085 = vpop.f32.mrb[0].mxu0
    %v4086 = vadd.f32 0.0, %v4085
    %v4087 = vpop.f32.mrb[0].mxu0
    %4088 = vmatprep.mubr.bf16.mxu0 %v689
    %4089 = vmatmul.mubr.bf16.gmra.mrb[0].mxu0 %v1109
    %v4090 = vpop.f32.mrb[0].mxu0
    %v4091 = vadd.f32 0.0, %v4090
    %v4092 = vpop.f32.mrb[0].mxu0
    %v4093 = vpop.f32.mrb[0].mxu0
    %v4094 = vadd.f32 0.0, %v4093
    %v4095 = vpop.f32.mrb[0].mxu0
    %4096 = vmatprep.mubr.bf16.mxu0 %v690
    %4097 = vmatmul.mubr.bf16.gmra.mrb[0].mxu0 %v1312
    %v4098 = vpop.f32.mrb[0].mxu0
    %v4099 = vadd.f32 0.0, %v4098
    %v4100 = vpop.f32.mrb[0].mxu0
    %v4101 = vpop.f32.mrb[0].mxu0
    %v4102 = vadd.f32 0.0, %v4101
    %v4103 = vpop.f32.mrb[0].mxu0
    %4104 = vmatprep.mubr.bf16.mxu0 %v691
    %4105 = vmatmul.mubr.bf16.gmra.mrb[0].mxu0 %v1124
    %v4106 = vpop.f32.mrb[0].mxu0
    %v4107 = vadd.f32 0.0, %v4106
    %v4108 = vpop.f32.mrb[0].mxu0
    %v4109 = vpop.f32.mrb[0].mxu0
    %v4110 = vadd.f32 0.0, %v4109
    %v4111 = vpop.f32.mrb[0].mxu0
    %4112 = vmatprep.mubr.bf16.mxu0 %v692
    %4113 = vmatmul.mubr.bf16.gmra.mrb[0].mxu0 %v1313
    %v4114 = vpop.f32.mrb[0].mxu0
    %v4115 = vadd.f32 0.0, %v4114
    %v4116 = vpop.f32.mrb[0].mxu0
    %v4117 = vpop.f32.mrb[0].mxu0
    %v4118 = vadd.f32 0.0, %v4117
    %v4119 = vpop.f32.mrb[0].mxu0
    %4120 = vmatprep.mubr.bf16.mxu0 %v693
    %4121 = vmatmul.mubr.bf16.gmra.mrb[0].mxu0 %v1139
    %v4122 = vpop.f32.mrb[0].mxu0
    %v4123 = vadd.f32 0.0, %v4122
    %v4124 = vpop.f32.mrb[0].mxu0
    %v4125 = vpop.f32.mrb[0].mxu0
    %v4126 = vadd.f32 0.0, %v4125
    %v4127 = vpop.f32.mrb[0].mxu0
    %4128 = vmatprep.mubr.bf16.mxu0 %v694
    %4129 = vmatmul.mubr.bf16.gmra.mrb[0].mxu0 %v1314
    %v4130 = vpop.f32.mrb[0].mxu0
    %v4131 = vadd.f32 0.0, %v4130
    %v4132 = vpop.f32.mrb[0].mxu0
    %v4133 = vpop.f32.mrb[0].mxu0
    %v4134 = vadd.f32 0.0, %v4133
    %v4135 = vpop.f32.mrb[0].mxu0
    %4136 = vmatprep.mubr.bf16.mxu0 %v695
    %4137 = vmatmul.mubr.bf16.gmra.mrb[0].mxu0 %v1154
    %v4138 = vpop.f32.mrb[0].mxu0
    %v4139 = vadd.f32 0.0, %v4138
    %v4140 = vpop.f32.mrb[0].mxu0
    %v4141 = vpop.f32.mrb[0].mxu0
    %v4142 = vadd.f32 0.0, %v4141
    %v4143 = vpop.f32.mrb[0].mxu0
    %4144 = vmatprep.mubr.bf16.mxu0 %v696
    %4145 = vmatmul.mubr.bf16.gmra.mrb[0].mxu0 %v1315
    %v4146 = vpop.f32.mrb[0].mxu0
    %v4147 = vadd.f32 0.0, %v4146
    %v4148 = vpop.f32.mrb[0].mxu0
    %v4149 = vpop.f32.mrb[0].mxu0
    %v4150 = vadd.f32 0.0, %v4149
    %v4151 = vpop.f32.mrb[0].mxu0
    %4152 = vmatprep.mubr.bf16.mxu0 %v697
    %4153 = vmatmul.mubr.bf16.gmra.mrb[0].mxu0 %v1169
    %v4154 = vpop.f32.mrb[0].mxu0
    %v4155 = vadd.f32 0.0, %v4154
    %v4156 = vpop.f32.mrb[0].mxu0
    %v4157 = vpop.f32.mrb[0].mxu0
    %v4158 = vadd.f32 0.0, %v4157
    %v4159 = vpop.f32.mrb[0].mxu0
    %4160 = vmatprep.mubr.bf16.mxu0 %v698
    %4161 = vmatmul.mubr.bf16.gmra.mrb[0].mxu0 %v1316
    %v4162 = vpop.f32.mrb[0].mxu0
    %v4163 = vadd.f32 0.0, %v4162
    %v4164 = vpop.f32.mrb[0].mxu0
    %v4165 = vpop.f32.mrb[0].mxu0
    %v4166 = vadd.f32 0.0, %v4165
    %v4167 = vpop.f32.mrb[0].mxu0
    %4168 = vmatprep.mubr.bf16.mxu0 %v699
    %4169 = vmatmul.mubr.bf16.gmra.mrb[0].mxu0 %v1184
    %v4170 = vpop.f32.mrb[0].mxu0
    %v4171 = vadd.f32 0.0, %v4170
    %v4172 = vpop.f32.mrb[0].mxu0
    %v4173 = vpop.f32.mrb[0].mxu0
    %v4174 = vadd.f32 0.0, %v4173
    %v4175 = vpop.f32.mrb[0].mxu0
    %4176 = vmatprep.mubr.bf16.mxu0 %v700
    %4177 = vmatmul.mubr.bf16.gmra.mrb[0].mxu0 %v1317
    %v4178 = vpop.f32.mrb[0].mxu0
    %v4179 = vadd.f32 0.0, %v4178
    %v4180 = vpop.f32.mrb[0].mxu0
    %v4181 = vpop.f32.mrb[0].mxu0
    %v4182 = vadd.f32 0.0, %v4181
    %v4183 = vpop.f32.mrb[0].mxu0
    %4184 = vmatprep.mubr.bf16.mxu0 %v701
    %4185 = vmatmul.mubr.bf16.gmra.mrb[0].mxu0 %v1199
    %v4186 = vpop.f32.mrb[0].mxu0
    %v4187 = vadd.f32 0.0, %v4186
    %v4188 = vpop.f32.mrb[0].mxu0
    %v4189 = vpop.f32.mrb[0].mxu0
    %v4190 = vadd.f32 0.0, %v4189
    %v4191 = vpop.f32.mrb[0].mxu0
    %4192 = vmatprep.mubr.bf16.mxu0 %v702
    %4193 = vmatmul.mubr.bf16.gmra.mrb[0].mxu0 %v1318
    %v4194 = vpop.f32.mrb[0].mxu0
    %v4195 = vadd.f32 0.0, %v4194
    %v4196 = vpop.f32.mrb[0].mxu0
    %v4197 = vpop.f32.mrb[0].mxu0
    %v4198 = vadd.f32 0.0, %v4197
    %v4199 = vpop.f32.mrb[0].mxu0
    %4200 = vmatprep.mubr.bf16.mxu0 %v703
    %4201 = vmatmul.mubr.bf16.gmra.mrb[0].mxu0 %v1214
    %v4202 = vpop.f32.mrb[0].mxu0
    %v4203 = vadd.f32 0.0, %v4202
    %v4204 = vpop.f32.mrb[0].mxu0
    %v4205 = vpop.f32.mrb[0].mxu0
    %v4206 = vadd.f32 0.0, %v4205
    %v4207 = vpop.f32.mrb[0].mxu0
    %4208 = vdwg.mxu0
    %4209 = vmatprep.subr.bf16.mxu0 0
    %4210 = vmatpush1.bf16.msra.mxu0 %v3632
    %4211 = vmatprep.subr.bf16.mxu0 0
    %4212 = vmatpush1.bf16.msra.mxu0 %v3633
    %4213 = vmatprep.subr.bf16.mxu0 0
    %4214 = vmatpush1.bf16.msra.mxu0 %v3634
    %4215 = vmatprep.subr.bf16.mxu0 0
    %4216 = vmatpush1.bf16.msra.mxu0 %v3635
    %4217 = vmatprep.subr.bf16.mxu0 0
    %4218 = vmatpush1.bf16.msra.mxu0 %v3636
    %4219 = vmatprep.subr.bf16.mxu0 0
    %4220 = vmatpush1.bf16.msra.mxu0 %v3637
    %4221 = vmatprep.subr.bf16.mxu0 0
    %4222 = vmatpush1.bf16.msra.mxu0 %v3638
    %4223 = vmatprep.subr.bf16.mxu0 0
    %4224 = vmatpush1.bf16.msra.mxu0 %v3639
    %4225 = vmatprep.subr.bf16.mxu0 0
    %4226 = vmatpush1.bf16.msra.mxu0 0
    %4227 = vmatprep.subr.bf16.mxu0 0
    %4228 = vmatpush1.bf16.msra.mxu0 0
    %4229 = vmatprep.subr.bf16.mxu0 0
    %4230 = vmatpush1.bf16.msra.mxu0 0
    %4231 = vmatprep.subr.bf16.mxu0 0
    %4232 = vmatpush1.bf16.msra.mxu0 0
    %4233 = vmatprep.subr.bf16.mxu0 0
    %4234 = vmatpush1.bf16.msra.mxu0 0
    %4235 = vmatprep.subr.bf16.mxu0 0
    %4236 = vmatpush1.bf16.msra.mxu0 0
    %4237 = vmatprep.subr.bf16.mxu0 0
    %4238 = vmatpush1.bf16.msra.mxu0 0
    %4239 = vmatprep.subr.bf16.mxu0 0
    %4240 = vmatpush1.bf16.msra.mxu0 0
    %4241 = vmatprep.mubr.bf16.mxu0 0
    %4242 = vmatmul.mubr.bf16.gmra.mrb[0].mxu0 %v1333
    %v4243 = vpop.f32.mrb[0].mxu0
    %v4244 = vadd.f32 %v3699, %v4243
    %v4245 = vpop.f32.mrb[0].mxu0
    %v4246 = vpop.f32.mrb[0].mxu0
    %v4247 = vadd.f32 %v3702, %v4246
    %v4248 = vpop.f32.mrb[0].mxu0
    %4249 = vmatprep.mubr.bf16.mxu0 0
    %4250 = vmatmul.mubr.bf16.gmra.mrb[0].mxu0 %v1562
    %v4251 = vpop.f32.mrb[0].mxu0
    %v4252 = vadd.f32 %v3707, %v4251
    %v4253 = vpop.f32.mrb[0].mxu0
    %v4254 = vpop.f32.mrb[0].mxu0
    %v4255 = vadd.f32 %v3710, %v4254
    %v4256 = vpop.f32.mrb[0].mxu0
    %4257 = vmatprep.mubr.bf16.mxu0 0
    %4258 = vmatmul.mubr.bf16.gmra.mrb[0].mxu0 %v1338
    %v4259 = vpop.f32.mrb[0].mxu0
    %v4260 = vadd.f32 %v3715, %v4259
    %v4261 = vpop.f32.mrb[0].mxu0
    %v4262 = vpop.f32.mrb[0].mxu0
    %v4263 = vadd.f32 %v3718, %v4262
    %v4264 = vpop.f32.mrb[0].mxu0
    %4265 = vmatprep.mubr.bf16.mxu0 0
    %4266 = vmatmul.mubr.bf16.gmra.mrb[0].mxu0 %v1563
    %v4267 = vpop.f32.mrb[0].mxu0
    %v4268 = vadd.f32 %v3723, %v4267
    %v4269 = vpop.f32.mrb[0].mxu0
    %v4270 = vpop.f32.mrb[0].mxu0
    %v4271 = vadd.f32 %v3726, %v4270
    %v4272 = vpop.f32.mrb[0].mxu0
    %4273 = vmatprep.mubr.bf16.mxu0 0
    %4274 = vmatmul.mubr.bf16.gmra.mrb[0].mxu0 %v1343
    %v4275 = vpop.f32.mrb[0].mxu0
    %v4276 = vadd.f32 %v3731, %v4275
    %v4277 = vpop.f32.mrb[0].mxu0
    %v4278 = vpop.f32.mrb[0].mxu0
    %v4279 = vadd.f32 %v3734, %v4278
    %v4280 = vpop.f32.mrb[0].mxu0
    %4281 = vmatprep.mubr.bf16.mxu0 0
    %4282 = vmatmul.mubr.bf16.gmra.mrb[0].mxu0 %v1564
    %v4283 = vpop.f32.mrb[0].mxu0
    %v4284 = vadd.f32 %v3739, %v4283
    %v4285 = vpop.f32.mrb[0].mxu0
    %v4286 = vpop.f32.mrb[0].mxu0
    %v4287 = vadd.f32 %v3742, %v4286
    %v4288 = vpop.f32.mrb[0].mxu0
    %4289 = vmatprep.mubr.bf16.mxu0 0
    %4290 = vmatmul.mubr.bf16.gmra.mrb[0].mxu0 %v1348
    %v4291 = vpop.f32.mrb[0].mxu0
    %v4292 = vadd.f32 %v3747, %v4291
    %v4293 = vpop.f32.mrb[0].mxu0
    %v4294 = vpop.f32.mrb[0].mxu0
    %v4295 = vadd.f32 %v3750, %v4294
    %v4296 = vpop.f32.mrb[0].mxu0
    %4297 = vmatprep.mubr.bf16.mxu0 0
    %4298 = vmatmul.mubr.bf16.gmra.mrb[0].mxu0 %v1565
    %v4299 = vpop.f32.mrb[0].mxu0
    %v4300 = vadd.f32 %v3755, %v4299
    %v4301 = vpop.f32.mrb[0].mxu0
    %v4302 = vpop.f32.mrb[0].mxu0
    %v4303 = vadd.f32 %v3758, %v4302
    %v4304 = vpop.f32.mrb[0].mxu0
    %4305 = vmatprep.mubr.bf16.mxu0 0
    %4306 = vmatmul.mubr.bf16.gmra.mrb[0].mxu0 %v1353
    %v4307 = vpop.f32.mrb[0].mxu0
    %v4308 = vadd.f32 %v3763, %v4307
    %v4309 = vpop.f32.mrb[0].mxu0
    %v4310 = vpop.f32.mrb[0].mxu0
    %v4311 = vadd.f32 %v3766, %v4310
    %v4312 = vpop.f32.mrb[0].mxu0
    %4313 = vmatprep.mubr.bf16.mxu0 0
    %4314 = vmatmul.mubr.bf16.gmra.mrb[0].mxu0 %v1566
    %v4315 = vpop.f32.mrb[0].mxu0
    %v4316 = vadd.f32 %v3771, %v4315
    %v4317 = vpop.f32.mrb[0].mxu0
    %v4318 = vpop.f32.mrb[0].mxu0
    %v4319 = vadd.f32 %v3774, %v4318
    %v4320 = vpop.f32.mrb[0].mxu0
    %4321 = vmatprep.mubr.bf16.mxu0 0
    %4322 = vmatmul.mubr.bf16.gmra.mrb[0].mxu0 %v1358
    %v4323 = vpop.f32.mrb[0].mxu0
    %v4324 = vadd.f32 %v3779, %v4323
    %v4325 = vpop.f32.mrb[0].mxu0
    %v4326 = vpop.f32.mrb[0].mxu0
    %v4327 = vadd.f32 %v3782, %v4326
    %v4328 = vpop.f32.mrb[0].mxu0
    %4329 = vmatprep.mubr.bf16.mxu0 0
    %4330 = vmatmul.mubr.bf16.gmra.mrb[0].mxu0 %v1567
    %v4331 = vpop.f32.mrb[0].mxu0
    %v4332 = vadd.f32 %v3787, %v4331
    %v4333 = vpop.f32.mrb[0].mxu0
    %v4334 = vpop.f32.mrb[0].mxu0
    %v4335 = vadd.f32 %v3790, %v4334
    %v4336 = vpop.f32.mrb[0].mxu0
    %4337 = vmatprep.mubr.bf16.mxu0 0
    %4338 = vmatmul.mubr.bf16.gmra.mrb[0].mxu0 %v1363
    %v4339 = vpop.f32.mrb[0].mxu0
    %v4340 = vadd.f32 %v3795, %v4339
    %v4341 = vpop.f32.mrb[0].mxu0
    %v4342 = vpop.f32.mrb[0].mxu0
    %v4343 = vadd.f32 %v3798, %v4342
    %v4344 = vpop.f32.mrb[0].mxu0
    %4345 = vmatprep.mubr.bf16.mxu0 0
    %4346 = vmatmul.mubr.bf16.gmra.mrb[0].mxu0 %v1568
    %v4347 = vpop.f32.mrb[0].mxu0
    %v4348 = vadd.f32 %v3803, %v4347
    %v4349 = vpop.f32.mrb[0].mxu0
    %v4350 = vpop.f32.mrb[0].mxu0
    %v4351 = vadd.f32 %v3806, %v4350
    %v4352 = vpop.f32.mrb[0].mxu0
    %4353 = vmatprep.mubr.bf16.mxu0 0
    %4354 = vmatmul.mubr.bf16.gmra.mrb[0].mxu0 %v1368
    %v4355 = vpop.f32.mrb[0].mxu0
    %v4356 = vadd.f32 %v3811, %v4355
    %v4357 = vpop.f32.mrb[0].mxu0
    %v4358 = vpop.f32.mrb[0].mxu0
    %v4359 = vadd.f32 %v3814, %v4358
    %v4360 = vpop.f32.mrb[0].mxu0
    %4361 = vmatprep.mubr.bf16.mxu0 0
    %4362 = vmatmul.mubr.bf16.gmra.mrb[0].mxu0 %v1569
    %v4363 = vpop.f32.mrb[0].mxu0
    %v4364 = vadd.f32 %v3819, %v4363
    %v4365 = vpop.f32.mrb[0].mxu0
    %v4366 = vpop.f32.mrb[0].mxu0
    %v4367 = vadd.f32 %v3822, %v4366
    %v4368 = vpop.f32.mrb[0].mxu0
    %4369 = vmatprep.mubr.bf16.mxu0 0
    %4370 = vmatmul.mubr.bf16.gmra.mrb[0].mxu0 %v1373
    %v4371 = vpop.f32.mrb[0].mxu0
    %v4372 = vadd.f32 %v3827, %v4371
    %v4373 = vpop.f32.mrb[0].mxu0
    %v4374 = vpop.f32.mrb[0].mxu0
    %v4375 = vadd.f32 %v3830, %v4374
    %v4376 = vpop.f32.mrb[0].mxu0
    %4377 = vmatprep.mubr.bf16.mxu0 0
    %4378 = vmatmul.mubr.bf16.gmra.mrb[0].mxu0 %v1570
    %v4379 = vpop.f32.mrb[0].mxu0
    %v4380 = vadd.f32 %v3835, %v4379
    %v4381 = vpop.f32.mrb[0].mxu0
    %v4382 = vpop.f32.mrb[0].mxu0
    %v4383 = vadd.f32 %v3838, %v4382
    %v4384 = vpop.f32.mrb[0].mxu0
    %4385 = vmatprep.mubr.bf16.mxu0 0
    %4386 = vmatmul.mubr.bf16.gmra.mrb[0].mxu0 %v1378
    %v4387 = vpop.f32.mrb[0].mxu0
    %v4388 = vadd.f32 %v3843, %v4387
    %v4389 = vpop.f32.mrb[0].mxu0
    %v4390 = vpop.f32.mrb[0].mxu0
    %v4391 = vadd.f32 %v3846, %v4390
    %v4392 = vpop.f32.mrb[0].mxu0
    %4393 = vmatprep.mubr.bf16.mxu0 0
    %4394 = vmatmul.mubr.bf16.gmra.mrb[0].mxu0 %v1571
    %v4395 = vpop.f32.mrb[0].mxu0
    %v4396 = vadd.f32 %v3851, %v4395
    %v4397 = vpop.f32.mrb[0].mxu0
    %v4398 = vpop.f32.mrb[0].mxu0
    %v4399 = vadd.f32 %v3854, %v4398
    %v4400 = vpop.f32.mrb[0].mxu0
    %4401 = vmatprep.mubr.bf16.mxu0 0
    %4402 = vmatmul.mubr.bf16.gmra.mrb[0].mxu0 %v1383
    %v4403 = vpop.f32.mrb[0].mxu0
    %v4404 = vadd.f32 %v3859, %v4403
    %v4405 = vpop.f32.mrb[0].mxu0
    %v4406 = vpop.f32.mrb[0].mxu0
    %v4407 = vadd.f32 %v3862, %v4406
    %v4408 = vpop.f32.mrb[0].mxu0
    %4409 = vmatprep.mubr.bf16.mxu0 0
    %4410 = vmatmul.mubr.bf16.gmra.mrb[0].mxu0 %v1572
    %v4411 = vpop.f32.mrb[0].mxu0
    %v4412 = vadd.f32 %v3867, %v4411
    %v4413 = vpop.f32.mrb[0].mxu0
    %v4414 = vpop.f32.mrb[0].mxu0
    %v4415 = vadd.f32 %v3870, %v4414
    %v4416 = vpop.f32.mrb[0].mxu0
    %4417 = vmatprep.mubr.bf16.mxu0 0
    %4418 = vmatmul.mubr.bf16.gmra.mrb[0].mxu0 %v1388
    %v4419 = vpop.f32.mrb[0].mxu0
    %v4420 = vadd.f32 %v3875, %v4419
    %v4421 = vpop.f32.mrb[0].mxu0
    %v4422 = vpop.f32.mrb[0].mxu0
    %v4423 = vadd.f32 %v3878, %v4422
    %v4424 = vpop.f32.mrb[0].mxu0
    %4425 = vmatprep.mubr.bf16.mxu0 0
    %4426 = vmatmul.mubr.bf16.gmra.mrb[0].mxu0 %v1573
    %v4427 = vpop.f32.mrb[0].mxu0
    %v4428 = vadd.f32 %v3883, %v4427
    %v4429 = vpop.f32.mrb[0].mxu0
    %v4430 = vpop.f32.mrb[0].mxu0
    %v4431 = vadd.f32 %v3886, %v4430
    %v4432 = vpop.f32.mrb[0].mxu0
    %4433 = vmatprep.mubr.bf16.mxu0 0
    %4434 = vmatmul.mubr.bf16.gmra.mrb[0].mxu0 %v1393
    %v4435 = vpop.f32.mrb[0].mxu0
    %v4436 = vadd.f32 %v3891, %v4435
    %v4437 = vpop.f32.mrb[0].mxu0
    %v4438 = vpop.f32.mrb[0].mxu0
    %v4439 = vadd.f32 %v3894, %v4438
    %v4440 = vpop.f32.mrb[0].mxu0
    %4441 = vmatprep.mubr.bf16.mxu0 0
    %4442 = vmatmul.mubr.bf16.gmra.mrb[0].mxu0 %v1574
    %v4443 = vpop.f32.mrb[0].mxu0
    %v4444 = vadd.f32 %v3899, %v4443
    %v4445 = vpop.f32.mrb[0].mxu0
    %v4446 = vpop.f32.mrb[0].mxu0
    %v4447 = vadd.f32 %v3902, %v4446
    %v4448 = vpop.f32.mrb[0].mxu0
    %4449 = vmatprep.mubr.bf16.mxu0 0
    %4450 = vmatmul.mubr.bf16.gmra.mrb[0].mxu0 %v1398
    %v4451 = vpop.f32.mrb[0].mxu0
    %v4452 = vadd.f32 %v3907, %v4451
    %v4453 = vpop.f32.mrb[0].mxu0
    %v4454 = vpop.f32.mrb[0].mxu0
    %v4455 = vadd.f32 %v3910, %v4454
    %v4456 = vpop.f32.mrb[0].mxu0
    %4457 = vmatprep.mubr.bf16.mxu0 0
    %4458 = vmatmul.mubr.bf16.gmra.mrb[0].mxu0 %v1575
    %v4459 = vpop.f32.mrb[0].mxu0
    %v4460 = vadd.f32 %v3915, %v4459
    %v4461 = vpop.f32.mrb[0].mxu0
    %v4462 = vpop.f32.mrb[0].mxu0
    %v4463 = vadd.f32 %v3918, %v4462
    %v4464 = vpop.f32.mrb[0].mxu0
    %4465 = vmatprep.mubr.bf16.mxu0 0
    %4466 = vmatmul.mubr.bf16.gmra.mrb[0].mxu0 %v1403
    %v4467 = vpop.f32.mrb[0].mxu0
    %v4468 = vadd.f32 %v3923, %v4467
    %v4469 = vpop.f32.mrb[0].mxu0
    %v4470 = vpop.f32.mrb[0].mxu0
    %v4471 = vadd.f32 %v3926, %v4470
    %v4472 = vpop.f32.mrb[0].mxu0
    %4473 = vmatprep.mubr.bf16.mxu0 0
    %4474 = vmatmul.mubr.bf16.gmra.mrb[0].mxu0 %v1576
    %v4475 = vpop.f32.mrb[0].mxu0
    %v4476 = vadd.f32 %v3931, %v4475
    %v4477 = vpop.f32.mrb[0].mxu0
    %v4478 = vpop.f32.mrb[0].mxu0
    %v4479 = vadd.f32 %v3934, %v4478
    %v4480 = vpop.f32.mrb[0].mxu0
    %4481 = vmatprep.mubr.bf16.mxu0 0
    %4482 = vmatmul.mubr.bf16.gmra.mrb[0].mxu0 %v1408
    %v4483 = vpop.f32.mrb[0].mxu0
    %v4484 = vadd.f32 %v3939, %v4483
    %v4485 = vpop.f32.mrb[0].mxu0
    %v4486 = vpop.f32.mrb[0].mxu0
    %v4487 = vadd.f32 %v3942, %v4486
    %v4488 = vpop.f32.mrb[0].mxu0
    %4489 = vmatprep.mubr.bf16.mxu0 0
    %4490 = vmatmul.mubr.bf16.gmra.mrb[0].mxu0 %v1577
    %v4491 = vpop.f32.mrb[0].mxu0
    %v4492 = vadd.f32 %v3947, %v4491
    %v4493 = vpop.f32.mrb[0].mxu0
    %v4494 = vpop.f32.mrb[0].mxu0
    %v4495 = vadd.f32 %v3950, %v4494
    %v4496 = vpop.f32.mrb[0].mxu0
    %4497 = vmatprep.mubr.bf16.mxu0 0
    %4498 = vmatmul.mubr.bf16.gmra.mrb[0].mxu0 %v1413
    %v4499 = vpop.f32.mrb[0].mxu0
    %v4500 = vadd.f32 %v3955, %v4499
    %v4501 = vpop.f32.mrb[0].mxu0
    %v4502 = vpop.f32.mrb[0].mxu0
    %v4503 = vadd.f32 %v3958, %v4502
    %v4504 = vpop.f32.mrb[0].mxu0
    %4505 = vmatprep.mubr.bf16.mxu0 0
    %4506 = vmatmul.mubr.bf16.gmra.mrb[0].mxu0 %v1578
    %v4507 = vpop.f32.mrb[0].mxu0
    %v4508 = vadd.f32 %v3963, %v4507
    %v4509 = vpop.f32.mrb[0].mxu0
    %v4510 = vpop.f32.mrb[0].mxu0
    %v4511 = vadd.f32 %v3966, %v4510
    %v4512 = vpop.f32.mrb[0].mxu0
    %4513 = vmatprep.mubr.bf16.mxu0 0
    %4514 = vmatmul.mubr.bf16.gmra.mrb[0].mxu0 %v1418
    %v4515 = vpop.f32.mrb[0].mxu0
    %v4516 = vadd.f32 %v3971, %v4515
    %v4517 = vpop.f32.mrb[0].mxu0
    %v4518 = vpop.f32.mrb[0].mxu0
    %v4519 = vadd.f32 %v3974, %v4518
    %v4520 = vpop.f32.mrb[0].mxu0
    %4521 = vmatprep.mubr.bf16.mxu0 0
    %4522 = vmatmul.mubr.bf16.gmra.mrb[0].mxu0 %v1579
    %v4523 = vpop.f32.mrb[0].mxu0
    %v4524 = vadd.f32 %v3979, %v4523
    %v4525 = vpop.f32.mrb[0].mxu0
    %v4526 = vpop.f32.mrb[0].mxu0
    %v4527 = vadd.f32 %v3982, %v4526
    %v4528 = vpop.f32.mrb[0].mxu0
    %4529 = vmatprep.mubr.bf16.mxu0 0
    %4530 = vmatmul.mubr.bf16.gmra.mrb[0].mxu0 %v1423
    %v4531 = vpop.f32.mrb[0].mxu0
    %v4532 = vadd.f32 %v3987, %v4531
    %v4533 = vpop.f32.mrb[0].mxu0
    %v4534 = vpop.f32.mrb[0].mxu0
    %v4535 = vadd.f32 %v3990, %v4534
    %v4536 = vpop.f32.mrb[0].mxu0
    %4537 = vmatprep.mubr.bf16.mxu0 0
    %4538 = vmatmul.mubr.bf16.gmra.mrb[0].mxu0 %v1580
    %v4539 = vpop.f32.mrb[0].mxu0
    %v4540 = vadd.f32 %v3995, %v4539
    %v4541 = vpop.f32.mrb[0].mxu0
    %v4542 = vpop.f32.mrb[0].mxu0
    %v4543 = vadd.f32 %v3998, %v4542
    %v4544 = vpop.f32.mrb[0].mxu0
    %4545 = vmatprep.mubr.bf16.mxu0 0
    %4546 = vmatmul.mubr.bf16.gmra.mrb[0].mxu0 %v1428
    %v4547 = vpop.f32.mrb[0].mxu0
    %v4548 = vadd.f32 %v4003, %v4547
    %v4549 = vpop.f32.mrb[0].mxu0
    %v4550 = vpop.f32.mrb[0].mxu0
    %v4551 = vadd.f32 %v4006, %v4550
    %v4552 = vpop.f32.mrb[0].mxu0
    %4553 = vmatprep.mubr.bf16.mxu0 0
    %4554 = vmatmul.mubr.bf16.gmra.mrb[0].mxu0 %v1581
    %v4555 = vpop.f32.mrb[0].mxu0
    %v4556 = vadd.f32 %v4011, %v4555
    %v4557 = vpop.f32.mrb[0].mxu0
    %v4558 = vpop.f32.mrb[0].mxu0
    %v4559 = vadd.f32 %v4014, %v4558
    %v4560 = vpop.f32.mrb[0].mxu0
    %4561 = vmatprep.mubr.bf16.mxu0 0
    %4562 = vmatmul.mubr.bf16.gmra.mrb[0].mxu0 %v1433
    %v4563 = vpop.f32.mrb[0].mxu0
    %v4564 = vadd.f32 %v4019, %v4563
    %v4565 = vpop.f32.mrb[0].mxu0
    %v4566 = vpop.f32.mrb[0].mxu0
    %v4567 = vadd.f32 %v4022, %v4566
    %v4568 = vpop.f32.mrb[0].mxu0
    %4569 = vmatprep.mubr.bf16.mxu0 0
    %4570 = vmatmul.mubr.bf16.gmra.mrb[0].mxu0 %v1582
    %v4571 = vpop.f32.mrb[0].mxu0
    %v4572 = vadd.f32 %v4027, %v4571
    %v4573 = vpop.f32.mrb[0].mxu0
    %v4574 = vpop.f32.mrb[0].mxu0
    %v4575 = vadd.f32 %v4030, %v4574
    %v4576 = vpop.f32.mrb[0].mxu0
    %4577 = vmatprep.mubr.bf16.mxu0 0
    %4578 = vmatmul.mubr.bf16.gmra.mrb[0].mxu0 %v1438
    %v4579 = vpop.f32.mrb[0].mxu0
    %v4580 = vadd.f32 %v4035, %v4579
    %v4581 = vpop.f32.mrb[0].mxu0
    %v4582 = vpop.f32.mrb[0].mxu0
    %v4583 = vadd.f32 %v4038, %v4582
    %v4584 = vpop.f32.mrb[0].mxu0
    %4585 = vmatprep.mubr.bf16.mxu0 0
    %4586 = vmatmul.mubr.bf16.gmra.mrb[0].mxu0 %v1583
    %v4587 = vpop.f32.mrb[0].mxu0
    %v4588 = vadd.f32 %v4043, %v4587
    %v4589 = vpop.f32.mrb[0].mxu0
    %v4590 = vpop.f32.mrb[0].mxu0
    %v4591 = vadd.f32 %v4046, %v4590
    %v4592 = vpop.f32.mrb[0].mxu0
    %4593 = vmatprep.mubr.bf16.mxu0 0
    %4594 = vmatmul.mubr.bf16.gmra.mrb[0].mxu0 %v1443
    %v4595 = vpop.f32.mrb[0].mxu0
    %v4596 = vadd.f32 %v4051, %v4595
    %v4597 = vpop.f32.mrb[0].mxu0
    %v4598 = vpop.f32.mrb[0].mxu0
    %v4599 = vadd.f32 %v4054, %v4598
    %v4600 = vpop.f32.mrb[0].mxu0
    %4601 = vmatprep.mubr.bf16.mxu0 0
    %4602 = vmatmul.mubr.bf16.gmra.mrb[0].mxu0 %v1584
    %v4603 = vpop.f32.mrb[0].mxu0
    %v4604 = vadd.f32 %v4059, %v4603
    %v4605 = vpop.f32.mrb[0].mxu0
    %v4606 = vpop.f32.mrb[0].mxu0
    %v4607 = vadd.f32 %v4062, %v4606
    %v4608 = vpop.f32.mrb[0].mxu0
    %4609 = vmatprep.mubr.bf16.mxu0 0
    %4610 = vmatmul.mubr.bf16.gmra.mrb[0].mxu0 %v1448
    %v4611 = vpop.f32.mrb[0].mxu0
    %v4612 = vadd.f32 %v4067, %v4611
    %v4613 = vpop.f32.mrb[0].mxu0
    %v4614 = vpop.f32.mrb[0].mxu0
    %v4615 = vadd.f32 %v4070, %v4614
    %v4616 = vpop.f32.mrb[0].mxu0
    %4617 = vmatprep.mubr.bf16.mxu0 0
    %4618 = vmatmul.mubr.bf16.gmra.mrb[0].mxu0 %v1585
    %v4619 = vpop.f32.mrb[0].mxu0
    %v4620 = vadd.f32 %v4075, %v4619
    %v4621 = vpop.f32.mrb[0].mxu0
    %v4622 = vpop.f32.mrb[0].mxu0
    %v4623 = vadd.f32 %v4078, %v4622
    %v4624 = vpop.f32.mrb[0].mxu0
    %4625 = vmatprep.mubr.bf16.mxu0 0
    %4626 = vmatmul.mubr.bf16.gmra.mrb[0].mxu0 %v1453
    %v4627 = vpop.f32.mrb[0].mxu0
    %v4628 = vadd.f32 %v4083, %v4627
    %v4629 = vpop.f32.mrb[0].mxu0
    %v4630 = vpop.f32.mrb[0].mxu0
    %v4631 = vadd.f32 %v4086, %v4630
    %v4632 = vpop.f32.mrb[0].mxu0
    %4633 = vmatprep.mubr.bf16.mxu0 0
    %4634 = vmatmul.mubr.bf16.gmra.mrb[0].mxu0 %v1586
    %v4635 = vpop.f32.mrb[0].mxu0
    %v4636 = vadd.f32 %v4091, %v4635
    %v4637 = vpop.f32.mrb[0].mxu0
    %v4638 = vpop.f32.mrb[0].mxu0
    %v4639 = vadd.f32 %v4094, %v4638
    %v4640 = vpop.f32.mrb[0].mxu0
    %4641 = vmatprep.mubr.bf16.mxu0 0
    %4642 = vmatmul.mubr.bf16.gmra.mrb[0].mxu0 %v1458
    %v4643 = vpop.f32.mrb[0].mxu0
    %v4644 = vadd.f32 %v4099, %v4643
    %v4645 = vpop.f32.mrb[0].mxu0
    %v4646 = vpop.f32.mrb[0].mxu0
    %v4647 = vadd.f32 %v4102, %v4646
    %v4648 = vpop.f32.mrb[0].mxu0
    %4649 = vmatprep.mubr.bf16.mxu0 0
    %4650 = vmatmul.mubr.bf16.gmra.mrb[0].mxu0 %v1587
    %v4651 = vpop.f32.mrb[0].mxu0
    %v4652 = vadd.f32 %v4107, %v4651
    %v4653 = vpop.f32.mrb[0].mxu0
    %v4654 = vpop.f32.mrb[0].mxu0
    %v4655 = vadd.f32 %v4110, %v4654
    %v4656 = vpop.f32.mrb[0].mxu0
    %4657 = vmatprep.mubr.bf16.mxu0 0
    %4658 = vmatmul.mubr.bf16.gmra.mrb[0].mxu0 %v1463
    %v4659 = vpop.f32.mrb[0].mxu0
    %v4660 = vadd.f32 %v4115, %v4659
    %v4661 = vpop.f32.mrb[0].mxu0
    %v4662 = vpop.f32.mrb[0].mxu0
    %v4663 = vadd.f32 %v4118, %v4662
    %v4664 = vpop.f32.mrb[0].mxu0
    %4665 = vmatprep.mubr.bf16.mxu0 0
    %4666 = vmatmul.mubr.bf16.gmra.mrb[0].mxu0 %v1588
    %v4667 = vpop.f32.mrb[0].mxu0
    %v4668 = vadd.f32 %v4123, %v4667
    %v4669 = vpop.f32.mrb[0].mxu0
    %v4670 = vpop.f32.mrb[0].mxu0
    %v4671 = vadd.f32 %v4126, %v4670
    %v4672 = vpop.f32.mrb[0].mxu0
    %4673 = vmatprep.mubr.bf16.mxu0 0
    %4674 = vmatmul.mubr.bf16.gmra.mrb[0].mxu0 %v1468
    %v4675 = vpop.f32.mrb[0].mxu0
    %v4676 = vadd.f32 %v4131, %v4675
    %v4677 = vpop.f32.mrb[0].mxu0
    %v4678 = vpop.f32.mrb[0].mxu0
    %v4679 = vadd.f32 %v4134, %v4678
    %v4680 = vpop.f32.mrb[0].mxu0
    %4681 = vmatprep.mubr.bf16.mxu0 0
    %4682 = vmatmul.mubr.bf16.gmra.mrb[0].mxu0 %v1589
    %v4683 = vpop.f32.mrb[0].mxu0
    %v4684 = vadd.f32 %v4139, %v4683
    %v4685 = vpop.f32.mrb[0].mxu0
    %v4686 = vpop.f32.mrb[0].mxu0
    %v4687 = vadd.f32 %v4142, %v4686
    %v4688 = vpop.f32.mrb[0].mxu0
    %4689 = vmatprep.mubr.bf16.mxu0 0
    %4690 = vmatmul.mubr.bf16.gmra.mrb[0].mxu0 %v1473
    %v4691 = vpop.f32.mrb[0].mxu0
    %v4692 = vadd.f32 %v4147, %v4691
    %v4693 = vpop.f32.mrb[0].mxu0
    %v4694 = vpop.f32.mrb[0].mxu0
    %v4695 = vadd.f32 %v4150, %v4694
    %v4696 = vpop.f32.mrb[0].mxu0
    %4697 = vmatprep.mubr.bf16.mxu0 0
    %4698 = vmatmul.mubr.bf16.gmra.mrb[0].mxu0 %v1590
    %v4699 = vpop.f32.mrb[0].mxu0
    %v4700 = vadd.f32 %v4155, %v4699
    %v4701 = vpop.f32.mrb[0].mxu0
    %v4702 = vpop.f32.mrb[0].mxu0
    %v4703 = vadd.f32 %v4158, %v4702
    %v4704 = vpop.f32.mrb[0].mxu0
    %4705 = vmatprep.mubr.bf16.mxu0 0
    %4706 = vmatmul.mubr.bf16.gmra.mrb[0].mxu0 %v1478
    %v4707 = vpop.f32.mrb[0].mxu0
    %v4708 = vadd.f32 %v4163, %v4707
    %v4709 = vpop.f32.mrb[0].mxu0
    %v4710 = vpop.f32.mrb[0].mxu0
    %v4711 = vadd.f32 %v4166, %v4710
    %v4712 = vpop.f32.mrb[0].mxu0
    %4713 = vmatprep.mubr.bf16.mxu0 0
    %4714 = vmatmul.mubr.bf16.gmra.mrb[0].mxu0 %v1591
    %v4715 = vpop.f32.mrb[0].mxu0
    %v4716 = vadd.f32 %v4171, %v4715
    %v4717 = vpop.f32.mrb[0].mxu0
    %v4718 = vpop.f32.mrb[0].mxu0
    %v4719 = vadd.f32 %v4174, %v4718
    %v4720 = vpop.f32.mrb[0].mxu0
    %4721 = vmatprep.mubr.bf16.mxu0 0
    %4722 = vmatmul.mubr.bf16.gmra.mrb[0].mxu0 %v1483
    %v4723 = vpop.f32.mrb[0].mxu0
    %v4724 = vadd.f32 %v4179, %v4723
    %v4725 = vpop.f32.mrb[0].mxu0
    %v4726 = vpop.f32.mrb[0].mxu0
    %v4727 = vadd.f32 %v4182, %v4726
    %v4728 = vpop.f32.mrb[0].mxu0
    %4729 = vmatprep.mubr.bf16.mxu0 0
    %4730 = vmatmul.mubr.bf16.gmra.mrb[0].mxu0 %v1592
    %v4731 = vpop.f32.mrb[0].mxu0
    %v4732 = vadd.f32 %v4187, %v4731
    %v4733 = vpop.f32.mrb[0].mxu0
    %v4734 = vpop.f32.mrb[0].mxu0
    %v4735 = vadd.f32 %v4190, %v4734
    %v4736 = vpop.f32.mrb[0].mxu0
    %4737 = vmatprep.mubr.bf16.mxu0 0
    %4738 = vmatmul.mubr.bf16.gmra.mrb[0].mxu0 %v1488
    %v4739 = vpop.f32.mrb[0].mxu0
    %v4740 = vadd.f32 %v4195, %v4739
    %v4741 = vpop.f32.mrb[0].mxu0
    %v4742 = vpop.f32.mrb[0].mxu0
    %v4743 = vadd.f32 %v4198, %v4742
    %v4744 = vpop.f32.mrb[0].mxu0
    %4745 = vmatprep.mubr.bf16.mxu0 0
    %4746 = vmatmul.mubr.bf16.gmra.mrb[0].mxu0 %v1593
    %v4747 = vpop.f32.mrb[0].mxu0
    %v4748 = vadd.f32 %v4203, %v4747
    %v4749 = vpop.f32.mrb[0].mxu0
    %v4750 = vpop.f32.mrb[0].mxu0
    %v4751 = vadd.f32 %v4206, %v4750
    %v4752 = vpop.f32.mrb[0].mxu0
    %4753 = vdwg.mxu0
    %v4754 = vadd.f32 %v3344, %v4244
    %v4755 = vadd.f32 %v3345, %v4247
    %v4756 = vadd.f32 %v3346, %v4252
    %v4757 = vadd.f32 %v3347, %v4255
    %v4758 = vadd.f32 %v3348, %v4260
    %v4759 = vadd.f32 %v3349, %v4263
    %v4760 = vadd.f32 %v3350, %v4268
    %v4761 = vadd.f32 %v3351, %v4271
    %v4762 = vadd.f32 %v3352, %v4276
    %v4763 = vadd.f32 %v3353, %v4279
    %v4764 = vadd.f32 %v3354, %v4284
    %v4765 = vadd.f32 %v3355, %v4287
    %v4766 = vadd.f32 %v3356, %v4292
    %v4767 = vadd.f32 %v3357, %v4295
    %v4768 = vadd.f32 %v3358, %v4300
    %v4769 = vadd.f32 %v3359, %v4303
    %v4770 = vadd.f32 %v3360, %v4308
    %v4771 = vadd.f32 %v3361, %v4311
    %v4772 = vadd.f32 %v3362, %v4316
    %v4773 = vadd.f32 %v3363, %v4319
    %v4774 = vadd.f32 %v3364, %v4324
    %v4775 = vadd.f32 %v3365, %v4327
    %v4776 = vadd.f32 %v3366, %v4332
    %v4777 = vadd.f32 %v3367, %v4335
    %v4778 = vadd.f32 %v3368, %v4340
    %v4779 = vadd.f32 %v3369, %v4343
    %v4780 = vadd.f32 %v3370, %v4348
    %v4781 = vadd.f32 %v3371, %v4351
    %v4782 = vadd.f32 %v3372, %v4356
    %v4783 = vadd.f32 %v3373, %v4359
    %v4784 = vadd.f32 %v3374, %v4364
    %v4785 = vadd.f32 %v3375, %v4367
    %v4786 = vadd.f32 %v3376, %v4372
    %v4787 = vadd.f32 %v3377, %v4375
    %v4788 = vadd.f32 %v3378, %v4380
    %v4789 = vadd.f32 %v3379, %v4383
    %v4790 = vadd.f32 %v3380, %v4388
    %v4791 = vadd.f32 %v3381, %v4391
    %v4792 = vadd.f32 %v3382, %v4396
    %v4793 = vadd.f32 %v3383, %v4399
    %v4794 = vadd.f32 %v3384, %v4404
    %v4795 = vadd.f32 %v3385, %v4407
    %v4796 = vadd.f32 %v3386, %v4412
    %v4797 = vadd.f32 %v3387, %v4415
    %v4798 = vadd.f32 %v3388, %v4420
    %v4799 = vadd.f32 %v3389, %v4423
    %v4800 = vadd.f32 %v3390, %v4428
    %v4801 = vadd.f32 %v3391, %v4431
    %v4802 = vadd.f32 %v3392, %v4436
    %v4803 = vadd.f32 %v3393, %v4439
    %v4804 = vadd.f32 %v3394, %v4444
    %v4805 = vadd.f32 %v3395, %v4447
    %v4806 = vadd.f32 %v3396, %v4452
    %v4807 = vadd.f32 %v3397, %v4455
    %v4808 = vadd.f32 %v3398, %v4460
    %v4809 = vadd.f32 %v3399, %v4463
    %v4810 = vadd.f32 %v3400, %v4468
    %v4811 = vadd.f32 %v3401, %v4471
    %v4812 = vadd.f32 %v3402, %v4476
    %v4813 = vadd.f32 %v3403, %v4479
    %v4814 = vadd.f32 %v3404, %v4484
    %v4815 = vadd.f32 %v3405, %v4487
    %v4816 = vadd.f32 %v3406, %v4492
    %v4817 = vadd.f32 %v3407, %v4495
    %v4818 = vadd.f32 %v3408, %v4500
    %v4819 = vadd.f32 %v3409, %v4503
    %v4820 = vadd.f32 %v3410, %v4508
    %v4821 = vadd.f32 %v3411, %v4511
    %v4822 = vadd.f32 %v3412, %v4516
    %v4823 = vadd.f32 %v3413, %v4519
    %v4824 = vadd.f32 %v3414, %v4524
    %v4825 = vadd.f32 %v3415, %v4527
    %v4826 = vadd.f32 %v3416, %v4532
    %v4827 = vadd.f32 %v3417, %v4535
    %v4828 = vadd.f32 %v3418, %v4540
    %v4829 = vadd.f32 %v3419, %v4543
    %v4830 = vadd.f32 %v3420, %v4548
    %v4831 = vadd.f32 %v3421, %v4551
    %v4832 = vadd.f32 %v3422, %v4556
    %v4833 = vadd.f32 %v3423, %v4559
    %v4834 = vadd.f32 %v3424, %v4564
    %v4835 = vadd.f32 %v3425, %v4567
    %v4836 = vadd.f32 %v3426, %v4572
    %v4837 = vadd.f32 %v3427, %v4575
    %v4838 = vadd.f32 %v3428, %v4580
    %v4839 = vadd.f32 %v3429, %v4583
    %v4840 = vadd.f32 %v3430, %v4588
    %v4841 = vadd.f32 %v3431, %v4591
    %v4842 = vadd.f32 %v3432, %v4596
    %v4843 = vadd.f32 %v3433, %v4599
    %v4844 = vadd.f32 %v3434, %v4604
    %v4845 = vadd.f32 %v3435, %v4607
    %v4846 = vadd.f32 %v3436, %v4612
    %v4847 = vadd.f32 %v3437, %v4615
    %v4848 = vadd.f32 %v3438, %v4620
    %v4849 = vadd.f32 %v3439, %v4623
    %v4850 = vadd.f32 %v3440, %v4628
    %v4851 = vadd.f32 %v3441, %v4631
    %v4852 = vadd.f32 %v3442, %v4636
    %v4853 = vadd.f32 %v3443, %v4639
    %v4854 = vadd.f32 %v3444, %v4644
    %v4855 = vadd.f32 %v3445, %v4647
    %v4856 = vadd.f32 %v3446, %v4652
    %v4857 = vadd.f32 %v3447, %v4655
    %v4858 = vadd.f32 %v3448, %v4660
    %v4859 = vadd.f32 %v3449, %v4663
    %v4860 = vadd.f32 %v3450, %v4668
    %v4861 = vadd.f32 %v3451, %v4671
    %v4862 = vadd.f32 %v3452, %v4676
    %v4863 = vadd.f32 %v3453, %v4679
    %v4864 = vadd.f32 %v3454, %v4684
    %v4865 = vadd.f32 %v3455, %v4687
    %v4866 = vadd.f32 %v3456, %v4692
    %v4867 = vadd.f32 %v3457, %v4695
    %v4868 = vadd.f32 %v3458, %v4700
    %v4869 = vadd.f32 %v3459, %v4703
    %v4870 = vadd.f32 %v3460, %v4708
    %v4871 = vadd.f32 %v3461, %v4711
    %v4872 = vadd.f32 %v3462, %v4716
    %v4873 = vadd.f32 %v3463, %v4719
    %v4874 = vadd.f32 %v3464, %v4724
    %v4875 = vadd.f32 %v3465, %v4727
    %v4876 = vadd.f32 %v3466, %v4732
    %v4877 = vadd.f32 %v3467, %v4735
    %v4878 = vadd.f32 %v3468, %v4740
    %v4879 = vadd.f32 %v3469, %v4743
    %v4880 = vadd.f32 %v3470, %v4748
    %v4881 = vadd.f32 %v3471, %v4751
    %v4882 = vld [vmem:[%s3] sm:$0x1]
    %v4884 = vlaneseq
    %v4885 = vshrl.u32 %v4884, 7
    %v4886 = vsub.s32 0, %v4885
    %v4887 = vrot.slane %v4882, %v4886
    %v4889 = vadd.f32 %v4754, %v4887
    %v4890 = vadd.f32 %v4755, %v4887
    %v4891 = vadd.f32 %v4756, %v4887
    %v4892 = vadd.f32 %v4757, %v4887
    %v4893 = vadd.f32 %v4758, %v4887
    %v4894 = vadd.f32 %v4759, %v4887
    %v4895 = vadd.f32 %v4760, %v4887
    %v4896 = vadd.f32 %v4761, %v4887
    %v4897 = vadd.f32 %v4762, %v4887
    %v4898 = vadd.f32 %v4763, %v4887
    %v4899 = vadd.f32 %v4764, %v4887
    %v4900 = vadd.f32 %v4765, %v4887
    %v4901 = vadd.f32 %v4766, %v4887
    %v4902 = vadd.f32 %v4767, %v4887
    %v4903 = vadd.f32 %v4768, %v4887
    %v4904 = vadd.f32 %v4769, %v4887
    %v4905 = vadd.f32 %v4770, %v4887
    %v4906 = vadd.f32 %v4771, %v4887
    %v4907 = vadd.f32 %v4772, %v4887
    %v4908 = vadd.f32 %v4773, %v4887
    %v4909 = vadd.f32 %v4774, %v4887
    %v4910 = vadd.f32 %v4775, %v4887
    %v4911 = vadd.f32 %v4776, %v4887
    %v4912 = vadd.f32 %v4777, %v4887
    %v4913 = vadd.f32 %v4778, %v4887
    %v4914 = vadd.f32 %v4779, %v4887
    %v4915 = vadd.f32 %v4780, %v4887
    %v4916 = vadd.f32 %v4781, %v4887
    %v4917 = vadd.f32 %v4782, %v4887
    %v4918 = vadd.f32 %v4783, %v4887
    %v4919 = vadd.f32 %v4784, %v4887
    %v4920 = vadd.f32 %v4785, %v4887
    %v4921 = vadd.f32 %v4786, %v4887
    %v4922 = vadd.f32 %v4787, %v4887
    %v4923 = vadd.f32 %v4788, %v4887
    %v4924 = vadd.f32 %v4789, %v4887
    %v4925 = vadd.f32 %v4790, %v4887
    %v4926 = vadd.f32 %v4791, %v4887
    %v4927 = vadd.f32 %v4792, %v4887
    %v4928 = vadd.f32 %v4793, %v4887
    %v4929 = vadd.f32 %v4794, %v4887
    %v4930 = vadd.f32 %v4795, %v4887
    %v4931 = vadd.f32 %v4796, %v4887
    %v4932 = vadd.f32 %v4797, %v4887
    %v4933 = vadd.f32 %v4798, %v4887
    %v4934 = vadd.f32 %v4799, %v4887
    %v4935 = vadd.f32 %v4800, %v4887
    %v4936 = vadd.f32 %v4801, %v4887
    %v4937 = vadd.f32 %v4802, %v4887
    %v4938 = vadd.f32 %v4803, %v4887
    %v4939 = vadd.f32 %v4804, %v4887
    %v4940 = vadd.f32 %v4805, %v4887
    %v4941 = vadd.f32 %v4806, %v4887
    %v4942 = vadd.f32 %v4807, %v4887
    %v4943 = vadd.f32 %v4808, %v4887
    %v4944 = vadd.f32 %v4809, %v4887
    %v4945 = vadd.f32 %v4810, %v4887
    %v4946 = vadd.f32 %v4811, %v4887
    %v4947 = vadd.f32 %v4812, %v4887
    %v4948 = vadd.f32 %v4813, %v4887
    %v4949 = vadd.f32 %v4814, %v4887
    %v4950 = vadd.f32 %v4815, %v4887
    %v4951 = vadd.f32 %v4816, %v4887
    %v4952 = vadd.f32 %v4817, %v4887
    %v4953 = vadd.f32 %v4818, %v4887
    %v4954 = vadd.f32 %v4819, %v4887
    %v4955 = vadd.f32 %v4820, %v4887
    %v4956 = vadd.f32 %v4821, %v4887
    %v4957 = vadd.f32 %v4822, %v4887
    %v4958 = vadd.f32 %v4823, %v4887
    %v4959 = vadd.f32 %v4824, %v4887
    %v4960 = vadd.f32 %v4825, %v4887
    %v4961 = vadd.f32 %v4826, %v4887
    %v4962 = vadd.f32 %v4827, %v4887
    %v4963 = vadd.f32 %v4828, %v4887
    %v4964 = vadd.f32 %v4829, %v4887
    %v4965 = vadd.f32 %v4830, %v4887
    %v4966 = vadd.f32 %v4831, %v4887
    %v4967 = vadd.f32 %v4832, %v4887
    %v4968 = vadd.f32 %v4833, %v4887
    %v4969 = vadd.f32 %v4834, %v4887
    %v4970 = vadd.f32 %v4835, %v4887
    %v4971 = vadd.f32 %v4836, %v4887
    %v4972 = vadd.f32 %v4837, %v4887
    %v4973 = vadd.f32 %v4838, %v4887
    %v4974 = vadd.f32 %v4839, %v4887
    %v4975 = vadd.f32 %v4840, %v4887
    %v4976 = vadd.f32 %v4841, %v4887
    %v4977 = vadd.f32 %v4842, %v4887
    %v4978 = vadd.f32 %v4843, %v4887
    %v4979 = vadd.f32 %v4844, %v4887
    %v4980 = vadd.f32 %v4845, %v4887
    %v4981 = vadd.f32 %v4846, %v4887
    %v4982 = vadd.f32 %v4847, %v4887
    %v4983 = vadd.f32 %v4848, %v4887
    %v4984 = vadd.f32 %v4849, %v4887
    %v4985 = vadd.f32 %v4850, %v4887
    %v4986 = vadd.f32 %v4851, %v4887
    %v4987 = vadd.f32 %v4852, %v4887
    %v4988 = vadd.f32 %v4853, %v4887
    %v4989 = vadd.f32 %v4854, %v4887
    %v4990 = vadd.f32 %v4855, %v4887
    %v4991 = vadd.f32 %v4856, %v4887
    %v4992 = vadd.f32 %v4857, %v4887
    %v4993 = vadd.f32 %v4858, %v4887
    %v4994 = vadd.f32 %v4859, %v4887
    %v4995 = vadd.f32 %v4860, %v4887
    %v4996 = vadd.f32 %v4861, %v4887
    %v4997 = vadd.f32 %v4862, %v4887
    %v4998 = vadd.f32 %v4863, %v4887
    %v4999 = vadd.f32 %v4864, %v4887
    %v5000 = vadd.f32 %v4865, %v4887
    %v5001 = vadd.f32 %v4866, %v4887
    %v5002 = vadd.f32 %v4867, %v4887
    %v5003 = vadd.f32 %v4868, %v4887
    %v5004 = vadd.f32 %v4869, %v4887
    %v5005 = vadd.f32 %v4870, %v4887
    %v5006 = vadd.f32 %v4871, %v4887
    %v5007 = vadd.f32 %v4872, %v4887
    %v5008 = vadd.f32 %v4873, %v4887
    %v5009 = vadd.f32 %v4874, %v4887
    %v5010 = vadd.f32 %v4875, %v4887
    %v5011 = vadd.f32 %v4876, %v4887
    %v5012 = vadd.f32 %v4877, %v4887
    %v5013 = vadd.f32 %v4878, %v4887
    %v5014 = vadd.f32 %v4879, %v4887
    %v5015 = vadd.f32 %v4880, %v4887
    %v5016 = vadd.f32 %v4881, %v4887
    %5017 = vst [vmem:[#allocation8] sm:$0xff] %v4889
    %5018 = vst [vmem:[#allocation8 + $0x8] sm:$0xff] %v4890
    %5019 = vst [vmem:[#allocation8 + $0x10] sm:$0xff] %v4891
    %5020 = vst [vmem:[#allocation8 + $0x18] sm:$0xff] %v4892
    %5021 = vst [vmem:[#allocation8 + $0x20] sm:$0xff] %v4893
    %5022 = vst [vmem:[#allocation8 + $0x28] sm:$0xff] %v4894
    %5023 = vst [vmem:[#allocation8 + $0x30] sm:$0xff] %v4895
    %5024 = vst [vmem:[#allocation8 + $0x38] sm:$0xff] %v4896
    %5025 = vst [vmem:[#allocation8 + $0x40] sm:$0xff] %v4897
    %5026 = vst [vmem:[#allocation8 + $0x48] sm:$0xff] %v4898
    %5027 = vst [vmem:[#allocation8 + $0x50] sm:$0xff] %v4899
    %5028 = vst [vmem:[#allocation8 + $0x58] sm:$0xff] %v4900
    %5029 = vst [vmem:[#allocation8 + $0x60] sm:$0xff] %v4901
    %5030 = vst [vmem:[#allocation8 + $0x68] sm:$0xff] %v4902
    %5031 = vst [vmem:[#allocation8 + $0x70] sm:$0xff] %v4903
    %5032 = vst [vmem:[#allocation8 + $0x78] sm:$0xff] %v4904
    %5033 = vst [vmem:[#allocation8 + $0x80] sm:$0xff] %v4905
    %5034 = vst [vmem:[#allocation8 + $0x88] sm:$0xff] %v4906
    %5035 = vst [vmem:[#allocation8 + $0x90] sm:$0xff] %v4907
    %5036 = vst [vmem:[#allocation8 + $0x98] sm:$0xff] %v4908
    %5037 = vst [vmem:[#allocation8 + $0xa0] sm:$0xff] %v4909
    %5038 = vst [vmem:[#allocation8 + $0xa8] sm:$0xff] %v4910
    %5039 = vst [vmem:[#allocation8 + $0xb0] sm:$0xff] %v4911
    %5040 = vst [vmem:[#allocation8 + $0xb8] sm:$0xff] %v4912
    %5041 = vst [vmem:[#allocation8 + $0xc0] sm:$0xff] %v4913
    %5042 = vst [vmem:[#allocation8 + $0xc8] sm:$0xff] %v4914
    %5043 = vst [vmem:[#allocation8 + $0xd0] sm:$0xff] %v4915
    %5044 = vst [vmem:[#allocation8 + $0xd8] sm:$0xff] %v4916
    %5045 = vst [vmem:[#allocation8 + $0xe0] sm:$0xff] %v4917
    %5046 = vst [vmem:[#allocation8 + $0xe8] sm:$0xff] %v4918
    %5047 = vst [vmem:[#allocation8 + $0xf0] sm:$0xff] %v4919
    %5048 = vst [vmem:[#allocation8 + $0xf8] sm:$0xff] %v4920
    %5049 = vst [vmem:[#allocation8 + $0x100] sm:$0xff] %v4921
    %5050 = vst [vmem:[#allocation8 + $0x108] sm:$0xff] %v4922
    %5051 = vst [vmem:[#allocation8 + $0x110] sm:$0xff] %v4923
    %5052 = vst [vmem:[#allocation8 + $0x118] sm:$0xff] %v4924
    %5053 = vst [vmem:[#allocation8 + $0x120] sm:$0xff] %v4925
    %5054 = vst [vmem:[#allocation8 + $0x128] sm:$0xff] %v4926
    %5055 = vst [vmem:[#allocation8 + $0x130] sm:$0xff] %v4927
    %5056 = vst [vmem:[#allocation8 + $0x138] sm:$0xff] %v4928
    %5057 = vst [vmem:[#allocation8 + $0x140] sm:$0xff] %v4929
    %5058 = vst [vmem:[#allocation8 + $0x148] sm:$0xff] %v4930
    %5059 = vst [vmem:[#allocation8 + $0x150] sm:$0xff] %v4931
    %5060 = vst [vmem:[#allocation8 + $0x158] sm:$0xff] %v4932
    %5061 = vst [vmem:[#allocation8 + $0x160] sm:$0xff] %v4933
    %5062 = vst [vmem:[#allocation8 + $0x168] sm:$0xff] %v4934
    %5063 = vst [vmem:[#allocation8 + $0x170] sm:$0xff] %v4935
    %5064 = vst [vmem:[#allocation8 + $0x178] sm:$0xff] %v4936
    %5065 = vst [vmem:[#allocation8 + $0x180] sm:$0xff] %v4937
    %5066 = vst [vmem:[#allocation8 + $0x188] sm:$0xff] %v4938
    %5067 = vst [vmem:[#allocation8 + $0x190] sm:$0xff] %v4939
    %5068 = vst [vmem:[#allocation8 + $0x198] sm:$0xff] %v4940
    %5069 = vst [vmem:[#allocation8 + $0x1a0] sm:$0xff] %v4941
    %5070 = vst [vmem:[#allocation8 + $0x1a8] sm:$0xff] %v4942
    %5071 = vst [vmem:[#allocation8 + $0x1b0] sm:$0xff] %v4943
    %5072 = vst [vmem:[#allocation8 + $0x1b8] sm:$0xff] %v4944
    %5073 = vst [vmem:[#allocation8 + $0x1c0] sm:$0xff] %v4945
    %5074 = vst [vmem:[#allocation8 + $0x1c8] sm:$0xff] %v4946
    %5075 = vst [vmem:[#allocation8 + $0x1d0] sm:$0xff] %v4947
    %5076 = vst [vmem:[#allocation8 + $0x1d8] sm:$0xff] %v4948
    %5077 = vst [vmem:[#allocation8 + $0x1e0] sm:$0xff] %v4949
    %5078 = vst [vmem:[#allocation8 + $0x1e8] sm:$0xff] %v4950
    %5079 = vst [vmem:[#allocation8 + $0x1f0] sm:$0xff] %v4951
    %5080 = vst [vmem:[#allocation8 + $0x1f8] sm:$0xff] %v4952
    %5081 = vst [vmem:[#allocation8 + $0x200] sm:$0xff] %v4953
    %5082 = vst [vmem:[#allocation8 + $0x208] sm:$0xff] %v4954
    %5083 = vst [vmem:[#allocation8 + $0x210] sm:$0xff] %v4955
    %5084 = vst [vmem:[#allocation8 + $0x218] sm:$0xff] %v4956
    %5085 = vst [vmem:[#allocation8 + $0x220] sm:$0xff] %v4957
    %5086 = vst [vmem:[#allocation8 + $0x228] sm:$0xff] %v4958
    %5087 = vst [vmem:[#allocation8 + $0x230] sm:$0xff] %v4959
    %5088 = vst [vmem:[#allocation8 + $0x238] sm:$0xff] %v4960
    %5089 = vst [vmem:[#allocation8 + $0x240] sm:$0xff] %v4961
    %5090 = vst [vmem:[#allocation8 + $0x248] sm:$0xff] %v4962
    %5091 = vst [vmem:[#allocation8 + $0x250] sm:$0xff] %v4963
    %5092 = vst [vmem:[#allocation8 + $0x258] sm:$0xff] %v4964
    %5093 = vst [vmem:[#allocation8 + $0x260] sm:$0xff] %v4965
    %5094 = vst [vmem:[#allocation8 + $0x268] sm:$0xff] %v4966
    %5095 = vst [vmem:[#allocation8 + $0x270] sm:$0xff] %v4967
    %5096 = vst [vmem:[#allocation8 + $0x278] sm:$0xff] %v4968
    %5097 = vst [vmem:[#allocation8 + $0x280] sm:$0xff] %v4969
    %5098 = vst [vmem:[#allocation8 + $0x288] sm:$0xff] %v4970
    %5099 = vst [vmem:[#allocation8 + $0x290] sm:$0xff] %v4971
    %5100 = vst [vmem:[#allocation8 + $0x298] sm:$0xff] %v4972
    %5101 = vst [vmem:[#allocation8 + $0x2a0] sm:$0xff] %v4973
    %5102 = vst [vmem:[#allocation8 + $0x2a8] sm:$0xff] %v4974
    %5103 = vst [vmem:[#allocation8 + $0x2b0] sm:$0xff] %v4975
    %5104 = vst [vmem:[#allocation8 + $0x2b8] sm:$0xff] %v4976
    %5105 = vst [vmem:[#allocation8 + $0x2c0] sm:$0xff] %v4977
    %5106 = vst [vmem:[#allocation8 + $0x2c8] sm:$0xff] %v4978
    %5107 = vst [vmem:[#allocation8 + $0x2d0] sm:$0xff] %v4979
    %5108 = vst [vmem:[#allocation8 + $0x2d8] sm:$0xff] %v4980
    %5109 = vst [vmem:[#allocation8 + $0x2e0] sm:$0xff] %v4981
    %5110 = vst [vmem:[#allocation8 + $0x2e8] sm:$0xff] %v4982
    %5111 = vst [vmem:[#allocation8 + $0x2f0] sm:$0xff] %v4983
    %5112 = vst [vmem:[#allocation8 + $0x2f8] sm:$0xff] %v4984
    %5113 = vst [vmem:[#allocation8 + $0x300] sm:$0xff] %v4985
    %5114 = vst [vmem:[#allocation8 + $0x308] sm:$0xff] %v4986
    %5115 = vst [vmem:[#allocation8 + $0x310] sm:$0xff] %v4987
    %5116 = vst [vmem:[#allocation8 + $0x318] sm:$0xff] %v4988
    %5117 = vst [vmem:[#allocation8 + $0x320] sm:$0xff] %v4989
    %5118 = vst [vmem:[#allocation8 + $0x328] sm:$0xff] %v4990
    %5119 = vst [vmem:[#allocation8 + $0x330] sm:$0xff] %v4991
    %5120 = vst [vmem:[#allocation8 + $0x338] sm:$0xff] %v4992
    %5121 = vst [vmem:[#allocation8 + $0x340] sm:$0xff] %v4993
    %5122 = vst [vmem:[#allocation8 + $0x348] sm:$0xff] %v4994
    %5123 = vst [vmem:[#allocation8 + $0x350] sm:$0xff] %v4995
    %5124 = vst [vmem:[#allocation8 + $0x358] sm:$0xff] %v4996
    %5125 = vst [vmem:[#allocation8 + $0x360] sm:$0xff] %v4997
    %5126 = vst [vmem:[#allocation8 + $0x368] sm:$0xff] %v4998
    %5127 = vst [vmem:[#allocation8 + $0x370] sm:$0xff] %v4999
    %5128 = vst [vmem:[#allocation8 + $0x378] sm:$0xff] %v5000
    %5129 = vst [vmem:[#allocation8 + $0x380] sm:$0xff] %v5001
    %5130 = vst [vmem:[#allocation8 + $0x388] sm:$0xff] %v5002
    %5131 = vst [vmem:[#allocation8 + $0x390] sm:$0xff] %v5003
    %5132 = vst [vmem:[#allocation8 + $0x398] sm:$0xff] %v5004
    %5133 = vst [vmem:[#allocation8 + $0x3a0] sm:$0xff] %v5005
    %5134 = vst [vmem:[#allocation8 + $0x3a8] sm:$0xff] %v5006
    %5135 = vst [vmem:[#allocation8 + $0x3b0] sm:$0xff] %v5007
    %5136 = vst [vmem:[#allocation8 + $0x3b8] sm:$0xff] %v5008
    %5137 = vst [vmem:[#allocation8 + $0x3c0] sm:$0xff] %v5009
    %5138 = vst [vmem:[#allocation8 + $0x3c8] sm:$0xff] %v5010
    %5139 = vst [vmem:[#allocation8 + $0x3d0] sm:$0xff] %v5011
    %5140 = vst [vmem:[#allocation8 + $0x3d8] sm:$0xff] %v5012
    %5141 = vst [vmem:[#allocation8 + $0x3e0] sm:$0xff] %v5013
    %5142 = vst [vmem:[#allocation8 + $0x3e8] sm:$0xff] %v5014
    %5143 = vst [vmem:[#allocation8 + $0x3f0] sm:$0xff] %v5015
    %5144 = vst [vmem:[#allocation8 + $0x3f8] sm:$0xff] %v5016
    // Predicated region
    $region30: #{tpu_custom_call.1} parent=1 // pred_check
      _
    $region31: #{tpu_custom_call.1} parent=1 // pred_check_branch
      %5146 = sbr.rel (0) target = $region33
    $region32: #{tpu_custom_call.1} parent=1 // pred_region
      %s5148 = ssub.s32 16384, 16384
      %5149 = vsyncadd [#allocation4], %s5148
      %s5150 = sshll.u32 [#allocation8], 4
      %s5151 = int_to_ptr.vmem [resolvable:$true] %s5150
      %5156 = dma.vmem_to_hbm [thread:$0]  %s5151, 16384, %s4, [#allocation4], 128, 128, 8
    $region33: #{tpu_custom_call.1} parent=1 // pred_fallthru
      _
    // Predicated region
    $region34: #{tpu_custom_call.1} parent=1 // pred_check
      _
    $region35: #{tpu_custom_call.1} parent=1 // pred_check_branch
      %5158 = sbr.rel (0) target = $region37
    $region36: #{tpu_custom_call.1} parent=1 // pred_region
      %5159 = dma.done [#allocation4], 16384
    $region37: #{tpu_custom_call.1} parent=1 // pred_fallthru
      _
    %5160 = vsyncpa [#allocation3], 1
    %5161 = vsyncpa [#allocation6], 1
    %5162 = vsyncpa [#allocation4], 1

</llo_original>
